<compile_context>
chip_gen: v6e
topology: v6e:2x2x1
jax: 0.10.0
libtpu: 0.0.40
codegen_flags: <defaults>
</compile_context>

<pallas_src>
import functools
import math

import jax
import jax.numpy as jnp
from jax.experimental import pallas as pl
from jax.experimental.pallas import tpu as pltpu


# ----------------------------------------------------------------------------
# Pallas kernel
# ----------------------------------------------------------------------------
def _all_inputs_encoder_kernel(
        ws_ref, tok_emb_ref,
        ws_emb_w_ref, ws_emb_b_ref,
        wsf_wih_ref, wsf_bih_ref,
        wsb_wih_ref, wsb_bih_ref,
        ws_whh_ref, ws_bhh_ref,
        pu_lin_w_ref, pu_lin_b_ref,
        pu_wih_ref, pu_bih_ref,
        pu_whh_ref, pu_bhh_ref,
        prev_out_ref, enc_ref,
        *, Tb, Tu, Bp):
    f32 = jnp.float32
    bf16 = jnp.bfloat16
    Hw2 = ws_whh_ref.shape[0]      # fused world-state width = 2*Hw ([h_fwd|h_bwd])
    Gw = ws_whh_ref.shape[1]       # 6*Hw gate columns [r_f|r_b|z_f|z_b|n_f|n_b]
    Hp = pu_whh_ref.shape[0]
    Gp = pu_whh_ref.shape[1]       # 3*Hp gate columns [r|z|n]

    # ---------------- WorldStateEncoderRNN --------------------------------
    # Block embedding (Linear + tanh) hoisted over all Tb*Bp rows, bf16 MXU
    # operands with f32 accumulation.
    emb = jnp.tanh(jnp.dot(ws_ref[...], ws_emb_w_ref[...],
                           preferred_element_type=f32) + ws_emb_b_ref[...])
    emb16 = emb.astype(bf16)
    # Hoisted input projections for BOTH directions.  The per-direction
    # weights/biases are pre-expanded (wrapper) with zero columns in the other
    # direction's gate slots, so combining fwd(t) with bwd(Tb-1-t) below is a
    # plain vreg add — no lane concatenation or gate shuffles anywhere.
    gx_f = (jnp.dot(emb16, wsf_wih_ref[...], preferred_element_type=f32)
            + wsf_bih_ref[...])                       # (Tb*Bp, 6Hw)
    gx_b = (jnp.dot(emb16, wsb_wih_ref[...], preferred_element_type=f32)
            + wsb_bih_ref[...])                       # (Tb*Bp, 6Hw)

    ws_whh = ws_whh_ref[...]                          # (2Hw, 6Hw) block-diagonal
    ws_bhh = jnp.broadcast_to(ws_bhh_ref[...], (Bp, Gw))   # hoisted broadcast

    h_ws = jnp.zeros((Bp, Hw2), f32)                  # [h_fwd | h_bwd]
    for t in range(Tb):
        f0 = t * Bp                                   # sublane-aligned offsets
        b0 = (Tb - 1 - t) * Bp
        gx = gx_f[f0:f0 + Bp] + gx_b[b0:b0 + Bp]      # (Bp, 6Hw)
        gh = jnp.dot(h_ws, ws_whh, preferred_element_type=f32) + ws_bhh
        rz = jax.nn.sigmoid(gx[:, :2 * Hw2] + gh[:, :2 * Hw2])   # one EUP push
        r, z = rz[:, :Hw2], rz[:, Hw2:]
        n = jnp.tanh(gx[:, 2 * Hw2:] + r * gh[:, 2 * Hw2:])      # PyTorch GRU
        h_ws = (1.0 - z) * n + z * h_ws

    # ---------------- PrevUtterancesEncoder -------------------------------
    # Token embeddings were gathered in the wrapper; Linear + tanh + hoisted
    # input projection here (bf16 operands, f32 accumulation).
    proj = jnp.tanh(jnp.dot(tok_emb_ref[...], pu_lin_w_ref[...],
                            preferred_element_type=f32) + pu_lin_b_ref[...])
    gx_p = (jnp.dot(proj.astype(bf16), pu_wih_ref[...],
                    preferred_element_type=f32) + pu_bih_ref[...])  # (Tu*Bp, 3Hp)

    pu_whh = pu_whh_ref[...]
    pu_bhh = jnp.broadcast_to(pu_bhh_ref[...], (Bp, Gp))

    h_p = jnp.zeros((Bp, Hp), f32)
    outs = []
    for t in range(Tu):
        r0 = t * Bp
        gx = gx_p[r0:r0 + Bp]
        gh = jnp.dot(h_p, pu_whh, preferred_element_type=f32) + pu_bhh
        rz = jax.nn.sigmoid(gx[:, :2 * Hp] + gh[:, :2 * Hp])
        r, z = rz[:, :Hp], rz[:, Hp:]
        n = jnp.tanh(gx[:, 2 * Hp:] + r * gh[:, 2 * Hp:])
        h_p = (1.0 - z) * n + z * h_p
        outs.append(h_p)

    # One slab store after the loop (no per-step masked partial stores).
    prev_out_ref[...] = jnp.stack(outs, axis=0)

    # rnn == 'gru' branch of AllInputsEncoder.forward: cat along features.
    # h_ws already is [h_fwd | h_bwd], so this matches cat(h_f, h_b, h_p).
    enc_ref[...] = jnp.concatenate([h_ws, h_p], axis=1)


# ----------------------------------------------------------------------------
# Fused-layout weight builders (pure JAX, run once per call in the wrapper)
# ----------------------------------------------------------------------------
def _expand_dir_ih(wih, bih, hw, dir_idx):
    """Per-direction gate-stacked (in,3Hw)/(1,3Hw) -> fused bidirectional column
    layout (in,6Hw)/(1,6Hw) with zeros in the other direction's gate columns."""
    din = wih.shape[0]
    w = jnp.zeros((din, 3, 2, hw), wih.dtype)
    w = w.at[:, :, dir_idx, :].set(wih.reshape(din, 3, hw))
    b = jnp.zeros((3, 2, hw), bih.dtype)
    b = b.at[:, dir_idx, :].set(bih.reshape(3, hw))
    return w.reshape(din, 6 * hw), b.reshape(1, 6 * hw)


def _fuse_bidir_hh(whh_f, bhh_f, whh_b, bhh_b, hw):
    """Block-diagonal recurrent weight for the fused [h_fwd|h_bwd] state."""
    w = jnp.zeros((2, hw, 3, 2, hw), whh_f.dtype)
    w = w.at[0, :, :, 0, :].set(whh_f.reshape(hw, 3, hw))
    w = w.at[1, :, :, 1, :].set(whh_b.reshape(hw, 3, hw))
    b = jnp.zeros((3, 2, hw), bhh_f.dtype)
    b = b.at[:, 0, :].set(bhh_f.reshape(3, hw))
    b = b.at[:, 1, :].set(bhh_b.reshape(3, hw))
    return w.reshape(2 * hw, 6 * hw), b.reshape(1, 6 * hw)


# ----------------------------------------------------------------------------
# Wrapper
# ----------------------------------------------------------------------------
@jax.jit
def all_inputs_encoder_forward(params, world_state, utterance_tokens):
    """
    world_state:      (Tb, B, block_input_size) float32, time-major
    utterance_tokens: (Tu, B)                   int32,   time-major token ids
    Returns (prev_utterances_outputs (Tu,B,Hp), input_encoding (1,B,2*Hw+Hp)).
    """
    Tb, B, Dblk = world_state.shape
    Tu = utterance_tokens.shape[0]
    Hw = params["ws_fwd"]["whh"].shape[0]
    Hp = params["pu_gru"]["whh"].shape[0]
    Eblk = params["ws_emb_w"].shape[1]
    Lenc = params["pu_lin_w"].shape[1]
    Etok = params["pu_embed_table"].shape[1]
    Bp = ((B + 7) // 8) * 8     # pad batch to a full sublane; pad rows sliced off
    bf16 = jnp.bfloat16

    # Batch-pad inputs so every per-timestep slice starts at a sublane multiple.
    ws_p = jnp.zeros((Tb, Bp, Dblk), jnp.float32).at[:, :B].set(world_state)
    # Embedding gather stays OUTSIDE the kernel: keeps the vocab table out of
    # VMEM and removes the one-hot matmul (scales to realistic vocab sizes).
    tok_emb = jnp.take(params["pu_embed_table"], utterance_tokens, axis=0)
    tok_p = jnp.zeros((Tu, Bp, Etok), jnp.float32).at[:, :B].set(tok_emb)

    # Fused gate layouts (built once per call; tiny).
    wsf_wih, wsf_bih = _expand_dir_ih(params["ws_fwd"]["wih"],
                                      params["ws_fwd"]["bih"], Hw, 0)
    wsb_wih, wsb_bih = _expand_dir_ih(params["ws_bwd"]["wih"],
                                      params["ws_bwd"]["bih"], Hw, 1)
    ws_whh, ws_bhh = _fuse_bidir_hh(params["ws_fwd"]["whh"], params["ws_fwd"]["bhh"],
                                    params["ws_bwd"]["whh"], params["ws_bwd"]["bhh"],
                                    Hw)

    operands = (
        ws_p.reshape(Tb * Bp, Dblk).astype(bf16),
        tok_p.reshape(Tu * Bp, Etok).astype(bf16),
        params["ws_emb_w"].astype(bf16), params["ws_emb_b"],
        wsf_wih.astype(bf16), wsf_bih,
        wsb_wih.astype(bf16), wsb_bih,
        ws_whh, ws_bhh,
        params["pu_lin_w"].astype(bf16), params["pu_lin_b"],
        params["pu_gru"]["wih"].astype(bf16), params["pu_gru"]["bih"],
        params["pu_gru"]["whh"], params["pu_gru"]["bhh"],
    )

    out_shapes = (jax.ShapeDtypeStruct((Tu, Bp, Hp), jnp.float32),
                  jax.ShapeDtypeStruct((Bp, 2 * Hw + Hp), jnp.float32))

    # Advisory cost hint for XLA's scheduler around the custom call.
    mm_flops = 2 * (Tb * Bp * Dblk * Eblk            # block embedding
                    + 2 * Tb * Bp * Eblk * 6 * Hw    # fwd+bwd hoisted input proj
                    + Tb * Bp * 2 * Hw * 6 * Hw      # fused recurrent matmuls
                    + Tu * Bp * Etok * Lenc          # utterance linear
                    + Tu * Bp * Lenc * 3 * Hp        # hoisted utterance input proj
                    + Tu * Bp * Hp * 3 * Hp)         # utterance recurrent matmuls
    transc = Tb * Bp * (Eblk + 6 * Hw) + Tu * Bp * (Lenc + 3 * Hp)
    bytes_accessed = int(sum(x.size * x.dtype.itemsize for x in operands)
                         + sum(math.prod(s.shape) * 4 for s in out_shapes))

    vmem = pl.BlockSpec(memory_space=pltpu.MemorySpace.VMEM)
    kernel = functools.partial(_all_inputs_encoder_kernel, Tb=Tb, Tu=Tu, Bp=Bp)

    prev_out, enc = pl.pallas_call(
        kernel,
        out_shape=out_shapes,
        in_specs=[vmem] * len(operands),
        out_specs=(vmem, vmem),
        cost_estimate=pl.CostEstimate(flops=int(mm_flops),
                                      transcendentals=int(transc),
                                      bytes_accessed=bytes_accessed),
    )(*operands)

    prev_utterances_outputs = prev_out[:, :B, :]     # drop batch padding
    input_encoding = enc[:B][None]                   # (1, B, 2*Hw + Hp)
    return prev_utterances_outputs, input_encoding


# ----------------------------------------------------------------------------
# Parameters (deterministic, in-script). Gate order is PyTorch's [r | z | n].
# ----------------------------------------------------------------------------
def _p(key, shape, scale=0.1):
    return scale * jax.random.normal(key, shape, dtype=jnp.float32)


def _gru_params(key, in_size, hidden):
    k = jax.random.split(key, 4)
    # Gate-stacked layout: wih (in, 3H), whh (H, 3H), biases (1, 3H).
    return {"wih": _p(k[0], (in_size, 3 * hidden)),
            "whh": _p(k[1], (hidden, 3 * hidden)),
            "bih": _p(k[2], (1, 3 * hidden)),
            "bhh": _p(k[3], (1, 3 * hidden))}


def init_params(key, *, block_input_size, block_embedding_size, ws_hidden,
                vocab_size, embed_size, linear_size, pu_hidden):
    ks = jax.random.split(key, 8)
    return {
        # --- WorldStateEncoderRNN ---
        "ws_emb_w": _p(ks[0], (block_input_size, block_embedding_size)),
        "ws_emb_b": _p(ks[1], (1, block_embedding_size)),
        "ws_fwd": _gru_params(ks[2], block_embedding_size, ws_hidden),
        "ws_bwd": _gru_params(ks[3], block_embedding_size, ws_hidden),
        # --- PrevUtterancesEncoder ---
        "pu_embed_table": _p(ks[4], (vocab_size, embed_size)),
        "pu_lin_w": _p(ks[5], (embed_size, linear_size)),
        "pu_lin_b": _p(ks[6], (1, linear_size)),
        "pu_gru": _gru_params(ks[7], linear_size, pu_hidden),
    }


# ----------------------------------------------------------------------------
# Pure-JAX reference (same math, f32 throughout) for a correctness check
# ----------------------------------------------------------------------------
def _reference_forward(params, world_state, utterance_tokens):
    Tb, B, _ = world_state.shape
    Tu = utterance_tokens.shape[0]

    def gru_cell(x, h, p):
        H = p["whh"].shape[0]
        gx = x @ p["wih"] + p["bih"]
        gh = h @ p["whh"] + p["bhh"]
        r = jax.nn.sigmoid(gx[:, :H] + gh[:, :H])
        z = jax.nn.sigmoid(gx[:, H:2 * H] + gh[:, H:2 * H])
        n = jnp.tanh(gx[:, 2 * H:] + r * gh[:, 2 * H:])
        return (1.0 - z) * n + z * h

    emb = jnp.tanh(world_state @ params["ws_emb_w"] + params["ws_emb_b"])
    Hw = params["ws_fwd"]["whh"].shape[0]
    Hp = params["pu_gru"]["whh"].shape[0]
    h_f = jnp.zeros((B, Hw), jnp.float32)
    h_b = jnp.zeros((B, Hw), jnp.float32)
    for t in range(Tb):
        h_f = gru_cell(emb[t], h_f, params["ws_fwd"])
        h_b = gru_cell(emb[Tb - 1 - t], h_b, params["ws_bwd"])

    tok_emb = jnp.take(params["pu_embed_table"], utterance_tokens, axis=0)
    proj = jnp.tanh(tok_emb @ params["pu_lin_w"] + params["pu_lin_b"])
    h_p = jnp.zeros((B, Hp), jnp.float32)
    outs = []
    for t in range(Tu):
        h_p = gru_cell(proj[t], h_p, params["pu_gru"])
        outs.append(h_p)
    prev_outputs = jnp.stack(outs, axis=0)
    input_encoding = jnp.concatenate([h_f, h_b, h_p], axis=1)[None]
    return prev_outputs, input_encoding


# ----------------------------------------------------------------------------
if __name__ == "__main__":
    # Small, module-consistent shapes.
    B = 2      # batch
    Tb = 10    # number of blocks in the world state
    Dblk = 12  # src_input_size (per-block feature vector)
    Eblk = 16  # block_embedding_size
    Hw = 16    # world_state_hidden_size (bidirectional -> 2*Hw = 32)
    Tu = 8     # previous-utterance length
    V = 50     # vocab size
    Etok = 16  # token embedding size
    Lenc = 16  # encoder_linear_size
    Hp = 32    # rnn_hidden_size (unidirectional)

    key = jax.random.PRNGKey(0)
    k_params, k_ws, k_tok = jax.random.split(key, 3)

    params = init_params(
        k_params,
        block_input_size=Dblk, block_embedding_size=Eblk, ws_hidden=Hw,
        vocab_size=V, embed_size=Etok, linear_size=Lenc, pu_hidden=Hp)

    world_state = jax.random.normal(k_ws, (Tb, B, Dblk), dtype=jnp.float32)
    utterance_tokens = jax.random.randint(k_tok, (Tu, B), 0, V, dtype=jnp.int32)

    prev_outputs, input_encoding = all_inputs_encoder_forward(
        params, world_state, utterance_tokens)
    jax.block_until_ready((prev_outputs, input_encoding))

    assert prev_outputs.shape == (Tu, B, Hp)
    assert input_encoding.shape == (1, B, 2 * Hw + Hp)  # == input_encoding_size
    assert bool(jnp.all(jnp.isfinite(prev_outputs)))
    assert bool(jnp.all(jnp.isfinite(input_encoding)))

    ref_outputs, ref_encoding = _reference_forward(
        params, world_state, utterance_tokens)
    # Tolerance loosened slightly vs pure-f32 because hoisted projections use
    # bf16 MXU operands (f32 accumulation); observed error is ~1e-3.
    assert jnp.allclose(prev_outputs, ref_outputs, atol=2e-2, rtol=2e-2)
    assert jnp.allclose(input_encoding, ref_encoding, atol=2e-2, rtol=2e-2)

    print("KERNEL_OK")
</pallas_src>

<mosaic_0001>
module attributes {stable_mosaic.version = 11 : i64} {
  func.func @_all_inputs_encoder_kernel(%arg0: memref<80x12xbf16, #tpu.memory_space<vmem>>, %arg1: memref<64x16xbf16, #tpu.memory_space<vmem>>, %arg2: memref<12x16xbf16, #tpu.memory_space<vmem>>, %arg3: memref<1x16xf32, #tpu.memory_space<vmem>>, %arg4: memref<16x96xbf16, #tpu.memory_space<vmem>>, %arg5: memref<1x96xf32, #tpu.memory_space<vmem>>, %arg6: memref<16x96xbf16, #tpu.memory_space<vmem>>, %arg7: memref<1x96xf32, #tpu.memory_space<vmem>>, %arg8: memref<32x96xf32, #tpu.memory_space<vmem>>, %arg9: memref<1x96xf32, #tpu.memory_space<vmem>>, %arg10: memref<16x16xbf16, #tpu.memory_space<vmem>>, %arg11: memref<1x16xf32, #tpu.memory_space<vmem>>, %arg12: memref<16x96xbf16, #tpu.memory_space<vmem>>, %arg13: memref<1x96xf32, #tpu.memory_space<vmem>>, %arg14: memref<32x96xf32, #tpu.memory_space<vmem>>, %arg15: memref<1x96xf32, #tpu.memory_space<vmem>>, %arg16: memref<8x8x32xf32, #tpu.memory_space<vmem>>, %arg17: memref<8x64xf32, #tpu.memory_space<vmem>>) attributes {dimension_semantics = [], scalar_prefetch = 0 : i64, scratch_operands = 0 : i64, tpu.core_type = #tpu.core_type<tc>} {
    %c0 = arith.constant 0 : index
    %c0_0 = arith.constant 0 : index
    %0 = vector.load %arg0[%c0, %c0_0] : memref<80x12xbf16, #tpu.memory_space<vmem>>, vector<80x12xbf16>
    %c0_1 = arith.constant 0 : index
    %c0_2 = arith.constant 0 : index
    %1 = vector.load %arg2[%c0_1, %c0_2] : memref<12x16xbf16, #tpu.memory_space<vmem>>, vector<12x16xbf16>
    %cst = arith.constant dense<0.000000e+00> : vector<80x16xf32>
    %2 = tpu.matmul %0, %1, %cst {dimension_numbers = #tpu.dot_dimension_numbers<[1], [0], [0], [1], [0, 0, 1, 1], [], []>} : vector<80x12xbf16>, vector<12x16xbf16>, vector<80x16xf32> -> vector<80x16xf32>
    %c0_3 = arith.constant 0 : index
    %c0_4 = arith.constant 0 : index
    %3 = vector.load %arg3[%c0_3, %c0_4] : memref<1x16xf32, #tpu.memory_space<vmem>>, vector<1x16xf32>
    %4 = vector.broadcast %3 : vector<1x16xf32> to vector<80x16xf32>
    %5 = arith.addf %2, %4 : vector<80x16xf32>
    %6 = math.tanh %5 : vector<80x16xf32>
    %7 = arith.truncf %6 : vector<80x16xf32> to vector<80x16xbf16>
    %c0_5 = arith.constant 0 : index
    %c0_6 = arith.constant 0 : index
    %8 = vector.load %arg4[%c0_5, %c0_6] : memref<16x96xbf16, #tpu.memory_space<vmem>>, vector<16x96xbf16>
    %cst_7 = arith.constant dense<0.000000e+00> : vector<80x96xf32>
    %9 = tpu.matmul %7, %8, %cst_7 {dimension_numbers = #tpu.dot_dimension_numbers<[1], [0], [0], [1], [0, 0, 1, 1], [], []>} : vector<80x16xbf16>, vector<16x96xbf16>, vector<80x96xf32> -> vector<80x96xf32>
    %c0_8 = arith.constant 0 : index
    %c0_9 = arith.constant 0 : index
    %10 = vector.load %arg5[%c0_8, %c0_9] : memref<1x96xf32, #tpu.memory_space<vmem>>, vector<1x96xf32>
    %11 = vector.broadcast %10 : vector<1x96xf32> to vector<80x96xf32>
    %12 = arith.addf %9, %11 : vector<80x96xf32>
    %c0_10 = arith.constant 0 : index
    %c0_11 = arith.constant 0 : index
    %13 = vector.load %arg6[%c0_10, %c0_11] : memref<16x96xbf16, #tpu.memory_space<vmem>>, vector<16x96xbf16>
    %cst_12 = arith.constant dense<0.000000e+00> : vector<80x96xf32>
    %14 = tpu.matmul %7, %13, %cst_12 {dimension_numbers = #tpu.dot_dimension_numbers<[1], [0], [0], [1], [0, 0, 1, 1], [], []>} : vector<80x16xbf16>, vector<16x96xbf16>, vector<80x96xf32> -> vector<80x96xf32>
    %c0_13 = arith.constant 0 : index
    %c0_14 = arith.constant 0 : index
    %15 = vector.load %arg7[%c0_13, %c0_14] : memref<1x96xf32, #tpu.memory_space<vmem>>, vector<1x96xf32>
    %16 = vector.broadcast %15 : vector<1x96xf32> to vector<80x96xf32>
    %17 = arith.addf %14, %16 : vector<80x96xf32>
    %c0_15 = arith.constant 0 : index
    %c0_16 = arith.constant 0 : index
    %18 = vector.load %arg8[%c0_15, %c0_16] : memref<32x96xf32, #tpu.memory_space<vmem>>, vector<32x96xf32>
    %c0_17 = arith.constant 0 : index
    %c0_18 = arith.constant 0 : index
    %19 = vector.load %arg9[%c0_17, %c0_18] : memref<1x96xf32, #tpu.memory_space<vmem>>, vector<1x96xf32>
    %20 = vector.shape_cast %19 : vector<1x96xf32> to vector<1x96xf32>
    %21 = vector.broadcast %20 : vector<1x96xf32> to vector<8x96xf32>
    %cst_19 = arith.constant 0.000000e+00 : f32
    %22 = vector.broadcast %cst_19 : f32 to vector<8x32xf32>
    %23 = vector.extract_strided_slice %12 {offsets = [0, 0], sizes = [8, 96], strides = [1, 1]} : vector<80x96xf32> to vector<8x96xf32>
    %24 = vector.extract_strided_slice %17 {offsets = [72, 0], sizes = [8, 96], strides = [1, 1]} : vector<80x96xf32> to vector<8x96xf32>
    %25 = arith.addf %23, %24 : vector<8x96xf32>
    %cst_20 = arith.constant dense<0.000000e+00> : vector<8x96xf32>
    %26 = tpu.matmul %22, %18, %cst_20 {dimension_numbers = #tpu.dot_dimension_numbers<[1], [0], [0], [1], [0, 0, 1, 1], [], []>} : vector<8x32xf32>, vector<32x96xf32>, vector<8x96xf32> -> vector<8x96xf32>
    %27 = arith.addf %26, %21 : vector<8x96xf32>
    %28 = vector.extract_strided_slice %25 {offsets = [0, 0], sizes = [8, 64], strides = [1, 1]} : vector<8x96xf32> to vector<8x64xf32>
    %29 = vector.extract_strided_slice %27 {offsets = [0, 0], sizes = [8, 64], strides = [1, 1]} : vector<8x96xf32> to vector<8x64xf32>
    %30 = arith.addf %28, %29 : vector<8x64xf32>
    %31 = arith.negf %30 : vector<8x64xf32>
    %32 = math.exp %31 : vector<8x64xf32>
    %cst_21 = arith.constant 1.000000e+00 : f32
    %33 = vector.broadcast %cst_21 : f32 to vector<8x64xf32>
    %34 = arith.addf %33, %32 : vector<8x64xf32>
    %35 = arith.divf %33, %34 : vector<8x64xf32>
    %36 = vector.extract_strided_slice %35 {offsets = [0, 0], sizes = [8, 32], strides = [1, 1]} : vector<8x64xf32> to vector<8x32xf32>
    %37 = vector.extract_strided_slice %35 {offsets = [0, 32], sizes = [8, 32], strides = [1, 1]} : vector<8x64xf32> to vector<8x32xf32>
    %38 = vector.extract_strided_slice %25 {offsets = [0, 64], sizes = [8, 32], strides = [1, 1]} : vector<8x96xf32> to vector<8x32xf32>
    %39 = vector.extract_strided_slice %27 {offsets = [0, 64], sizes = [8, 32], strides = [1, 1]} : vector<8x96xf32> to vector<8x32xf32>
    %40 = arith.mulf %36, %39 : vector<8x32xf32>
    %41 = arith.addf %38, %40 : vector<8x32xf32>
    %42 = math.tanh %41 : vector<8x32xf32>
    %cst_22 = arith.constant 1.000000e+00 : f32
    %43 = vector.broadcast %cst_22 : f32 to vector<8x32xf32>
    %44 = arith.subf %43, %37 : vector<8x32xf32>
    %45 = arith.mulf %44, %42 : vector<8x32xf32>
    %46 = arith.mulf %37, %22 : vector<8x32xf32>
    %47 = arith.addf %45, %46 : vector<8x32xf32>
    %48 = vector.extract_strided_slice %12 {offsets = [8, 0], sizes = [8, 96], strides = [1, 1]} : vector<80x96xf32> to vector<8x96xf32>
    %49 = vector.extract_strided_slice %17 {offsets = [64, 0], sizes = [8, 96], strides = [1, 1]} : vector<80x96xf32> to vector<8x96xf32>
    %50 = arith.addf %48, %49 : vector<8x96xf32>
    %cst_23 = arith.constant dense<0.000000e+00> : vector<8x96xf32>
    %51 = tpu.matmul %47, %18, %cst_23 {dimension_numbers = #tpu.dot_dimension_numbers<[1], [0], [0], [1], [0, 0, 1, 1], [], []>} : vector<8x32xf32>, vector<32x96xf32>, vector<8x96xf32> -> vector<8x96xf32>
    %52 = arith.addf %51, %21 : vector<8x96xf32>
    %53 = vector.extract_strided_slice %50 {offsets = [0, 0], sizes = [8, 64], strides = [1, 1]} : vector<8x96xf32> to vector<8x64xf32>
    %54 = vector.extract_strided_slice %52 {offsets = [0, 0], sizes = [8, 64], strides = [1, 1]} : vector<8x96xf32> to vector<8x64xf32>
    %55 = arith.addf %53, %54 : vector<8x64xf32>
    %56 = arith.negf %55 : vector<8x64xf32>
    %57 = math.exp %56 : vector<8x64xf32>
    %cst_24 = arith.constant 1.000000e+00 : f32
    %58 = vector.broadcast %cst_24 : f32 to vector<8x64xf32>
    %59 = arith.addf %58, %57 : vector<8x64xf32>
    %60 = arith.divf %58, %59 : vector<8x64xf32>
    %61 = vector.extract_strided_slice %60 {offsets = [0, 0], sizes = [8, 32], strides = [1, 1]} : vector<8x64xf32> to vector<8x32xf32>
    %62 = vector.extract_strided_slice %60 {offsets = [0, 32], sizes = [8, 32], strides = [1, 1]} : vector<8x64xf32> to vector<8x32xf32>
    %63 = vector.extract_strided_slice %50 {offsets = [0, 64], sizes = [8, 32], strides = [1, 1]} : vector<8x96xf32> to vector<8x32xf32>
    %64 = vector.extract_strided_slice %52 {offsets = [0, 64], sizes = [8, 32], strides = [1, 1]} : vector<8x96xf32> to vector<8x32xf32>
    %65 = arith.mulf %61, %64 : vector<8x32xf32>
    %66 = arith.addf %63, %65 : vector<8x32xf32>
    %67 = math.tanh %66 : vector<8x32xf32>
    %cst_25 = arith.constant 1.000000e+00 : f32
    %68 = vector.broadcast %cst_25 : f32 to vector<8x32xf32>
    %69 = arith.subf %68, %62 : vector<8x32xf32>
    %70 = arith.mulf %69, %67 : vector<8x32xf32>
    %71 = arith.mulf %62, %47 : vector<8x32xf32>
    %72 = arith.addf %70, %71 : vector<8x32xf32>
    %73 = vector.extract_strided_slice %12 {offsets = [16, 0], sizes = [8, 96], strides = [1, 1]} : vector<80x96xf32> to vector<8x96xf32>
    %74 = vector.extract_strided_slice %17 {offsets = [56, 0], sizes = [8, 96], strides = [1, 1]} : vector<80x96xf32> to vector<8x96xf32>
    %75 = arith.addf %73, %74 : vector<8x96xf32>
    %cst_26 = arith.constant dense<0.000000e+00> : vector<8x96xf32>
    %76 = tpu.matmul %72, %18, %cst_26 {dimension_numbers = #tpu.dot_dimension_numbers<[1], [0], [0], [1], [0, 0, 1, 1], [], []>} : vector<8x32xf32>, vector<32x96xf32>, vector<8x96xf32> -> vector<8x96xf32>
    %77 = arith.addf %76, %21 : vector<8x96xf32>
    %78 = vector.extract_strided_slice %75 {offsets = [0, 0], sizes = [8, 64], strides = [1, 1]} : vector<8x96xf32> to vector<8x64xf32>
    %79 = vector.extract_strided_slice %77 {offsets = [0, 0], sizes = [8, 64], strides = [1, 1]} : vector<8x96xf32> to vector<8x64xf32>
    %80 = arith.addf %78, %79 : vector<8x64xf32>
    %81 = arith.negf %80 : vector<8x64xf32>
    %82 = math.exp %81 : vector<8x64xf32>
    %cst_27 = arith.constant 1.000000e+00 : f32
    %83 = vector.broadcast %cst_27 : f32 to vector<8x64xf32>
    %84 = arith.addf %83, %82 : vector<8x64xf32>
    %85 = arith.divf %83, %84 : vector<8x64xf32>
    %86 = vector.extract_strided_slice %85 {offsets = [0, 0], sizes = [8, 32], strides = [1, 1]} : vector<8x64xf32> to vector<8x32xf32>
    %87 = vector.extract_strided_slice %85 {offsets = [0, 32], sizes = [8, 32], strides = [1, 1]} : vector<8x64xf32> to vector<8x32xf32>
    %88 = vector.extract_strided_slice %75 {offsets = [0, 64], sizes = [8, 32], strides = [1, 1]} : vector<8x96xf32> to vector<8x32xf32>
    %89 = vector.extract_strided_slice %77 {offsets = [0, 64], sizes = [8, 32], strides = [1, 1]} : vector<8x96xf32> to vector<8x32xf32>
    %90 = arith.mulf %86, %89 : vector<8x32xf32>
    %91 = arith.addf %88, %90 : vector<8x32xf32>
    %92 = math.tanh %91 : vector<8x32xf32>
    %cst_28 = arith.constant 1.000000e+00 : f32
    %93 = vector.broadcast %cst_28 : f32 to vector<8x32xf32>
    %94 = arith.subf %93, %87 : vector<8x32xf32>
    %95 = arith.mulf %94, %92 : vector<8x32xf32>
    %96 = arith.mulf %87, %72 : vector<8x32xf32>
    %97 = arith.addf %95, %96 : vector<8x32xf32>
    %98 = vector.extract_strided_slice %12 {offsets = [24, 0], sizes = [8, 96], strides = [1, 1]} : vector<80x96xf32> to vector<8x96xf32>
    %99 = vector.extract_strided_slice %17 {offsets = [48, 0], sizes = [8, 96], strides = [1, 1]} : vector<80x96xf32> to vector<8x96xf32>
    %100 = arith.addf %98, %99 : vector<8x96xf32>
    %cst_29 = arith.constant dense<0.000000e+00> : vector<8x96xf32>
    %101 = tpu.matmul %97, %18, %cst_29 {dimension_numbers = #tpu.dot_dimension_numbers<[1], [0], [0], [1], [0, 0, 1, 1], [], []>} : vector<8x32xf32>, vector<32x96xf32>, vector<8x96xf32> -> vector<8x96xf32>
    %102 = arith.addf %101, %21 : vector<8x96xf32>
    %103 = vector.extract_strided_slice %100 {offsets = [0, 0], sizes = [8, 64], strides = [1, 1]} : vector<8x96xf32> to vector<8x64xf32>
    %104 = vector.extract_strided_slice %102 {offsets = [0, 0], sizes = [8, 64], strides = [1, 1]} : vector<8x96xf32> to vector<8x64xf32>
    %105 = arith.addf %103, %104 : vector<8x64xf32>
    %106 = arith.negf %105 : vector<8x64xf32>
    %107 = math.exp %106 : vector<8x64xf32>
    %cst_30 = arith.constant 1.000000e+00 : f32
    %108 = vector.broadcast %cst_30 : f32 to vector<8x64xf32>
    %109 = arith.addf %108, %107 : vector<8x64xf32>
    %110 = arith.divf %108, %109 : vector<8x64xf32>
    %111 = vector.extract_strided_slice %110 {offsets = [0, 0], sizes = [8, 32], strides = [1, 1]} : vector<8x64xf32> to vector<8x32xf32>
    %112 = vector.extract_strided_slice %110 {offsets = [0, 32], sizes = [8, 32], strides = [1, 1]} : vector<8x64xf32> to vector<8x32xf32>
    %113 = vector.extract_strided_slice %100 {offsets = [0, 64], sizes = [8, 32], strides = [1, 1]} : vector<8x96xf32> to vector<8x32xf32>
    %114 = vector.extract_strided_slice %102 {offsets = [0, 64], sizes = [8, 32], strides = [1, 1]} : vector<8x96xf32> to vector<8x32xf32>
    %115 = arith.mulf %111, %114 : vector<8x32xf32>
    %116 = arith.addf %113, %115 : vector<8x32xf32>
    %117 = math.tanh %116 : vector<8x32xf32>
    %cst_31 = arith.constant 1.000000e+00 : f32
    %118 = vector.broadcast %cst_31 : f32 to vector<8x32xf32>
    %119 = arith.subf %118, %112 : vector<8x32xf32>
    %120 = arith.mulf %119, %117 : vector<8x32xf32>
    %121 = arith.mulf %112, %97 : vector<8x32xf32>
    %122 = arith.addf %120, %121 : vector<8x32xf32>
    %123 = vector.extract_strided_slice %12 {offsets = [32, 0], sizes = [8, 96], strides = [1, 1]} : vector<80x96xf32> to vector<8x96xf32>
    %124 = vector.extract_strided_slice %17 {offsets = [40, 0], sizes = [8, 96], strides = [1, 1]} : vector<80x96xf32> to vector<8x96xf32>
    %125 = arith.addf %123, %124 : vector<8x96xf32>
    %cst_32 = arith.constant dense<0.000000e+00> : vector<8x96xf32>
    %126 = tpu.matmul %122, %18, %cst_32 {dimension_numbers = #tpu.dot_dimension_numbers<[1], [0], [0], [1], [0, 0, 1, 1], [], []>} : vector<8x32xf32>, vector<32x96xf32>, vector<8x96xf32> -> vector<8x96xf32>
    %127 = arith.addf %126, %21 : vector<8x96xf32>
    %128 = vector.extract_strided_slice %125 {offsets = [0, 0], sizes = [8, 64], strides = [1, 1]} : vector<8x96xf32> to vector<8x64xf32>
    %129 = vector.extract_strided_slice %127 {offsets = [0, 0], sizes = [8, 64], strides = [1, 1]} : vector<8x96xf32> to vector<8x64xf32>
    %130 = arith.addf %128, %129 : vector<8x64xf32>
    %131 = arith.negf %130 : vector<8x64xf32>
    %132 = math.exp %131 : vector<8x64xf32>
    %cst_33 = arith.constant 1.000000e+00 : f32
    %133 = vector.broadcast %cst_33 : f32 to vector<8x64xf32>
    %134 = arith.addf %133, %132 : vector<8x64xf32>
    %135 = arith.divf %133, %134 : vector<8x64xf32>
    %136 = vector.extract_strided_slice %135 {offsets = [0, 0], sizes = [8, 32], strides = [1, 1]} : vector<8x64xf32> to vector<8x32xf32>
    %137 = vector.extract_strided_slice %135 {offsets = [0, 32], sizes = [8, 32], strides = [1, 1]} : vector<8x64xf32> to vector<8x32xf32>
    %138 = vector.extract_strided_slice %125 {offsets = [0, 64], sizes = [8, 32], strides = [1, 1]} : vector<8x96xf32> to vector<8x32xf32>
    %139 = vector.extract_strided_slice %127 {offsets = [0, 64], sizes = [8, 32], strides = [1, 1]} : vector<8x96xf32> to vector<8x32xf32>
    %140 = arith.mulf %136, %139 : vector<8x32xf32>
    %141 = arith.addf %138, %140 : vector<8x32xf32>
    %142 = math.tanh %141 : vector<8x32xf32>
    %cst_34 = arith.constant 1.000000e+00 : f32
    %143 = vector.broadcast %cst_34 : f32 to vector<8x32xf32>
    %144 = arith.subf %143, %137 : vector<8x32xf32>
    %145 = arith.mulf %144, %142 : vector<8x32xf32>
    %146 = arith.mulf %137, %122 : vector<8x32xf32>
    %147 = arith.addf %145, %146 : vector<8x32xf32>
    %148 = vector.extract_strided_slice %12 {offsets = [40, 0], sizes = [8, 96], strides = [1, 1]} : vector<80x96xf32> to vector<8x96xf32>
    %149 = vector.extract_strided_slice %17 {offsets = [32, 0], sizes = [8, 96], strides = [1, 1]} : vector<80x96xf32> to vector<8x96xf32>
    %150 = arith.addf %148, %149 : vector<8x96xf32>
    %cst_35 = arith.constant dense<0.000000e+00> : vector<8x96xf32>
    %151 = tpu.matmul %147, %18, %cst_35 {dimension_numbers = #tpu.dot_dimension_numbers<[1], [0], [0], [1], [0, 0, 1, 1], [], []>} : vector<8x32xf32>, vector<32x96xf32>, vector<8x96xf32> -> vector<8x96xf32>
    %152 = arith.addf %151, %21 : vector<8x96xf32>
    %153 = vector.extract_strided_slice %150 {offsets = [0, 0], sizes = [8, 64], strides = [1, 1]} : vector<8x96xf32> to vector<8x64xf32>
    %154 = vector.extract_strided_slice %152 {offsets = [0, 0], sizes = [8, 64], strides = [1, 1]} : vector<8x96xf32> to vector<8x64xf32>
    %155 = arith.addf %153, %154 : vector<8x64xf32>
    %156 = arith.negf %155 : vector<8x64xf32>
    %157 = math.exp %156 : vector<8x64xf32>
    %cst_36 = arith.constant 1.000000e+00 : f32
    %158 = vector.broadcast %cst_36 : f32 to vector<8x64xf32>
    %159 = arith.addf %158, %157 : vector<8x64xf32>
    %160 = arith.divf %158, %159 : vector<8x64xf32>
    %161 = vector.extract_strided_slice %160 {offsets = [0, 0], sizes = [8, 32], strides = [1, 1]} : vector<8x64xf32> to vector<8x32xf32>
    %162 = vector.extract_strided_slice %160 {offsets = [0, 32], sizes = [8, 32], strides = [1, 1]} : vector<8x64xf32> to vector<8x32xf32>
    %163 = vector.extract_strided_slice %150 {offsets = [0, 64], sizes = [8, 32], strides = [1, 1]} : vector<8x96xf32> to vector<8x32xf32>
    %164 = vector.extract_strided_slice %152 {offsets = [0, 64], sizes = [8, 32], strides = [1, 1]} : vector<8x96xf32> to vector<8x32xf32>
    %165 = arith.mulf %161, %164 : vector<8x32xf32>
    %166 = arith.addf %163, %165 : vector<8x32xf32>
    %167 = math.tanh %166 : vector<8x32xf32>
    %cst_37 = arith.constant 1.000000e+00 : f32
    %168 = vector.broadcast %cst_37 : f32 to vector<8x32xf32>
    %169 = arith.subf %168, %162 : vector<8x32xf32>
    %170 = arith.mulf %169, %167 : vector<8x32xf32>
    %171 = arith.mulf %162, %147 : vector<8x32xf32>
    %172 = arith.addf %170, %171 : vector<8x32xf32>
    %173 = vector.extract_strided_slice %12 {offsets = [48, 0], sizes = [8, 96], strides = [1, 1]} : vector<80x96xf32> to vector<8x96xf32>
    %174 = vector.extract_strided_slice %17 {offsets = [24, 0], sizes = [8, 96], strides = [1, 1]} : vector<80x96xf32> to vector<8x96xf32>
    %175 = arith.addf %173, %174 : vector<8x96xf32>
    %cst_38 = arith.constant dense<0.000000e+00> : vector<8x96xf32>
    %176 = tpu.matmul %172, %18, %cst_38 {dimension_numbers = #tpu.dot_dimension_numbers<[1], [0], [0], [1], [0, 0, 1, 1], [], []>} : vector<8x32xf32>, vector<32x96xf32>, vector<8x96xf32> -> vector<8x96xf32>
    %177 = arith.addf %176, %21 : vector<8x96xf32>
    %178 = vector.extract_strided_slice %175 {offsets = [0, 0], sizes = [8, 64], strides = [1, 1]} : vector<8x96xf32> to vector<8x64xf32>
    %179 = vector.extract_strided_slice %177 {offsets = [0, 0], sizes = [8, 64], strides = [1, 1]} : vector<8x96xf32> to vector<8x64xf32>
    %180 = arith.addf %178, %179 : vector<8x64xf32>
    %181 = arith.negf %180 : vector<8x64xf32>
    %182 = math.exp %181 : vector<8x64xf32>
    %cst_39 = arith.constant 1.000000e+00 : f32
    %183 = vector.broadcast %cst_39 : f32 to vector<8x64xf32>
    %184 = arith.addf %183, %182 : vector<8x64xf32>
    %185 = arith.divf %183, %184 : vector<8x64xf32>
    %186 = vector.extract_strided_slice %185 {offsets = [0, 0], sizes = [8, 32], strides = [1, 1]} : vector<8x64xf32> to vector<8x32xf32>
    %187 = vector.extract_strided_slice %185 {offsets = [0, 32], sizes = [8, 32], strides = [1, 1]} : vector<8x64xf32> to vector<8x32xf32>
    %188 = vector.extract_strided_slice %175 {offsets = [0, 64], sizes = [8, 32], strides = [1, 1]} : vector<8x96xf32> to vector<8x32xf32>
    %189 = vector.extract_strided_slice %177 {offsets = [0, 64], sizes = [8, 32], strides = [1, 1]} : vector<8x96xf32> to vector<8x32xf32>
    %190 = arith.mulf %186, %189 : vector<8x32xf32>
    %191 = arith.addf %188, %190 : vector<8x32xf32>
    %192 = math.tanh %191 : vector<8x32xf32>
    %cst_40 = arith.constant 1.000000e+00 : f32
    %193 = vector.broadcast %cst_40 : f32 to vector<8x32xf32>
    %194 = arith.subf %193, %187 : vector<8x32xf32>
    %195 = arith.mulf %194, %192 : vector<8x32xf32>
    %196 = arith.mulf %187, %172 : vector<8x32xf32>
    %197 = arith.addf %195, %196 : vector<8x32xf32>
    %198 = vector.extract_strided_slice %12 {offsets = [56, 0], sizes = [8, 96], strides = [1, 1]} : vector<80x96xf32> to vector<8x96xf32>
    %199 = vector.extract_strided_slice %17 {offsets = [16, 0], sizes = [8, 96], strides = [1, 1]} : vector<80x96xf32> to vector<8x96xf32>
    %200 = arith.addf %198, %199 : vector<8x96xf32>
    %cst_41 = arith.constant dense<0.000000e+00> : vector<8x96xf32>
    %201 = tpu.matmul %197, %18, %cst_41 {dimension_numbers = #tpu.dot_dimension_numbers<[1], [0], [0], [1], [0, 0, 1, 1], [], []>} : vector<8x32xf32>, vector<32x96xf32>, vector<8x96xf32> -> vector<8x96xf32>
    %202 = arith.addf %201, %21 : vector<8x96xf32>
    %203 = vector.extract_strided_slice %200 {offsets = [0, 0], sizes = [8, 64], strides = [1, 1]} : vector<8x96xf32> to vector<8x64xf32>
    %204 = vector.extract_strided_slice %202 {offsets = [0, 0], sizes = [8, 64], strides = [1, 1]} : vector<8x96xf32> to vector<8x64xf32>
    %205 = arith.addf %203, %204 : vector<8x64xf32>
    %206 = arith.negf %205 : vector<8x64xf32>
    %207 = math.exp %206 : vector<8x64xf32>
    %cst_42 = arith.constant 1.000000e+00 : f32
    %208 = vector.broadcast %cst_42 : f32 to vector<8x64xf32>
    %209 = arith.addf %208, %207 : vector<8x64xf32>
    %210 = arith.divf %208, %209 : vector<8x64xf32>
    %211 = vector.extract_strided_slice %210 {offsets = [0, 0], sizes = [8, 32], strides = [1, 1]} : vector<8x64xf32> to vector<8x32xf32>
    %212 = vector.extract_strided_slice %210 {offsets = [0, 32], sizes = [8, 32], strides = [1, 1]} : vector<8x64xf32> to vector<8x32xf32>
    %213 = vector.extract_strided_slice %200 {offsets = [0, 64], sizes = [8, 32], strides = [1, 1]} : vector<8x96xf32> to vector<8x32xf32>
    %214 = vector.extract_strided_slice %202 {offsets = [0, 64], sizes = [8, 32], strides = [1, 1]} : vector<8x96xf32> to vector<8x32xf32>
    %215 = arith.mulf %211, %214 : vector<8x32xf32>
    %216 = arith.addf %213, %215 : vector<8x32xf32>
    %217 = math.tanh %216 : vector<8x32xf32>
    %cst_43 = arith.constant 1.000000e+00 : f32
    %218 = vector.broadcast %cst_43 : f32 to vector<8x32xf32>
    %219 = arith.subf %218, %212 : vector<8x32xf32>
    %220 = arith.mulf %219, %217 : vector<8x32xf32>
    %221 = arith.mulf %212, %197 : vector<8x32xf32>
    %222 = arith.addf %220, %221 : vector<8x32xf32>
    %223 = vector.extract_strided_slice %12 {offsets = [64, 0], sizes = [8, 96], strides = [1, 1]} : vector<80x96xf32> to vector<8x96xf32>
    %224 = vector.extract_strided_slice %17 {offsets = [8, 0], sizes = [8, 96], strides = [1, 1]} : vector<80x96xf32> to vector<8x96xf32>
    %225 = arith.addf %223, %224 : vector<8x96xf32>
    %cst_44 = arith.constant dense<0.000000e+00> : vector<8x96xf32>
    %226 = tpu.matmul %222, %18, %cst_44 {dimension_numbers = #tpu.dot_dimension_numbers<[1], [0], [0], [1], [0, 0, 1, 1], [], []>} : vector<8x32xf32>, vector<32x96xf32>, vector<8x96xf32> -> vector<8x96xf32>
    %227 = arith.addf %226, %21 : vector<8x96xf32>
    %228 = vector.extract_strided_slice %225 {offsets = [0, 0], sizes = [8, 64], strides = [1, 1]} : vector<8x96xf32> to vector<8x64xf32>
    %229 = vector.extract_strided_slice %227 {offsets = [0, 0], sizes = [8, 64], strides = [1, 1]} : vector<8x96xf32> to vector<8x64xf32>
    %230 = arith.addf %228, %229 : vector<8x64xf32>
    %231 = arith.negf %230 : vector<8x64xf32>
    %232 = math.exp %231 : vector<8x64xf32>
    %cst_45 = arith.constant 1.000000e+00 : f32
    %233 = vector.broadcast %cst_45 : f32 to vector<8x64xf32>
    %234 = arith.addf %233, %232 : vector<8x64xf32>
    %235 = arith.divf %233, %234 : vector<8x64xf32>
    %236 = vector.extract_strided_slice %235 {offsets = [0, 0], sizes = [8, 32], strides = [1, 1]} : vector<8x64xf32> to vector<8x32xf32>
    %237 = vector.extract_strided_slice %235 {offsets = [0, 32], sizes = [8, 32], strides = [1, 1]} : vector<8x64xf32> to vector<8x32xf32>
    %238 = vector.extract_strided_slice %225 {offsets = [0, 64], sizes = [8, 32], strides = [1, 1]} : vector<8x96xf32> to vector<8x32xf32>
    %239 = vector.extract_strided_slice %227 {offsets = [0, 64], sizes = [8, 32], strides = [1, 1]} : vector<8x96xf32> to vector<8x32xf32>
    %240 = arith.mulf %236, %239 : vector<8x32xf32>
    %241 = arith.addf %238, %240 : vector<8x32xf32>
    %242 = math.tanh %241 : vector<8x32xf32>
    %cst_46 = arith.constant 1.000000e+00 : f32
    %243 = vector.broadcast %cst_46 : f32 to vector<8x32xf32>
    %244 = arith.subf %243, %237 : vector<8x32xf32>
    %245 = arith.mulf %244, %242 : vector<8x32xf32>
    %246 = arith.mulf %237, %222 : vector<8x32xf32>
    %247 = arith.addf %245, %246 : vector<8x32xf32>
    %248 = vector.extract_strided_slice %12 {offsets = [72, 0], sizes = [8, 96], strides = [1, 1]} : vector<80x96xf32> to vector<8x96xf32>
    %249 = vector.extract_strided_slice %17 {offsets = [0, 0], sizes = [8, 96], strides = [1, 1]} : vector<80x96xf32> to vector<8x96xf32>
    %250 = arith.addf %248, %249 : vector<8x96xf32>
    %cst_47 = arith.constant dense<0.000000e+00> : vector<8x96xf32>
    %251 = tpu.matmul %247, %18, %cst_47 {dimension_numbers = #tpu.dot_dimension_numbers<[1], [0], [0], [1], [0, 0, 1, 1], [], []>} : vector<8x32xf32>, vector<32x96xf32>, vector<8x96xf32> -> vector<8x96xf32>
    %252 = arith.addf %251, %21 : vector<8x96xf32>
    %253 = vector.extract_strided_slice %250 {offsets = [0, 0], sizes = [8, 64], strides = [1, 1]} : vector<8x96xf32> to vector<8x64xf32>
    %254 = vector.extract_strided_slice %252 {offsets = [0, 0], sizes = [8, 64], strides = [1, 1]} : vector<8x96xf32> to vector<8x64xf32>
    %255 = arith.addf %253, %254 : vector<8x64xf32>
    %256 = arith.negf %255 : vector<8x64xf32>
    %257 = math.exp %256 : vector<8x64xf32>
    %cst_48 = arith.constant 1.000000e+00 : f32
    %258 = vector.broadcast %cst_48 : f32 to vector<8x64xf32>
    %259 = arith.addf %258, %257 : vector<8x64xf32>
    %260 = arith.divf %258, %259 : vector<8x64xf32>
    %261 = vector.extract_strided_slice %260 {offsets = [0, 0], sizes = [8, 32], strides = [1, 1]} : vector<8x64xf32> to vector<8x32xf32>
    %262 = vector.extract_strided_slice %260 {offsets = [0, 32], sizes = [8, 32], strides = [1, 1]} : vector<8x64xf32> to vector<8x32xf32>
    %263 = vector.extract_strided_slice %250 {offsets = [0, 64], sizes = [8, 32], strides = [1, 1]} : vector<8x96xf32> to vector<8x32xf32>
    %264 = vector.extract_strided_slice %252 {offsets = [0, 64], sizes = [8, 32], strides = [1, 1]} : vector<8x96xf32> to vector<8x32xf32>
    %265 = arith.mulf %261, %264 : vector<8x32xf32>
    %266 = arith.addf %263, %265 : vector<8x32xf32>
    %267 = math.tanh %266 : vector<8x32xf32>
    %cst_49 = arith.constant 1.000000e+00 : f32
    %268 = vector.broadcast %cst_49 : f32 to vector<8x32xf32>
    %269 = arith.subf %268, %262 : vector<8x32xf32>
    %270 = arith.mulf %269, %267 : vector<8x32xf32>
    %271 = arith.mulf %262, %247 : vector<8x32xf32>
    %272 = arith.addf %270, %271 : vector<8x32xf32>
    %c0_50 = arith.constant 0 : index
    %c0_51 = arith.constant 0 : index
    %273 = vector.load %arg1[%c0_50, %c0_51] : memref<64x16xbf16, #tpu.memory_space<vmem>>, vector<64x16xbf16>
    %c0_52 = arith.constant 0 : index
    %c0_53 = arith.constant 0 : index
    %274 = vector.load %arg10[%c0_52, %c0_53] : memref<16x16xbf16, #tpu.memory_space<vmem>>, vector<16x16xbf16>
    %cst_54 = arith.constant dense<0.000000e+00> : vector<64x16xf32>
    %275 = tpu.matmul %273, %274, %cst_54 {dimension_numbers = #tpu.dot_dimension_numbers<[1], [0], [0], [1], [0, 0, 1, 1], [], []>} : vector<64x16xbf16>, vector<16x16xbf16>, vector<64x16xf32> -> vector<64x16xf32>
    %c0_55 = arith.constant 0 : index
    %c0_56 = arith.constant 0 : index
    %276 = vector.load %arg11[%c0_55, %c0_56] : memref<1x16xf32, #tpu.memory_space<vmem>>, vector<1x16xf32>
    %277 = vector.broadcast %276 : vector<1x16xf32> to vector<64x16xf32>
    %278 = arith.addf %275, %277 : vector<64x16xf32>
    %279 = math.tanh %278 : vector<64x16xf32>
    %280 = arith.truncf %279 : vector<64x16xf32> to vector<64x16xbf16>
    %c0_57 = arith.constant 0 : index
    %c0_58 = arith.constant 0 : index
    %281 = vector.load %arg12[%c0_57, %c0_58] : memref<16x96xbf16, #tpu.memory_space<vmem>>, vector<16x96xbf16>
    %cst_59 = arith.constant dense<0.000000e+00> : vector<64x96xf32>
    %282 = tpu.matmul %280, %281, %cst_59 {dimension_numbers = #tpu.dot_dimension_numbers<[1], [0], [0], [1], [0, 0, 1, 1], [], []>} : vector<64x16xbf16>, vector<16x96xbf16>, vector<64x96xf32> -> vector<64x96xf32>
    %c0_60 = arith.constant 0 : index
    %c0_61 = arith.constant 0 : index
    %283 = vector.load %arg13[%c0_60, %c0_61] : memref<1x96xf32, #tpu.memory_space<vmem>>, vector<1x96xf32>
    %284 = vector.broadcast %283 : vector<1x96xf32> to vector<64x96xf32>
    %285 = arith.addf %282, %284 : vector<64x96xf32>
    %c0_62 = arith.constant 0 : index
    %c0_63 = arith.constant 0 : index
    %286 = vector.load %arg14[%c0_62, %c0_63] : memref<32x96xf32, #tpu.memory_space<vmem>>, vector<32x96xf32>
    %c0_64 = arith.constant 0 : index
    %c0_65 = arith.constant 0 : index
    %287 = vector.load %arg15[%c0_64, %c0_65] : memref<1x96xf32, #tpu.memory_space<vmem>>, vector<1x96xf32>
    %288 = vector.shape_cast %287 : vector<1x96xf32> to vector<1x96xf32>
    %289 = vector.broadcast %288 : vector<1x96xf32> to vector<8x96xf32>
    %cst_66 = arith.constant 0.000000e+00 : f32
    %290 = vector.broadcast %cst_66 : f32 to vector<8x32xf32>
    %291 = vector.extract_strided_slice %285 {offsets = [0, 0], sizes = [8, 96], strides = [1, 1]} : vector<64x96xf32> to vector<8x96xf32>
    %cst_67 = arith.constant dense<0.000000e+00> : vector<8x96xf32>
    %292 = tpu.matmul %290, %286, %cst_67 {dimension_numbers = #tpu.dot_dimension_numbers<[1], [0], [0], [1], [0, 0, 1, 1], [], []>} : vector<8x32xf32>, vector<32x96xf32>, vector<8x96xf32> -> vector<8x96xf32>
    %293 = arith.addf %292, %289 : vector<8x96xf32>
    %294 = vector.extract_strided_slice %291 {offsets = [0, 0], sizes = [8, 64], strides = [1, 1]} : vector<8x96xf32> to vector<8x64xf32>
    %295 = vector.extract_strided_slice %293 {offsets = [0, 0], sizes = [8, 64], strides = [1, 1]} : vector<8x96xf32> to vector<8x64xf32>
    %296 = arith.addf %294, %295 : vector<8x64xf32>
    %297 = arith.negf %296 : vector<8x64xf32>
    %298 = math.exp %297 : vector<8x64xf32>
    %cst_68 = arith.constant 1.000000e+00 : f32
    %299 = vector.broadcast %cst_68 : f32 to vector<8x64xf32>
    %300 = arith.addf %299, %298 : vector<8x64xf32>
    %301 = arith.divf %299, %300 : vector<8x64xf32>
    %302 = vector.extract_strided_slice %301 {offsets = [0, 0], sizes = [8, 32], strides = [1, 1]} : vector<8x64xf32> to vector<8x32xf32>
    %303 = vector.extract_strided_slice %301 {offsets = [0, 32], sizes = [8, 32], strides = [1, 1]} : vector<8x64xf32> to vector<8x32xf32>
    %304 = vector.extract_strided_slice %291 {offsets = [0, 64], sizes = [8, 32], strides = [1, 1]} : vector<8x96xf32> to vector<8x32xf32>
    %305 = vector.extract_strided_slice %293 {offsets = [0, 64], sizes = [8, 32], strides = [1, 1]} : vector<8x96xf32> to vector<8x32xf32>
    %306 = arith.mulf %302, %305 : vector<8x32xf32>
    %307 = arith.addf %304, %306 : vector<8x32xf32>
    %308 = math.tanh %307 : vector<8x32xf32>
    %cst_69 = arith.constant 1.000000e+00 : f32
    %309 = vector.broadcast %cst_69 : f32 to vector<8x32xf32>
    %310 = arith.subf %309, %303 : vector<8x32xf32>
    %311 = arith.mulf %310, %308 : vector<8x32xf32>
    %312 = arith.mulf %303, %290 : vector<8x32xf32>
    %313 = arith.addf %311, %312 : vector<8x32xf32>
    %314 = vector.extract_strided_slice %285 {offsets = [8, 0], sizes = [8, 96], strides = [1, 1]} : vector<64x96xf32> to vector<8x96xf32>
    %cst_70 = arith.constant dense<0.000000e+00> : vector<8x96xf32>
    %315 = tpu.matmul %313, %286, %cst_70 {dimension_numbers = #tpu.dot_dimension_numbers<[1], [0], [0], [1], [0, 0, 1, 1], [], []>} : vector<8x32xf32>, vector<32x96xf32>, vector<8x96xf32> -> vector<8x96xf32>
    %316 = arith.addf %315, %289 : vector<8x96xf32>
    %317 = vector.extract_strided_slice %314 {offsets = [0, 0], sizes = [8, 64], strides = [1, 1]} : vector<8x96xf32> to vector<8x64xf32>
    %318 = vector.extract_strided_slice %316 {offsets = [0, 0], sizes = [8, 64], strides = [1, 1]} : vector<8x96xf32> to vector<8x64xf32>
    %319 = arith.addf %317, %318 : vector<8x64xf32>
    %320 = arith.negf %319 : vector<8x64xf32>
    %321 = math.exp %320 : vector<8x64xf32>
    %cst_71 = arith.constant 1.000000e+00 : f32
    %322 = vector.broadcast %cst_71 : f32 to vector<8x64xf32>
    %323 = arith.addf %322, %321 : vector<8x64xf32>
    %324 = arith.divf %322, %323 : vector<8x64xf32>
    %325 = vector.extract_strided_slice %324 {offsets = [0, 0], sizes = [8, 32], strides = [1, 1]} : vector<8x64xf32> to vector<8x32xf32>
    %326 = vector.extract_strided_slice %324 {offsets = [0, 32], sizes = [8, 32], strides = [1, 1]} : vector<8x64xf32> to vector<8x32xf32>
    %327 = vector.extract_strided_slice %314 {offsets = [0, 64], sizes = [8, 32], strides = [1, 1]} : vector<8x96xf32> to vector<8x32xf32>
    %328 = vector.extract_strided_slice %316 {offsets = [0, 64], sizes = [8, 32], strides = [1, 1]} : vector<8x96xf32> to vector<8x32xf32>
    %329 = arith.mulf %325, %328 : vector<8x32xf32>
    %330 = arith.addf %327, %329 : vector<8x32xf32>
    %331 = math.tanh %330 : vector<8x32xf32>
    %cst_72 = arith.constant 1.000000e+00 : f32
    %332 = vector.broadcast %cst_72 : f32 to vector<8x32xf32>
    %333 = arith.subf %332, %326 : vector<8x32xf32>
    %334 = arith.mulf %333, %331 : vector<8x32xf32>
    %335 = arith.mulf %326, %313 : vector<8x32xf32>
    %336 = arith.addf %334, %335 : vector<8x32xf32>
    %337 = vector.extract_strided_slice %285 {offsets = [16, 0], sizes = [8, 96], strides = [1, 1]} : vector<64x96xf32> to vector<8x96xf32>
    %cst_73 = arith.constant dense<0.000000e+00> : vector<8x96xf32>
    %338 = tpu.matmul %336, %286, %cst_73 {dimension_numbers = #tpu.dot_dimension_numbers<[1], [0], [0], [1], [0, 0, 1, 1], [], []>} : vector<8x32xf32>, vector<32x96xf32>, vector<8x96xf32> -> vector<8x96xf32>
    %339 = arith.addf %338, %289 : vector<8x96xf32>
    %340 = vector.extract_strided_slice %337 {offsets = [0, 0], sizes = [8, 64], strides = [1, 1]} : vector<8x96xf32> to vector<8x64xf32>
    %341 = vector.extract_strided_slice %339 {offsets = [0, 0], sizes = [8, 64], strides = [1, 1]} : vector<8x96xf32> to vector<8x64xf32>
    %342 = arith.addf %340, %341 : vector<8x64xf32>
    %343 = arith.negf %342 : vector<8x64xf32>
    %344 = math.exp %343 : vector<8x64xf32>
    %cst_74 = arith.constant 1.000000e+00 : f32
    %345 = vector.broadcast %cst_74 : f32 to vector<8x64xf32>
    %346 = arith.addf %345, %344 : vector<8x64xf32>
    %347 = arith.divf %345, %346 : vector<8x64xf32>
    %348 = vector.extract_strided_slice %347 {offsets = [0, 0], sizes = [8, 32], strides = [1, 1]} : vector<8x64xf32> to vector<8x32xf32>
    %349 = vector.extract_strided_slice %347 {offsets = [0, 32], sizes = [8, 32], strides = [1, 1]} : vector<8x64xf32> to vector<8x32xf32>
    %350 = vector.extract_strided_slice %337 {offsets = [0, 64], sizes = [8, 32], strides = [1, 1]} : vector<8x96xf32> to vector<8x32xf32>
    %351 = vector.extract_strided_slice %339 {offsets = [0, 64], sizes = [8, 32], strides = [1, 1]} : vector<8x96xf32> to vector<8x32xf32>
    %352 = arith.mulf %348, %351 : vector<8x32xf32>
    %353 = arith.addf %350, %352 : vector<8x32xf32>
    %354 = math.tanh %353 : vector<8x32xf32>
    %cst_75 = arith.constant 1.000000e+00 : f32
    %355 = vector.broadcast %cst_75 : f32 to vector<8x32xf32>
    %356 = arith.subf %355, %349 : vector<8x32xf32>
    %357 = arith.mulf %356, %354 : vector<8x32xf32>
    %358 = arith.mulf %349, %336 : vector<8x32xf32>
    %359 = arith.addf %357, %358 : vector<8x32xf32>
    %360 = vector.extract_strided_slice %285 {offsets = [24, 0], sizes = [8, 96], strides = [1, 1]} : vector<64x96xf32> to vector<8x96xf32>
    %cst_76 = arith.constant dense<0.000000e+00> : vector<8x96xf32>
    %361 = tpu.matmul %359, %286, %cst_76 {dimension_numbers = #tpu.dot_dimension_numbers<[1], [0], [0], [1], [0, 0, 1, 1], [], []>} : vector<8x32xf32>, vector<32x96xf32>, vector<8x96xf32> -> vector<8x96xf32>
    %362 = arith.addf %361, %289 : vector<8x96xf32>
    %363 = vector.extract_strided_slice %360 {offsets = [0, 0], sizes = [8, 64], strides = [1, 1]} : vector<8x96xf32> to vector<8x64xf32>
    %364 = vector.extract_strided_slice %362 {offsets = [0, 0], sizes = [8, 64], strides = [1, 1]} : vector<8x96xf32> to vector<8x64xf32>
    %365 = arith.addf %363, %364 : vector<8x64xf32>
    %366 = arith.negf %365 : vector<8x64xf32>
    %367 = math.exp %366 : vector<8x64xf32>
    %cst_77 = arith.constant 1.000000e+00 : f32
    %368 = vector.broadcast %cst_77 : f32 to vector<8x64xf32>
    %369 = arith.addf %368, %367 : vector<8x64xf32>
    %370 = arith.divf %368, %369 : vector<8x64xf32>
    %371 = vector.extract_strided_slice %370 {offsets = [0, 0], sizes = [8, 32], strides = [1, 1]} : vector<8x64xf32> to vector<8x32xf32>
    %372 = vector.extract_strided_slice %370 {offsets = [0, 32], sizes = [8, 32], strides = [1, 1]} : vector<8x64xf32> to vector<8x32xf32>
    %373 = vector.extract_strided_slice %360 {offsets = [0, 64], sizes = [8, 32], strides = [1, 1]} : vector<8x96xf32> to vector<8x32xf32>
    %374 = vector.extract_strided_slice %362 {offsets = [0, 64], sizes = [8, 32], strides = [1, 1]} : vector<8x96xf32> to vector<8x32xf32>
    %375 = arith.mulf %371, %374 : vector<8x32xf32>
    %376 = arith.addf %373, %375 : vector<8x32xf32>
    %377 = math.tanh %376 : vector<8x32xf32>
    %cst_78 = arith.constant 1.000000e+00 : f32
    %378 = vector.broadcast %cst_78 : f32 to vector<8x32xf32>
    %379 = arith.subf %378, %372 : vector<8x32xf32>
    %380 = arith.mulf %379, %377 : vector<8x32xf32>
    %381 = arith.mulf %372, %359 : vector<8x32xf32>
    %382 = arith.addf %380, %381 : vector<8x32xf32>
    %383 = vector.extract_strided_slice %285 {offsets = [32, 0], sizes = [8, 96], strides = [1, 1]} : vector<64x96xf32> to vector<8x96xf32>
    %cst_79 = arith.constant dense<0.000000e+00> : vector<8x96xf32>
    %384 = tpu.matmul %382, %286, %cst_79 {dimension_numbers = #tpu.dot_dimension_numbers<[1], [0], [0], [1], [0, 0, 1, 1], [], []>} : vector<8x32xf32>, vector<32x96xf32>, vector<8x96xf32> -> vector<8x96xf32>
    %385 = arith.addf %384, %289 : vector<8x96xf32>
    %386 = vector.extract_strided_slice %383 {offsets = [0, 0], sizes = [8, 64], strides = [1, 1]} : vector<8x96xf32> to vector<8x64xf32>
    %387 = vector.extract_strided_slice %385 {offsets = [0, 0], sizes = [8, 64], strides = [1, 1]} : vector<8x96xf32> to vector<8x64xf32>
    %388 = arith.addf %386, %387 : vector<8x64xf32>
    %389 = arith.negf %388 : vector<8x64xf32>
    %390 = math.exp %389 : vector<8x64xf32>
    %cst_80 = arith.constant 1.000000e+00 : f32
    %391 = vector.broadcast %cst_80 : f32 to vector<8x64xf32>
    %392 = arith.addf %391, %390 : vector<8x64xf32>
    %393 = arith.divf %391, %392 : vector<8x64xf32>
    %394 = vector.extract_strided_slice %393 {offsets = [0, 0], sizes = [8, 32], strides = [1, 1]} : vector<8x64xf32> to vector<8x32xf32>
    %395 = vector.extract_strided_slice %393 {offsets = [0, 32], sizes = [8, 32], strides = [1, 1]} : vector<8x64xf32> to vector<8x32xf32>
    %396 = vector.extract_strided_slice %383 {offsets = [0, 64], sizes = [8, 32], strides = [1, 1]} : vector<8x96xf32> to vector<8x32xf32>
    %397 = vector.extract_strided_slice %385 {offsets = [0, 64], sizes = [8, 32], strides = [1, 1]} : vector<8x96xf32> to vector<8x32xf32>
    %398 = arith.mulf %394, %397 : vector<8x32xf32>
    %399 = arith.addf %396, %398 : vector<8x32xf32>
    %400 = math.tanh %399 : vector<8x32xf32>
    %cst_81 = arith.constant 1.000000e+00 : f32
    %401 = vector.broadcast %cst_81 : f32 to vector<8x32xf32>
    %402 = arith.subf %401, %395 : vector<8x32xf32>
    %403 = arith.mulf %402, %400 : vector<8x32xf32>
    %404 = arith.mulf %395, %382 : vector<8x32xf32>
    %405 = arith.addf %403, %404 : vector<8x32xf32>
    %406 = vector.extract_strided_slice %285 {offsets = [40, 0], sizes = [8, 96], strides = [1, 1]} : vector<64x96xf32> to vector<8x96xf32>
    %cst_82 = arith.constant dense<0.000000e+00> : vector<8x96xf32>
    %407 = tpu.matmul %405, %286, %cst_82 {dimension_numbers = #tpu.dot_dimension_numbers<[1], [0], [0], [1], [0, 0, 1, 1], [], []>} : vector<8x32xf32>, vector<32x96xf32>, vector<8x96xf32> -> vector<8x96xf32>
    %408 = arith.addf %407, %289 : vector<8x96xf32>
    %409 = vector.extract_strided_slice %406 {offsets = [0, 0], sizes = [8, 64], strides = [1, 1]} : vector<8x96xf32> to vector<8x64xf32>
    %410 = vector.extract_strided_slice %408 {offsets = [0, 0], sizes = [8, 64], strides = [1, 1]} : vector<8x96xf32> to vector<8x64xf32>
    %411 = arith.addf %409, %410 : vector<8x64xf32>
    %412 = arith.negf %411 : vector<8x64xf32>
    %413 = math.exp %412 : vector<8x64xf32>
    %cst_83 = arith.constant 1.000000e+00 : f32
    %414 = vector.broadcast %cst_83 : f32 to vector<8x64xf32>
    %415 = arith.addf %414, %413 : vector<8x64xf32>
    %416 = arith.divf %414, %415 : vector<8x64xf32>
    %417 = vector.extract_strided_slice %416 {offsets = [0, 0], sizes = [8, 32], strides = [1, 1]} : vector<8x64xf32> to vector<8x32xf32>
    %418 = vector.extract_strided_slice %416 {offsets = [0, 32], sizes = [8, 32], strides = [1, 1]} : vector<8x64xf32> to vector<8x32xf32>
    %419 = vector.extract_strided_slice %406 {offsets = [0, 64], sizes = [8, 32], strides = [1, 1]} : vector<8x96xf32> to vector<8x32xf32>
    %420 = vector.extract_strided_slice %408 {offsets = [0, 64], sizes = [8, 32], strides = [1, 1]} : vector<8x96xf32> to vector<8x32xf32>
    %421 = arith.mulf %417, %420 : vector<8x32xf32>
    %422 = arith.addf %419, %421 : vector<8x32xf32>
    %423 = math.tanh %422 : vector<8x32xf32>
    %cst_84 = arith.constant 1.000000e+00 : f32
    %424 = vector.broadcast %cst_84 : f32 to vector<8x32xf32>
    %425 = arith.subf %424, %418 : vector<8x32xf32>
    %426 = arith.mulf %425, %423 : vector<8x32xf32>
    %427 = arith.mulf %418, %405 : vector<8x32xf32>
    %428 = arith.addf %426, %427 : vector<8x32xf32>
    %429 = vector.extract_strided_slice %285 {offsets = [48, 0], sizes = [8, 96], strides = [1, 1]} : vector<64x96xf32> to vector<8x96xf32>
    %cst_85 = arith.constant dense<0.000000e+00> : vector<8x96xf32>
    %430 = tpu.matmul %428, %286, %cst_85 {dimension_numbers = #tpu.dot_dimension_numbers<[1], [0], [0], [1], [0, 0, 1, 1], [], []>} : vector<8x32xf32>, vector<32x96xf32>, vector<8x96xf32> -> vector<8x96xf32>
    %431 = arith.addf %430, %289 : vector<8x96xf32>
    %432 = vector.extract_strided_slice %429 {offsets = [0, 0], sizes = [8, 64], strides = [1, 1]} : vector<8x96xf32> to vector<8x64xf32>
    %433 = vector.extract_strided_slice %431 {offsets = [0, 0], sizes = [8, 64], strides = [1, 1]} : vector<8x96xf32> to vector<8x64xf32>
    %434 = arith.addf %432, %433 : vector<8x64xf32>
    %435 = arith.negf %434 : vector<8x64xf32>
    %436 = math.exp %435 : vector<8x64xf32>
    %cst_86 = arith.constant 1.000000e+00 : f32
    %437 = vector.broadcast %cst_86 : f32 to vector<8x64xf32>
    %438 = arith.addf %437, %436 : vector<8x64xf32>
    %439 = arith.divf %437, %438 : vector<8x64xf32>
    %440 = vector.extract_strided_slice %439 {offsets = [0, 0], sizes = [8, 32], strides = [1, 1]} : vector<8x64xf32> to vector<8x32xf32>
    %441 = vector.extract_strided_slice %439 {offsets = [0, 32], sizes = [8, 32], strides = [1, 1]} : vector<8x64xf32> to vector<8x32xf32>
    %442 = vector.extract_strided_slice %429 {offsets = [0, 64], sizes = [8, 32], strides = [1, 1]} : vector<8x96xf32> to vector<8x32xf32>
    %443 = vector.extract_strided_slice %431 {offsets = [0, 64], sizes = [8, 32], strides = [1, 1]} : vector<8x96xf32> to vector<8x32xf32>
    %444 = arith.mulf %440, %443 : vector<8x32xf32>
    %445 = arith.addf %442, %444 : vector<8x32xf32>
    %446 = math.tanh %445 : vector<8x32xf32>
    %cst_87 = arith.constant 1.000000e+00 : f32
    %447 = vector.broadcast %cst_87 : f32 to vector<8x32xf32>
    %448 = arith.subf %447, %441 : vector<8x32xf32>
    %449 = arith.mulf %448, %446 : vector<8x32xf32>
    %450 = arith.mulf %441, %428 : vector<8x32xf32>
    %451 = arith.addf %449, %450 : vector<8x32xf32>
    %452 = vector.extract_strided_slice %285 {offsets = [56, 0], sizes = [8, 96], strides = [1, 1]} : vector<64x96xf32> to vector<8x96xf32>
    %cst_88 = arith.constant dense<0.000000e+00> : vector<8x96xf32>
    %453 = tpu.matmul %451, %286, %cst_88 {dimension_numbers = #tpu.dot_dimension_numbers<[1], [0], [0], [1], [0, 0, 1, 1], [], []>} : vector<8x32xf32>, vector<32x96xf32>, vector<8x96xf32> -> vector<8x96xf32>
    %454 = arith.addf %453, %289 : vector<8x96xf32>
    %455 = vector.extract_strided_slice %452 {offsets = [0, 0], sizes = [8, 64], strides = [1, 1]} : vector<8x96xf32> to vector<8x64xf32>
    %456 = vector.extract_strided_slice %454 {offsets = [0, 0], sizes = [8, 64], strides = [1, 1]} : vector<8x96xf32> to vector<8x64xf32>
    %457 = arith.addf %455, %456 : vector<8x64xf32>
    %458 = arith.negf %457 : vector<8x64xf32>
    %459 = math.exp %458 : vector<8x64xf32>
    %cst_89 = arith.constant 1.000000e+00 : f32
    %460 = vector.broadcast %cst_89 : f32 to vector<8x64xf32>
    %461 = arith.addf %460, %459 : vector<8x64xf32>
    %462 = arith.divf %460, %461 : vector<8x64xf32>
    %463 = vector.extract_strided_slice %462 {offsets = [0, 0], sizes = [8, 32], strides = [1, 1]} : vector<8x64xf32> to vector<8x32xf32>
    %464 = vector.extract_strided_slice %462 {offsets = [0, 32], sizes = [8, 32], strides = [1, 1]} : vector<8x64xf32> to vector<8x32xf32>
    %465 = vector.extract_strided_slice %452 {offsets = [0, 64], sizes = [8, 32], strides = [1, 1]} : vector<8x96xf32> to vector<8x32xf32>
    %466 = vector.extract_strided_slice %454 {offsets = [0, 64], sizes = [8, 32], strides = [1, 1]} : vector<8x96xf32> to vector<8x32xf32>
    %467 = arith.mulf %463, %466 : vector<8x32xf32>
    %468 = arith.addf %465, %467 : vector<8x32xf32>
    %469 = math.tanh %468 : vector<8x32xf32>
    %cst_90 = arith.constant 1.000000e+00 : f32
    %470 = vector.broadcast %cst_90 : f32 to vector<8x32xf32>
    %471 = arith.subf %470, %464 : vector<8x32xf32>
    %472 = arith.mulf %471, %469 : vector<8x32xf32>
    %473 = arith.mulf %464, %451 : vector<8x32xf32>
    %474 = arith.addf %472, %473 : vector<8x32xf32>
    %475 = vector.shape_cast %313 : vector<8x32xf32> to vector<1x8x32xf32>
    %476 = vector.shape_cast %336 : vector<8x32xf32> to vector<1x8x32xf32>
    %477 = vector.shape_cast %359 : vector<8x32xf32> to vector<1x8x32xf32>
    %478 = vector.shape_cast %382 : vector<8x32xf32> to vector<1x8x32xf32>
    %479 = vector.shape_cast %405 : vector<8x32xf32> to vector<1x8x32xf32>
    %480 = vector.shape_cast %428 : vector<8x32xf32> to vector<1x8x32xf32>
    %481 = vector.shape_cast %451 : vector<8x32xf32> to vector<1x8x32xf32>
    %482 = vector.shape_cast %474 : vector<8x32xf32> to vector<1x8x32xf32>
    %483 = tpu.concatenate %475, %476, %477, %478, %479, %480, %481, %482 in 0 : vector<1x8x32xf32>, vector<1x8x32xf32>, vector<1x8x32xf32>, vector<1x8x32xf32>, vector<1x8x32xf32>, vector<1x8x32xf32>, vector<1x8x32xf32>, vector<1x8x32xf32> -> vector<8x8x32xf32>
    %c0_91 = arith.constant 0 : index
    %c0_92 = arith.constant 0 : index
    %c0_93 = arith.constant 0 : index
    %484 = vector.load %arg16[%c0_91, %c0_92, %c0_93] : memref<8x8x32xf32, #tpu.memory_space<vmem>>, vector<8x8x32xf32>
    tpu.vector_store %arg16[%c0_91, %c0_92, %c0_93], %483 {strides = array<i32>} : memref<8x8x32xf32, #tpu.memory_space<vmem>>, vector<8x8x32xf32>,
    %485 = tpu.concatenate %272, %474 in 1 : vector<8x32xf32>, vector<8x32xf32> -> vector<8x64xf32>
    %c0_94 = arith.constant 0 : index
    %c0_95 = arith.constant 0 : index
    %486 = vector.load %arg17[%c0_94, %c0_95] : memref<8x64xf32, #tpu.memory_space<vmem>>, vector<8x64xf32>
    tpu.vector_store %arg17[%c0_94, %c0_95], %485 {strides = array<i32>} : memref<8x64xf32, #tpu.memory_space<vmem>>, vector<8x64xf32>,
    return
  }
}

</mosaic_0001>

<llo_original>
// kernel: all_inputs_encoder_forward.1
$region0: #{all_inputs_encoder_forward.1}
  #allocation0 [shape = 'u32[]', space=smem, size = 0x4, offset = 0x4, fixed_abs, tag = 'smem constant byte address 0x4 - core index']
  #allocation1 [shape = 'u32[144,128]{1,0:T(1,128)}', space=vmem, size = 0x12000, scoped, tag = 'internal scratch']
  %s0 = inlined_call_operand.vmem [shape: bf16[80,12], index: 0, kind: input, shape index: {}]
  %s1 = inlined_call_operand.vmem [shape: bf16[64,16], index: 1, kind: input, shape index: {}]
  %s2 = inlined_call_operand.vmem [shape: bf16[12,16], index: 2, kind: input, shape index: {}]
  %s3 = inlined_call_operand.vmem [shape: f32[1,16], index: 3, kind: input, shape index: {}]
  %s4 = inlined_call_operand.vmem [shape: bf16[16,96], index: 4, kind: input, shape index: {}]
  %s5 = inlined_call_operand.vmem [shape: f32[1,96], index: 5, kind: input, shape index: {}]
  %s6 = inlined_call_operand.vmem [shape: bf16[16,96], index: 6, kind: input, shape index: {}]
  %s7 = inlined_call_operand.vmem [shape: f32[1,96], index: 7, kind: input, shape index: {}]
  %s8 = inlined_call_operand.vmem [shape: f32[32,96], index: 8, kind: input, shape index: {}]
  %s9 = inlined_call_operand.vmem [shape: f32[1,96], index: 9, kind: input, shape index: {}]
  %s10 = inlined_call_operand.vmem [shape: bf16[16,16], index: 10, kind: input, shape index: {}]
  %s11 = inlined_call_operand.vmem [shape: f32[1,16], index: 11, kind: input, shape index: {}]
  %s12 = inlined_call_operand.vmem [shape: bf16[16,96], index: 12, kind: input, shape index: {}]
  %s13 = inlined_call_operand.vmem [shape: f32[1,96], index: 13, kind: input, shape index: {}]
  %s14 = inlined_call_operand.vmem [shape: f32[32,96], index: 14, kind: input, shape index: {}]
  %s15 = inlined_call_operand.vmem [shape: f32[1,96], index: 15, kind: input, shape index: {}]
  %s16 = inlined_call_operand.vmem [shape: f32[8,8,32], index: 16, kind: output, shape index: {0}]
  %s17 = inlined_call_operand.vmem [shape: f32[8,64], index: 17, kind: output, shape index: {1}]
  %18 = xla_tuple %s16, %s17
  %s19 = sld [smem:[#allocation0]]
  $region82: #{all_inputs_encoder_forward.1} parent=0
    _
  %s21 = ssub.s32 1, %s19
  %s22 = scalar_select 0, %s21, %s19
  // Predicated region
  $region2: #{all_inputs_encoder_forward.1} parent=0 // pred_check
    _
  $region3: #{all_inputs_encoder_forward.1} parent=0 // pred_check_branch
    %24 = sbr.rel (0) target = $region5
  $region4: #{all_inputs_encoder_forward.1} parent=0 // pred_region
    _
  $region5: #{all_inputs_encoder_forward.1} parent=0 // pred_fallthru
    _
  // Predicated region
  $region6: #{all_inputs_encoder_forward.1} parent=0 // pred_check
    _
  $region7: #{all_inputs_encoder_forward.1} parent=0 // pred_check_branch
    %26 = sbr.rel (0) target = $region9
  $region8: #{all_inputs_encoder_forward.1} parent=0 // pred_region
    _
  $region9: #{all_inputs_encoder_forward.1} parent=0 // pred_fallthru
    _
  // Predicated region
  $region10: #{all_inputs_encoder_forward.1} parent=0 // pred_check
    _
  $region11: #{all_inputs_encoder_forward.1} parent=0 // pred_check_branch
    %28 = sbr.rel (0) target = $region13
  $region12: #{all_inputs_encoder_forward.1} parent=0 // pred_region
    _
  $region13: #{all_inputs_encoder_forward.1} parent=0 // pred_fallthru
    _
  // Predicated region
  $region14: #{all_inputs_encoder_forward.1} parent=0 // pred_check
    _
  $region15: #{all_inputs_encoder_forward.1} parent=0 // pred_check_branch
    %30 = sbr.rel (0) target = $region17
  $region16: #{all_inputs_encoder_forward.1} parent=0 // pred_region
    _
  $region17: #{all_inputs_encoder_forward.1} parent=0 // pred_fallthru
    _
  // Predicated region
  $region18: #{all_inputs_encoder_forward.1} parent=0 // pred_check
    _
  $region19: #{all_inputs_encoder_forward.1} parent=0 // pred_check_branch
    %32 = sbr.rel (0) target = $region21
  $region20: #{all_inputs_encoder_forward.1} parent=0 // pred_region
    _
  $region21: #{all_inputs_encoder_forward.1} parent=0 // pred_fallthru
    _
  // Predicated region
  $region22: #{all_inputs_encoder_forward.1} parent=0 // pred_check
    _
  $region23: #{all_inputs_encoder_forward.1} parent=0 // pred_check_branch
    %34 = sbr.rel (0) target = $region25
  $region24: #{all_inputs_encoder_forward.1} parent=0 // pred_region
    _
  $region25: #{all_inputs_encoder_forward.1} parent=0 // pred_fallthru
    _
  // Predicated region
  $region26: #{all_inputs_encoder_forward.1} parent=0 // pred_check
    _
  $region27: #{all_inputs_encoder_forward.1} parent=0 // pred_check_branch
    %36 = sbr.rel (0) target = $region29
  $region28: #{all_inputs_encoder_forward.1} parent=0 // pred_region
    _
  $region29: #{all_inputs_encoder_forward.1} parent=0 // pred_fallthru
    _
  // Predicated region
  $region30: #{all_inputs_encoder_forward.1} parent=0 // pred_check
    _
  $region31: #{all_inputs_encoder_forward.1} parent=0 // pred_check_branch
    %38 = sbr.rel (0) target = $region33
  $region32: #{all_inputs_encoder_forward.1} parent=0 // pred_region
    _
  $region33: #{all_inputs_encoder_forward.1} parent=0 // pred_fallthru
    _
  // Predicated region
  $region34: #{all_inputs_encoder_forward.1} parent=0 // pred_check
    _
  $region35: #{all_inputs_encoder_forward.1} parent=0 // pred_check_branch
    %40 = sbr.rel (0) target = $region37
  $region36: #{all_inputs_encoder_forward.1} parent=0 // pred_region
    _
  $region37: #{all_inputs_encoder_forward.1} parent=0 // pred_fallthru
    _
  // Predicated region
  $region38: #{all_inputs_encoder_forward.1} parent=0 // pred_check
    _
  $region39: #{all_inputs_encoder_forward.1} parent=0 // pred_check_branch
    %42 = sbr.rel (0) target = $region41
  $region40: #{all_inputs_encoder_forward.1} parent=0 // pred_region
    _
  $region41: #{all_inputs_encoder_forward.1} parent=0 // pred_fallthru
    _
  // Predicated region
  $region42: #{all_inputs_encoder_forward.1} parent=0 // pred_check
    _
  $region43: #{all_inputs_encoder_forward.1} parent=0 // pred_check_branch
    %44 = sbr.rel (0) target = $region45
  $region44: #{all_inputs_encoder_forward.1} parent=0 // pred_region
    _
  $region45: #{all_inputs_encoder_forward.1} parent=0 // pred_fallthru
    _
  // Predicated region
  $region46: #{all_inputs_encoder_forward.1} parent=0 // pred_check
    _
  $region47: #{all_inputs_encoder_forward.1} parent=0 // pred_check_branch
    %46 = sbr.rel (0) target = $region49
  $region48: #{all_inputs_encoder_forward.1} parent=0 // pred_region
    _
  $region49: #{all_inputs_encoder_forward.1} parent=0 // pred_fallthru
    _
  // Predicated region
  $region50: #{all_inputs_encoder_forward.1} parent=0 // pred_check
    _
  $region51: #{all_inputs_encoder_forward.1} parent=0 // pred_check_branch
    %48 = sbr.rel (0) target = $region53
  $region52: #{all_inputs_encoder_forward.1} parent=0 // pred_region
    _
  $region53: #{all_inputs_encoder_forward.1} parent=0 // pred_fallthru
    _
  // Predicated region
  $region54: #{all_inputs_encoder_forward.1} parent=0 // pred_check
    _
  $region55: #{all_inputs_encoder_forward.1} parent=0 // pred_check_branch
    %50 = sbr.rel (0) target = $region57
  $region56: #{all_inputs_encoder_forward.1} parent=0 // pred_region
    _
  $region57: #{all_inputs_encoder_forward.1} parent=0 // pred_fallthru
    _
  // Predicated region
  $region58: #{all_inputs_encoder_forward.1} parent=0 // pred_check
    _
  $region59: #{all_inputs_encoder_forward.1} parent=0 // pred_check_branch
    %52 = sbr.rel (0) target = $region61
  $region60: #{all_inputs_encoder_forward.1} parent=0 // pred_region
    _
  $region61: #{all_inputs_encoder_forward.1} parent=0 // pred_fallthru
    _
  // Predicated region
  $region62: #{all_inputs_encoder_forward.1} parent=0 // pred_check
    _
  $region63: #{all_inputs_encoder_forward.1} parent=0 // pred_check_branch
    %54 = sbr.rel (0) target = $region65
  $region64: #{all_inputs_encoder_forward.1} parent=0 // pred_region
    _
  $region65: #{all_inputs_encoder_forward.1} parent=0 // pred_fallthru
    _
  %v56 = vld [vmem:[%s0] sm:$0xf]
  %v57 = vld [vmem:[%s0 + $0x4] sm:$0xf]
  %v58 = vld [vmem:[%s0 + $0x8] sm:$0xf]
  %v59 = vld [vmem:[%s0 + $0xc] sm:$0xf]
  %v60 = vld [vmem:[%s0 + $0x10] sm:$0xf]
  %v61 = vld [vmem:[%s0 + $0x14] sm:$0xf]
  %v62 = vld [vmem:[%s0 + $0x18] sm:$0xf]
  %v63 = vld [vmem:[%s0 + $0x1c] sm:$0xf]
  %v64 = vld [vmem:[%s0 + $0x20] sm:$0xf]
  %v65 = vld [vmem:[%s0 + $0x24] sm:$0xf]
  %v66 = vld [vmem:[%s2] sm:$0xf]
  %v67 = vld [vmem:[%s2 + $0x4] sm:$0x3]
  %v68 = vld [vmem:[%s3] sm:$0x1]
  %v70 = vlaneseq
  %v71 = vshrl.u32 %v70, 7
  %v72 = vsub.s32 0, %v71
  %v73 = vrot.slane %v68, %v72
  %v85 = vunpack.c.l.b16 %v56
  %v86 = vunpack.c.l.b16 %v57
  %v87 = vunpack.c.l.b16 %v58
  %v88 = vunpack.c.l.b16 %v59
  %v89 = vunpack.c.l.b16 %v60
  %v90 = vunpack.c.l.b16 %v61
  %v91 = vunpack.c.l.b16 %v62
  %v92 = vunpack.c.l.b16 %v63
  %v93 = vunpack.c.l.b16 %v64
  %v94 = vunpack.c.l.b16 %v65
  %v95 = vpack.c.b16 %v86, %v85
  %v96 = vpack.c.b16 %v88, %v87
  %v97 = vpack.c.b16 %v90, %v89
  %v98 = vpack.c.b16 %v92, %v91
  %v99 = vpack.c.b16 %v94, %v93
  %v102 = vunpack.c.l.b16 %v66
  %v103 = vunpack.c.l.b16 %v67
  %v104 = vpack.c.b16 %v103, %v102
  %vm105 = vcmask 97280
  %v107 = vsel %vm105, %v95, 0
  %v110 = vsel %vm105, %v96, 0
  %v113 = vsel %vm105, %v97, 0
  %v116 = vsel %vm105, %v98, 0
  %v119 = vsel %vm105, %v99, 0
  %vm121 = vcmask 1045504
  %v123 = vsel %vm121, %v104, 0
  %125 = vmatprep.subr.bf16.mxu0 0
  %126 = vmatpush1.bf16.msra.mxu0 0
  %127 = vmatprep.subr.bf16.mxu0 0
  %128 = vmatpush1.bf16.msra.mxu0 0
  %129 = vmatprep.subr.bf16.mxu0 0
  %130 = vmatpush1.bf16.msra.mxu0 0
  %131 = vmatprep.subr.bf16.mxu0 0
  %132 = vmatpush1.bf16.msra.mxu0 0
  %133 = vmatprep.subr.bf16.mxu0 0
  %134 = vmatpush1.bf16.msra.mxu0 0
  %135 = vmatprep.subr.bf16.mxu0 0
  %136 = vmatpush1.bf16.msra.mxu0 0
  %137 = vmatprep.subr.bf16.mxu0 0
  %138 = vmatpush1.bf16.msra.mxu0 0
  %139 = vmatprep.subr.bf16.mxu0 0
  %140 = vmatpush1.bf16.msra.mxu0 %v123
  %141 = vmatprep.subr.bf16.mxu0 0
  %142 = vmatpush2.bf16.msra.mxu0 0
  %143 = vmatprep.subr.bf16.mxu0 0
  %144 = vmatpush2.bf16.msra.mxu0 0
  %145 = vmatprep.subr.bf16.mxu0 0
  %146 = vmatpush2.bf16.msra.mxu0 0
  %147 = vmatprep.subr.bf16.mxu0 0
  %148 = vmatpush2.bf16.msra.mxu0 0
  %149 = vmatprep.subr.bf16.mxu0 0
  %150 = vmatpush2.bf16.msra.mxu0 0
  %151 = vmatprep.subr.bf16.mxu0 0
  %152 = vmatpush2.bf16.msra.mxu0 0
  %153 = vmatprep.subr.bf16.mxu0 0
  %154 = vmatpush2.bf16.msra.mxu0 0
  %155 = vmatprep.subr.bf16.mxu0 0
  %156 = vmatpush2.bf16.msra.mxu0 0
  %157 = vmatprep.mubr.bf16.mxu0 0
  %158 = vmatmul.mubr.bf16.gmra.mxu0 %v107
  %v159 = vpop.f32.mrf.mxu0
  %v160 = vadd.f32 %v73, %v159
  %v161 = vpop.f32.mrf.mxu0
  %v162 = vpop.f32.mrf.mxu0
  %v163 = vadd.f32 %v73, %v162
  %v164 = vpop.f32.mrf.mxu0
  %165 = vmatprep.mubr.bf16.mxu0 0
  %166 = vmatmul.mubr.bf16.gmra.mxu0 %v110
  %v167 = vpop.f32.mrf.mxu0
  %v168 = vadd.f32 %v73, %v167
  %v169 = vpop.f32.mrf.mxu0
  %v170 = vpop.f32.mrf.mxu0
  %v171 = vadd.f32 %v73, %v170
  %v172 = vpop.f32.mrf.mxu0
  %173 = vmatprep.mubr.bf16.mxu0 0
  %174 = vmatmul.mubr.bf16.gmra.mxu0 %v113
  %v175 = vpop.f32.mrf.mxu0
  %v176 = vadd.f32 %v73, %v175
  %v177 = vpop.f32.mrf.mxu0
  %v178 = vpop.f32.mrf.mxu0
  %v179 = vadd.f32 %v73, %v178
  %v180 = vpop.f32.mrf.mxu0
  %181 = vmatprep.mubr.bf16.mxu0 0
  %182 = vmatmul.mubr.bf16.gmra.mxu0 %v116
  %v183 = vpop.f32.mrf.mxu0
  %v184 = vadd.f32 %v73, %v183
  %v185 = vpop.f32.mrf.mxu0
  %v186 = vpop.f32.mrf.mxu0
  %v187 = vadd.f32 %v73, %v186
  %v188 = vpop.f32.mrf.mxu0
  %189 = vmatprep.mubr.bf16.mxu0 0
  %190 = vmatmul.mubr.bf16.gmra.mxu0 %v119
  %v191 = vpop.f32.mrf.mxu0
  %v192 = vadd.f32 %v73, %v191
  %v193 = vpop.f32.mrf.mxu0
  %v194 = vpop.f32.mrf.mxu0
  %v195 = vadd.f32 %v73, %v194
  %v196 = vpop.f32.mrf.mxu0
  %197 = vdwg.mxu0
  %v198 = vtanh.pop %v160
  %v199 = vtanh.pop %v163
  %v200 = vtanh.pop %v168
  %v201 = vtanh.pop %v171
  %v202 = vtanh.pop %v176
  %v203 = vtanh.pop %v179
  %v204 = vtanh.pop %v184
  %v205 = vtanh.pop %v187
  %v206 = vtanh.pop %v192
  %v207 = vtanh.pop %v195
  %v208 = vpack.c.bf16 %v199, %v198
  %v209 = vpack.c.bf16 %v201, %v200
  %v210 = vpack.c.bf16 %v203, %v202
  %v211 = vpack.c.bf16 %v205, %v204
  %v212 = vpack.c.bf16 %v207, %v206
  %v213 = vld [vmem:[%s4] sm:$0xf]
  %v214 = vld [vmem:[%s4 + $0x4] sm:$0xf]
  %v215 = vld [vmem:[%s5] sm:$0x1]
  %v217 = vlaneseq
  %v218 = vshrl.u32 %v217, 7
  %v219 = vsub.s32 0, %v218
  %v220 = vrot.slane %v215, %v219
  %v224 = vunpack.c.l.b16 %v213
  %v225 = vunpack.c.l.b16 %v214
  %v226 = vpack.c.b16 %v225, %v224
  %vm228 = vcmask 130048
  %v230 = vsel %vm228, %v208, 0
  %v233 = vsel %vm228, %v209, 0
  %v236 = vsel %vm228, %v210, 0
  %v239 = vsel %vm228, %v211, 0
  %v242 = vsel %vm228, %v212, 0
  %244 = vmatprep.subr.bf16.mxu0 0
  %245 = vmatpush1.bf16.msra.mxu0 0
  %246 = vmatprep.subr.bf16.mxu0 0
  %247 = vmatpush1.bf16.msra.mxu0 0
  %248 = vmatprep.subr.bf16.mxu0 0
  %249 = vmatpush1.bf16.msra.mxu0 0
  %250 = vmatprep.subr.bf16.mxu0 0
  %251 = vmatpush1.bf16.msra.mxu0 0
  %252 = vmatprep.subr.bf16.mxu0 0
  %253 = vmatpush1.bf16.msra.mxu0 0
  %254 = vmatprep.subr.bf16.mxu0 0
  %255 = vmatpush1.bf16.msra.mxu0 0
  %256 = vmatprep.subr.bf16.mxu0 0
  %257 = vmatpush1.bf16.msra.mxu0 0
  %258 = vmatprep.subr.bf16.mxu0 0
  %259 = vmatpush1.bf16.msra.mxu0 %v226
  %260 = vmatprep.subr.bf16.mxu0 0
  %261 = vmatpush2.bf16.msra.mxu0 0
  %262 = vmatprep.subr.bf16.mxu0 0
  %263 = vmatpush2.bf16.msra.mxu0 0
  %264 = vmatprep.subr.bf16.mxu0 0
  %265 = vmatpush2.bf16.msra.mxu0 0
  %266 = vmatprep.subr.bf16.mxu0 0
  %267 = vmatpush2.bf16.msra.mxu0 0
  %268 = vmatprep.subr.bf16.mxu0 0
  %269 = vmatpush2.bf16.msra.mxu0 0
  %270 = vmatprep.subr.bf16.mxu0 0
  %271 = vmatpush2.bf16.msra.mxu0 0
  %272 = vmatprep.subr.bf16.mxu0 0
  %273 = vmatpush2.bf16.msra.mxu0 0
  %274 = vmatprep.subr.bf16.mxu0 0
  %275 = vmatpush2.bf16.msra.mxu0 0
  %276 = vmatprep.mubr.bf16.mxu0 0
  %277 = vmatmul.mubr.bf16.gmra.mxu0 %v230
  %v278 = vpop.f32.mrf.mxu0
  %v279 = vadd.f32 %v220, %v278
  %v280 = vpop.f32.mrf.mxu0
  %v281 = vpop.f32.mrf.mxu0
  %v282 = vadd.f32 %v220, %v281
  %v283 = vpop.f32.mrf.mxu0
  %284 = vmatprep.mubr.bf16.mxu0 0
  %285 = vmatmul.mubr.bf16.gmra.mxu0 %v233
  %v286 = vpop.f32.mrf.mxu0
  %v287 = vadd.f32 %v220, %v286
  %v288 = vpop.f32.mrf.mxu0
  %v289 = vpop.f32.mrf.mxu0
  %v290 = vadd.f32 %v220, %v289
  %v291 = vpop.f32.mrf.mxu0
  %292 = vmatprep.mubr.bf16.mxu0 0
  %293 = vmatmul.mubr.bf16.gmra.mxu0 %v236
  %v294 = vpop.f32.mrf.mxu0
  %v295 = vadd.f32 %v220, %v294
  %v296 = vpop.f32.mrf.mxu0
  %v297 = vpop.f32.mrf.mxu0
  %v298 = vadd.f32 %v220, %v297
  %v299 = vpop.f32.mrf.mxu0
  %300 = vmatprep.mubr.bf16.mxu0 0
  %301 = vmatmul.mubr.bf16.gmra.mxu0 %v239
  %v302 = vpop.f32.mrf.mxu0
  %v303 = vadd.f32 %v220, %v302
  %v304 = vpop.f32.mrf.mxu0
  %v305 = vpop.f32.mrf.mxu0
  %v306 = vadd.f32 %v220, %v305
  %v307 = vpop.f32.mrf.mxu0
  %308 = vmatprep.mubr.bf16.mxu0 0
  %309 = vmatmul.mubr.bf16.gmra.mxu0 %v242
  %v310 = vpop.f32.mrf.mxu0
  %v311 = vadd.f32 %v220, %v310
  %v312 = vpop.f32.mrf.mxu0
  %v313 = vpop.f32.mrf.mxu0
  %v314 = vadd.f32 %v220, %v313
  %v315 = vpop.f32.mrf.mxu0
  %316 = vdwg.mxu0
  %v317 = vld [vmem:[%s6] sm:$0xf]
  %v318 = vld [vmem:[%s6 + $0x4] sm:$0xf]
  %v319 = vld [vmem:[%s7] sm:$0x1]
  %v321 = vlaneseq
  %v322 = vshrl.u32 %v321, 7
  %v323 = vsub.s32 0, %v322
  %v324 = vrot.slane %v319, %v323
  %v328 = vunpack.c.l.b16 %v317
  %v329 = vunpack.c.l.b16 %v318
  %v330 = vpack.c.b16 %v329, %v328
  %332 = vmatprep.subr.bf16.mxu0 0
  %333 = vmatpush1.bf16.msra.mxu0 0
  %334 = vmatprep.subr.bf16.mxu0 0
  %335 = vmatpush1.bf16.msra.mxu0 0
  %336 = vmatprep.subr.bf16.mxu0 0
  %337 = vmatpush1.bf16.msra.mxu0 0
  %338 = vmatprep.subr.bf16.mxu0 0
  %339 = vmatpush1.bf16.msra.mxu0 0
  %340 = vmatprep.subr.bf16.mxu0 0
  %341 = vmatpush1.bf16.msra.mxu0 0
  %342 = vmatprep.subr.bf16.mxu0 0
  %343 = vmatpush1.bf16.msra.mxu0 0
  %344 = vmatprep.subr.bf16.mxu0 0
  %345 = vmatpush1.bf16.msra.mxu0 0
  %346 = vmatprep.subr.bf16.mxu0 0
  %347 = vmatpush1.bf16.msra.mxu0 %v330
  %348 = vmatprep.subr.bf16.mxu0 0
  %349 = vmatpush2.bf16.msra.mxu0 0
  %350 = vmatprep.subr.bf16.mxu0 0
  %351 = vmatpush2.bf16.msra.mxu0 0
  %352 = vmatprep.subr.bf16.mxu0 0
  %353 = vmatpush2.bf16.msra.mxu0 0
  %354 = vmatprep.subr.bf16.mxu0 0
  %355 = vmatpush2.bf16.msra.mxu0 0
  %356 = vmatprep.subr.bf16.mxu0 0
  %357 = vmatpush2.bf16.msra.mxu0 0
  %358 = vmatprep.subr.bf16.mxu0 0
  %359 = vmatpush2.bf16.msra.mxu0 0
  %360 = vmatprep.subr.bf16.mxu0 0
  %361 = vmatpush2.bf16.msra.mxu0 0
  %362 = vmatprep.subr.bf16.mxu0 0
  %363 = vmatpush2.bf16.msra.mxu0 0
  %364 = vmatprep.mubr.bf16.mxu0 0
  %365 = vmatmul.mubr.bf16.gmra.mxu0 %v230
  %v366 = vpop.f32.mrf.mxu0
  %v367 = vadd.f32 %v324, %v366
  %v368 = vpop.f32.mrf.mxu0
  %v369 = vpop.f32.mrf.mxu0
  %v370 = vadd.f32 %v324, %v369
  %v371 = vpop.f32.mrf.mxu0
  %372 = vmatprep.mubr.bf16.mxu0 0
  %373 = vmatmul.mubr.bf16.gmra.mxu0 %v233
  %v374 = vpop.f32.mrf.mxu0
  %v375 = vadd.f32 %v324, %v374
  %v376 = vpop.f32.mrf.mxu0
  %v377 = vpop.f32.mrf.mxu0
  %v378 = vadd.f32 %v324, %v377
  %v379 = vpop.f32.mrf.mxu0
  %380 = vmatprep.mubr.bf16.mxu0 0
  %381 = vmatmul.mubr.bf16.gmra.mxu0 %v236
  %v382 = vpop.f32.mrf.mxu0
  %v383 = vadd.f32 %v324, %v382
  %v384 = vpop.f32.mrf.mxu0
  %v385 = vpop.f32.mrf.mxu0
  %v386 = vadd.f32 %v324, %v385
  %v387 = vpop.f32.mrf.mxu0
  %388 = vmatprep.mubr.bf16.mxu0 0
  %389 = vmatmul.mubr.bf16.gmra.mxu0 %v239
  %v390 = vpop.f32.mrf.mxu0
  %v391 = vadd.f32 %v324, %v390
  %v392 = vpop.f32.mrf.mxu0
  %v393 = vpop.f32.mrf.mxu0
  %v394 = vadd.f32 %v324, %v393
  %v395 = vpop.f32.mrf.mxu0
  %396 = vmatprep.mubr.bf16.mxu0 0
  %397 = vmatmul.mubr.bf16.gmra.mxu0 %v242
  %v398 = vpop.f32.mrf.mxu0
  %v399 = vadd.f32 %v324, %v398
  %v400 = vpop.f32.mrf.mxu0
  %v401 = vpop.f32.mrf.mxu0
  %v402 = vadd.f32 %v324, %v401
  %v403 = vpop.f32.mrf.mxu0
  %404 = vdwg.mxu0
  %v405 = vld [vmem:[%s8] sm:$0xff]
  %v406 = vld [vmem:[%s8 + $0x8] sm:$0xff]
  %v407 = vld [vmem:[%s8 + $0x10] sm:$0xff]
  %v408 = vld [vmem:[%s8 + $0x18] sm:$0xff]
  %v409 = vld [vmem:[%s9] sm:$0x1]
  %v411 = vlaneseq
  %v412 = vshrl.u32 %v411, 7
  %v413 = vsub.s32 0, %v412
  %v414 = vrot.slane %v409, %v413
  %v416 = vadd.f32 %v279, %v402
  %vm417 = vcmask 261120
  %v419 = vsel %vm417, 0.0, 0
  %421 = vmatprep.subr.mxu0 0.0
  %422 = vmatpush1.msra.mxu0 0.0
  %423 = vmatprep.subr.mxu0 0.0
  %424 = vmatpush1.msra.mxu0 0.0
  %425 = vmatprep.subr.mxu0 0.0
  %426 = vmatpush1.msra.mxu0 0.0
  %427 = vmatprep.subr.mxu0 0.0
  %428 = vmatpush1.msra.mxu0 0.0
  %429 = vmatprep.subr.mxu0 0.0
  %430 = vmatpush1.msra.mxu0 0.0
  %431 = vmatprep.subr.mxu0 0.0
  %432 = vmatpush1.msra.mxu0 0.0
  %433 = vmatprep.subr.mxu0 0.0
  %434 = vmatpush1.msra.mxu0 0.0
  %435 = vmatprep.subr.mxu0 0.0
  %436 = vmatpush1.msra.mxu0 0.0
  %437 = vmatprep.subr.mxu0 0.0
  %438 = vmatpush1.msra.mxu0 0.0
  %439 = vmatprep.subr.mxu0 0.0
  %440 = vmatpush1.msra.mxu0 0.0
  %441 = vmatprep.subr.mxu0 0.0
  %442 = vmatpush1.msra.mxu0 0.0
  %443 = vmatprep.subr.mxu0 0.0
  %444 = vmatpush1.msra.mxu0 0.0
  %445 = vmatprep.subr.mxu0 0.0
  %446 = vmatpush1.msra.mxu0 %v408
  %447 = vmatprep.subr.mxu0 0.0
  %448 = vmatpush1.msra.mxu0 %v407
  %449 = vmatprep.subr.mxu0 0.0
  %450 = vmatpush1.msra.mxu0 %v406
  %451 = vmatprep.subr.mxu0 0.0
  %452 = vmatpush1.msra.mxu0 %v405
  %453 = vmatprep.subr.mxu0 0.0
  %454 = vmatpush2.msra.mxu0 0.0
  %455 = vmatprep.subr.mxu0 0.0
  %456 = vmatpush2.msra.mxu0 0.0
  %457 = vmatprep.subr.mxu0 0.0
  %458 = vmatpush2.msra.mxu0 0.0
  %459 = vmatprep.subr.mxu0 0.0
  %460 = vmatpush2.msra.mxu0 0.0
  %461 = vmatprep.subr.mxu0 0.0
  %462 = vmatpush2.msra.mxu0 0.0
  %463 = vmatprep.subr.mxu0 0.0
  %464 = vmatpush2.msra.mxu0 0.0
  %465 = vmatprep.subr.mxu0 0.0
  %466 = vmatpush2.msra.mxu0 0.0
  %467 = vmatprep.subr.mxu0 0.0
  %468 = vmatpush2.msra.mxu0 0.0
  %469 = vmatprep.subr.mxu0 0.0
  %470 = vmatpush2.msra.mxu0 0.0
  %471 = vmatprep.subr.mxu0 0.0
  %472 = vmatpush2.msra.mxu0 0.0
  %473 = vmatprep.subr.mxu0 0.0
  %474 = vmatpush2.msra.mxu0 0.0
  %475 = vmatprep.subr.mxu0 0.0
  %476 = vmatpush2.msra.mxu0 0.0
  %477 = vmatprep.subr.mxu0 0.0
  %478 = vmatpush2.msra.mxu0 0.0
  %479 = vmatprep.subr.mxu0 0.0
  %480 = vmatpush2.msra.mxu0 0.0
  %481 = vmatprep.subr.mxu0 0.0
  %482 = vmatpush2.msra.mxu0 0.0
  %483 = vmatprep.subr.mxu0 0.0
  %484 = vmatpush2.msra.mxu0 0.0
  %485 = vmatprep.mubr.f32.mxu0 0.0
  %486 = vmatmul.mubr.f32.gmra.mxu0 %v419
  %v487 = vpop.f32.mrf.mxu0
  %v488 = vadd.f32 %v414, %v487
  %v489 = vpop.f32.mrf.mxu0
  %490 = vdwg.mxu0
  %v491 = vadd.f32 %v416, %v488
  %v492 = vxor.u32 %v491, 2147483648
  %v493 = vmul.f32 %v492, 1.442695
  %v494 = vpow.pop %v493
  %v495 = vadd.f32 %v494, 1.0
  %v496 = vrcp.pop %v495
  %v497 = vmul.f32 1.0, %v496
  %499 = vrot.lane.b32.xlu0 %v488, 64
  %v500 = vpop.permute.xlu0 %499
  %v502 = vmul.f32 %v497, %v500
  %504 = vrot.lane.b32.xlu0 %v502, 64
  %v505 = vpop.permute.xlu0 %504
  %v507 = vadd.f32 %v416, %v505
  %v508 = vtanh.pop %v507
  %v509 = vsub.f32 1.0, %v497
  %511 = vrot.lane.b32.xlu0 %v508, 96
  %v512 = vpop.permute.xlu0 %511
  %v514 = vmul.f32 %v509, %v512
  %v515 = vmul.f32 %v497, 0.0
  %v516 = vadd.f32 %v514, %v515
  %v517 = vadd.f32 %v282, %v399
  %519 = vrot.lane.b32.xlu0 %v516, 96
  %v520 = vpop.permute.xlu0 %519
  %v521 = vsel %vm417, %v520, 0
  %523 = vmatprep.subr.mxu0 0.0
  %524 = vmatpush1.msra.mxu0 0.0
  %525 = vmatprep.subr.mxu0 0.0
  %526 = vmatpush1.msra.mxu0 0.0
  %527 = vmatprep.subr.mxu0 0.0
  %528 = vmatpush1.msra.mxu0 0.0
  %529 = vmatprep.subr.mxu0 0.0
  %530 = vmatpush1.msra.mxu0 0.0
  %531 = vmatprep.subr.mxu0 0.0
  %532 = vmatpush1.msra.mxu0 0.0
  %533 = vmatprep.subr.mxu0 0.0
  %534 = vmatpush1.msra.mxu0 0.0
  %535 = vmatprep.subr.mxu0 0.0
  %536 = vmatpush1.msra.mxu0 0.0
  %537 = vmatprep.subr.mxu0 0.0
  %538 = vmatpush1.msra.mxu0 0.0
  %539 = vmatprep.subr.mxu0 0.0
  %540 = vmatpush1.msra.mxu0 0.0
  %541 = vmatprep.subr.mxu0 0.0
  %542 = vmatpush1.msra.mxu0 0.0
  %543 = vmatprep.subr.mxu0 0.0
  %544 = vmatpush1.msra.mxu0 0.0
  %545 = vmatprep.subr.mxu0 0.0
  %546 = vmatpush1.msra.mxu0 0.0
  %547 = vmatprep.subr.mxu0 0.0
  %548 = vmatpush1.msra.mxu0 %v408
  %549 = vmatprep.subr.mxu0 0.0
  %550 = vmatpush1.msra.mxu0 %v407
  %551 = vmatprep.subr.mxu0 0.0
  %552 = vmatpush1.msra.mxu0 %v406
  %553 = vmatprep.subr.mxu0 0.0
  %554 = vmatpush1.msra.mxu0 %v405
  %555 = vmatprep.subr.mxu0 0.0
  %556 = vmatpush2.msra.mxu0 0.0
  %557 = vmatprep.subr.mxu0 0.0
  %558 = vmatpush2.msra.mxu0 0.0
  %559 = vmatprep.subr.mxu0 0.0
  %560 = vmatpush2.msra.mxu0 0.0
  %561 = vmatprep.subr.mxu0 0.0
  %562 = vmatpush2.msra.mxu0 0.0
  %563 = vmatprep.subr.mxu0 0.0
  %564 = vmatpush2.msra.mxu0 0.0
  %565 = vmatprep.subr.mxu0 0.0
  %566 = vmatpush2.msra.mxu0 0.0
  %567 = vmatprep.subr.mxu0 0.0
  %568 = vmatpush2.msra.mxu0 0.0
  %569 = vmatprep.subr.mxu0 0.0
  %570 = vmatpush2.msra.mxu0 0.0
  %571 = vmatprep.subr.mxu0 0.0
  %572 = vmatpush2.msra.mxu0 0.0
  %573 = vmatprep.subr.mxu0 0.0
  %574 = vmatpush2.msra.mxu0 0.0
  %575 = vmatprep.subr.mxu0 0.0
  %576 = vmatpush2.msra.mxu0 0.0
  %577 = vmatprep.subr.mxu0 0.0
  %578 = vmatpush2.msra.mxu0 0.0
  %579 = vmatprep.subr.mxu0 0.0
  %580 = vmatpush2.msra.mxu0 0.0
  %581 = vmatprep.subr.mxu0 0.0
  %582 = vmatpush2.msra.mxu0 0.0
  %583 = vmatprep.subr.mxu0 0.0
  %584 = vmatpush2.msra.mxu0 0.0
  %585 = vmatprep.subr.mxu0 0.0
  %586 = vmatpush2.msra.mxu0 0.0
  %587 = vmatprep.mubr.f32.mxu0 0.0
  %588 = vmatmul.mubr.f32.gmra.mxu0 %v521
  %v589 = vpop.f32.mrf.mxu0
  %v590 = vadd.f32 %v414, %v589
  %v591 = vpop.f32.mrf.mxu0
  %592 = vdwg.mxu0
  %v593 = vadd.f32 %v517, %v590
  %v594 = vxor.u32 %v593, 2147483648
  %v595 = vmul.f32 %v594, 1.442695
  %v596 = vpow.pop %v595
  %v597 = vadd.f32 %v596, 1.0
  %v598 = vrcp.pop %v597
  %v599 = vmul.f32 1.0, %v598
  %601 = vrot.lane.b32.xlu0 %v590, 64
  %v602 = vpop.permute.xlu0 %601
  %v604 = vmul.f32 %v599, %v602
  %606 = vrot.lane.b32.xlu0 %v604, 64
  %v607 = vpop.permute.xlu0 %606
  %v609 = vadd.f32 %v517, %v607
  %v610 = vtanh.pop %v609
  %v611 = vsub.f32 1.0, %v599
  %613 = vrot.lane.b32.xlu0 %v610, 96
  %v614 = vpop.permute.xlu0 %613
  %v616 = vmul.f32 %v611, %v614
  %v617 = vmul.f32 %v599, %v516
  %v618 = vadd.f32 %v616, %v617
  %v619 = vadd.f32 %v287, %v394
  %621 = vrot.lane.b32.xlu0 %v618, 96
  %v622 = vpop.permute.xlu0 %621
  %v623 = vsel %vm417, %v622, 0
  %625 = vmatprep.subr.mxu0 0.0
  %626 = vmatpush1.msra.mxu0 0.0
  %627 = vmatprep.subr.mxu0 0.0
  %628 = vmatpush1.msra.mxu0 0.0
  %629 = vmatprep.subr.mxu0 0.0
  %630 = vmatpush1.msra.mxu0 0.0
  %631 = vmatprep.subr.mxu0 0.0
  %632 = vmatpush1.msra.mxu0 0.0
  %633 = vmatprep.subr.mxu0 0.0
  %634 = vmatpush1.msra.mxu0 0.0
  %635 = vmatprep.subr.mxu0 0.0
  %636 = vmatpush1.msra.mxu0 0.0
  %637 = vmatprep.subr.mxu0 0.0
  %638 = vmatpush1.msra.mxu0 0.0
  %639 = vmatprep.subr.mxu0 0.0
  %640 = vmatpush1.msra.mxu0 0.0
  %641 = vmatprep.subr.mxu0 0.0
  %642 = vmatpush1.msra.mxu0 0.0
  %643 = vmatprep.subr.mxu0 0.0
  %644 = vmatpush1.msra.mxu0 0.0
  %645 = vmatprep.subr.mxu0 0.0
  %646 = vmatpush1.msra.mxu0 0.0
  %647 = vmatprep.subr.mxu0 0.0
  %648 = vmatpush1.msra.mxu0 0.0
  %649 = vmatprep.subr.mxu0 0.0
  %650 = vmatpush1.msra.mxu0 %v408
  %651 = vmatprep.subr.mxu0 0.0
  %652 = vmatpush1.msra.mxu0 %v407
  %653 = vmatprep.subr.mxu0 0.0
  %654 = vmatpush1.msra.mxu0 %v406
  %655 = vmatprep.subr.mxu0 0.0
  %656 = vmatpush1.msra.mxu0 %v405
  %657 = vmatprep.subr.mxu0 0.0
  %658 = vmatpush2.msra.mxu0 0.0
  %659 = vmatprep.subr.mxu0 0.0
  %660 = vmatpush2.msra.mxu0 0.0
  %661 = vmatprep.subr.mxu0 0.0
  %662 = vmatpush2.msra.mxu0 0.0
  %663 = vmatprep.subr.mxu0 0.0
  %664 = vmatpush2.msra.mxu0 0.0
  %665 = vmatprep.subr.mxu0 0.0
  %666 = vmatpush2.msra.mxu0 0.0
  %667 = vmatprep.subr.mxu0 0.0
  %668 = vmatpush2.msra.mxu0 0.0
  %669 = vmatprep.subr.mxu0 0.0
  %670 = vmatpush2.msra.mxu0 0.0
  %671 = vmatprep.subr.mxu0 0.0
  %672 = vmatpush2.msra.mxu0 0.0
  %673 = vmatprep.subr.mxu0 0.0
  %674 = vmatpush2.msra.mxu0 0.0
  %675 = vmatprep.subr.mxu0 0.0
  %676 = vmatpush2.msra.mxu0 0.0
  %677 = vmatprep.subr.mxu0 0.0
  %678 = vmatpush2.msra.mxu0 0.0
  %679 = vmatprep.subr.mxu0 0.0
  %680 = vmatpush2.msra.mxu0 0.0
  %681 = vmatprep.subr.mxu0 0.0
  %682 = vmatpush2.msra.mxu0 0.0
  %683 = vmatprep.subr.mxu0 0.0
  %684 = vmatpush2.msra.mxu0 0.0
  %685 = vmatprep.subr.mxu0 0.0
  %686 = vmatpush2.msra.mxu0 0.0
  %687 = vmatprep.subr.mxu0 0.0
  %688 = vmatpush2.msra.mxu0 0.0
  %689 = vmatprep.mubr.f32.mxu0 0.0
  %690 = vmatmul.mubr.f32.gmra.mxu0 %v623
  %v691 = vpop.f32.mrf.mxu0
  %v692 = vadd.f32 %v414, %v691
  %v693 = vpop.f32.mrf.mxu0
  %694 = vdwg.mxu0
  %v695 = vadd.f32 %v619, %v692
  %v696 = vxor.u32 %v695, 2147483648
  %v697 = vmul.f32 %v696, 1.442695
  %v698 = vpow.pop %v697
  %v699 = vadd.f32 %v698, 1.0
  %v700 = vrcp.pop %v699
  %v701 = vmul.f32 1.0, %v700
  %703 = vrot.lane.b32.xlu0 %v692, 64
  %v704 = vpop.permute.xlu0 %703
  %v706 = vmul.f32 %v701, %v704
  %708 = vrot.lane.b32.xlu0 %v706, 64
  %v709 = vpop.permute.xlu0 %708
  %v711 = vadd.f32 %v619, %v709
  %v712 = vtanh.pop %v711
  %v713 = vsub.f32 1.0, %v701
  %715 = vrot.lane.b32.xlu0 %v712, 96
  %v716 = vpop.permute.xlu0 %715
  %v718 = vmul.f32 %v713, %v716
  %v719 = vmul.f32 %v701, %v618
  %v720 = vadd.f32 %v718, %v719
  %v721 = vadd.f32 %v290, %v391
  %723 = vrot.lane.b32.xlu0 %v720, 96
  %v724 = vpop.permute.xlu0 %723
  %v725 = vsel %vm417, %v724, 0
  %727 = vmatprep.subr.mxu0 0.0
  %728 = vmatpush1.msra.mxu0 0.0
  %729 = vmatprep.subr.mxu0 0.0
  %730 = vmatpush1.msra.mxu0 0.0
  %731 = vmatprep.subr.mxu0 0.0
  %732 = vmatpush1.msra.mxu0 0.0
  %733 = vmatprep.subr.mxu0 0.0
  %734 = vmatpush1.msra.mxu0 0.0
  %735 = vmatprep.subr.mxu0 0.0
  %736 = vmatpush1.msra.mxu0 0.0
  %737 = vmatprep.subr.mxu0 0.0
  %738 = vmatpush1.msra.mxu0 0.0
  %739 = vmatprep.subr.mxu0 0.0
  %740 = vmatpush1.msra.mxu0 0.0
  %741 = vmatprep.subr.mxu0 0.0
  %742 = vmatpush1.msra.mxu0 0.0
  %743 = vmatprep.subr.mxu0 0.0
  %744 = vmatpush1.msra.mxu0 0.0
  %745 = vmatprep.subr.mxu0 0.0
  %746 = vmatpush1.msra.mxu0 0.0
  %747 = vmatprep.subr.mxu0 0.0
  %748 = vmatpush1.msra.mxu0 0.0
  %749 = vmatprep.subr.mxu0 0.0
  %750 = vmatpush1.msra.mxu0 0.0
  %751 = vmatprep.subr.mxu0 0.0
  %752 = vmatpush1.msra.mxu0 %v408
  %753 = vmatprep.subr.mxu0 0.0
  %754 = vmatpush1.msra.mxu0 %v407
  %755 = vmatprep.subr.mxu0 0.0
  %756 = vmatpush1.msra.mxu0 %v406
  %757 = vmatprep.subr.mxu0 0.0
  %758 = vmatpush1.msra.mxu0 %v405
  %759 = vmatprep.subr.mxu0 0.0
  %760 = vmatpush2.msra.mxu0 0.0
  %761 = vmatprep.subr.mxu0 0.0
  %762 = vmatpush2.msra.mxu0 0.0
  %763 = vmatprep.subr.mxu0 0.0
  %764 = vmatpush2.msra.mxu0 0.0
  %765 = vmatprep.subr.mxu0 0.0
  %766 = vmatpush2.msra.mxu0 0.0
  %767 = vmatprep.subr.mxu0 0.0
  %768 = vmatpush2.msra.mxu0 0.0
  %769 = vmatprep.subr.mxu0 0.0
  %770 = vmatpush2.msra.mxu0 0.0
  %771 = vmatprep.subr.mxu0 0.0
  %772 = vmatpush2.msra.mxu0 0.0
  %773 = vmatprep.subr.mxu0 0.0
  %774 = vmatpush2.msra.mxu0 0.0
  %775 = vmatprep.subr.mxu0 0.0
  %776 = vmatpush2.msra.mxu0 0.0
  %777 = vmatprep.subr.mxu0 0.0
  %778 = vmatpush2.msra.mxu0 0.0
  %779 = vmatprep.subr.mxu0 0.0
  %780 = vmatpush2.msra.mxu0 0.0
  %781 = vmatprep.subr.mxu0 0.0
  %782 = vmatpush2.msra.mxu0 0.0
  %783 = vmatprep.subr.mxu0 0.0
  %784 = vmatpush2.msra.mxu0 0.0
  %785 = vmatprep.subr.mxu0 0.0
  %786 = vmatpush2.msra.mxu0 0.0
  %787 = vmatprep.subr.mxu0 0.0
  %788 = vmatpush2.msra.mxu0 0.0
  %789 = vmatprep.subr.mxu0 0.0
  %790 = vmatpush2.msra.mxu0 0.0
  %791 = vmatprep.mubr.f32.mxu0 0.0
  %792 = vmatmul.mubr.f32.gmra.mxu0 %v725
  %v793 = vpop.f32.mrf.mxu0
  %v794 = vadd.f32 %v414, %v793
  %v795 = vpop.f32.mrf.mxu0
  %796 = vdwg.mxu0
  %v797 = vadd.f32 %v721, %v794
  %v798 = vxor.u32 %v797, 2147483648
  %v799 = vmul.f32 %v798, 1.442695
  %v800 = vpow.pop %v799
  %v801 = vadd.f32 %v800, 1.0
  %v802 = vrcp.pop %v801
  %v803 = vmul.f32 1.0, %v802
  %805 = vrot.lane.b32.xlu0 %v794, 64
  %v806 = vpop.permute.xlu0 %805
  %v808 = vmul.f32 %v803, %v806
  %810 = vrot.lane.b32.xlu0 %v808, 64
  %v811 = vpop.permute.xlu0 %810
  %v813 = vadd.f32 %v721, %v811
  %v814 = vtanh.pop %v813
  %v815 = vsub.f32 1.0, %v803
  %817 = vrot.lane.b32.xlu0 %v814, 96
  %v818 = vpop.permute.xlu0 %817
  %v820 = vmul.f32 %v815, %v818
  %v821 = vmul.f32 %v803, %v720
  %v822 = vadd.f32 %v820, %v821
  %v823 = vadd.f32 %v295, %v386
  %825 = vrot.lane.b32.xlu0 %v822, 96
  %v826 = vpop.permute.xlu0 %825
  %v827 = vsel %vm417, %v826, 0
  %829 = vmatprep.subr.mxu0 0.0
  %830 = vmatpush1.msra.mxu0 0.0
  %831 = vmatprep.subr.mxu0 0.0
  %832 = vmatpush1.msra.mxu0 0.0
  %833 = vmatprep.subr.mxu0 0.0
  %834 = vmatpush1.msra.mxu0 0.0
  %835 = vmatprep.subr.mxu0 0.0
  %836 = vmatpush1.msra.mxu0 0.0
  %837 = vmatprep.subr.mxu0 0.0
  %838 = vmatpush1.msra.mxu0 0.0
  %839 = vmatprep.subr.mxu0 0.0
  %840 = vmatpush1.msra.mxu0 0.0
  %841 = vmatprep.subr.mxu0 0.0
  %842 = vmatpush1.msra.mxu0 0.0
  %843 = vmatprep.subr.mxu0 0.0
  %844 = vmatpush1.msra.mxu0 0.0
  %845 = vmatprep.subr.mxu0 0.0
  %846 = vmatpush1.msra.mxu0 0.0
  %847 = vmatprep.subr.mxu0 0.0
  %848 = vmatpush1.msra.mxu0 0.0
  %849 = vmatprep.subr.mxu0 0.0
  %850 = vmatpush1.msra.mxu0 0.0
  %851 = vmatprep.subr.mxu0 0.0
  %852 = vmatpush1.msra.mxu0 0.0
  %853 = vmatprep.subr.mxu0 0.0
  %854 = vmatpush1.msra.mxu0 %v408
  %855 = vmatprep.subr.mxu0 0.0
  %856 = vmatpush1.msra.mxu0 %v407
  %857 = vmatprep.subr.mxu0 0.0
  %858 = vmatpush1.msra.mxu0 %v406
  %859 = vmatprep.subr.mxu0 0.0
  %860 = vmatpush1.msra.mxu0 %v405
  %861 = vmatprep.subr.mxu0 0.0
  %862 = vmatpush2.msra.mxu0 0.0
  %863 = vmatprep.subr.mxu0 0.0
  %864 = vmatpush2.msra.mxu0 0.0
  %865 = vmatprep.subr.mxu0 0.0
  %866 = vmatpush2.msra.mxu0 0.0
  %867 = vmatprep.subr.mxu0 0.0
  %868 = vmatpush2.msra.mxu0 0.0
  %869 = vmatprep.subr.mxu0 0.0
  %870 = vmatpush2.msra.mxu0 0.0
  %871 = vmatprep.subr.mxu0 0.0
  %872 = vmatpush2.msra.mxu0 0.0
  %873 = vmatprep.subr.mxu0 0.0
  %874 = vmatpush2.msra.mxu0 0.0
  %875 = vmatprep.subr.mxu0 0.0
  %876 = vmatpush2.msra.mxu0 0.0
  %877 = vmatprep.subr.mxu0 0.0
  %878 = vmatpush2.msra.mxu0 0.0
  %879 = vmatprep.subr.mxu0 0.0
  %880 = vmatpush2.msra.mxu0 0.0
  %881 = vmatprep.subr.mxu0 0.0
  %882 = vmatpush2.msra.mxu0 0.0
  %883 = vmatprep.subr.mxu0 0.0
  %884 = vmatpush2.msra.mxu0 0.0
  %885 = vmatprep.subr.mxu0 0.0
  %886 = vmatpush2.msra.mxu0 0.0
  %887 = vmatprep.subr.mxu0 0.0
  %888 = vmatpush2.msra.mxu0 0.0
  %889 = vmatprep.subr.mxu0 0.0
  %890 = vmatpush2.msra.mxu0 0.0
  %891 = vmatprep.subr.mxu0 0.0
  %892 = vmatpush2.msra.mxu0 0.0
  %893 = vmatprep.mubr.f32.mxu0 0.0
  %894 = vmatmul.mubr.f32.gmra.mxu0 %v827
  %v895 = vpop.f32.mrf.mxu0
  %v896 = vadd.f32 %v414, %v895
  %v897 = vpop.f32.mrf.mxu0
  %898 = vdwg.mxu0
  %v899 = vadd.f32 %v823, %v896
  %v900 = vxor.u32 %v899, 2147483648
  %v901 = vmul.f32 %v900, 1.442695
  %v902 = vpow.pop %v901
  %v903 = vadd.f32 %v902, 1.0
  %v904 = vrcp.pop %v903
  %v905 = vmul.f32 1.0, %v904
  %907 = vrot.lane.b32.xlu0 %v896, 64
  %v908 = vpop.permute.xlu0 %907
  %v910 = vmul.f32 %v905, %v908
  %912 = vrot.lane.b32.xlu0 %v910, 64
  %v913 = vpop.permute.xlu0 %912
  %v915 = vadd.f32 %v823, %v913
  %v916 = vtanh.pop %v915
  %v917 = vsub.f32 1.0, %v905
  %919 = vrot.lane.b32.xlu0 %v916, 96
  %v920 = vpop.permute.xlu0 %919
  %v922 = vmul.f32 %v917, %v920
  %v923 = vmul.f32 %v905, %v822
  %v924 = vadd.f32 %v922, %v923
  %v925 = vadd.f32 %v298, %v383
  %927 = vrot.lane.b32.xlu0 %v924, 96
  %v928 = vpop.permute.xlu0 %927
  %v929 = vsel %vm417, %v928, 0
  %931 = vmatprep.subr.mxu0 0.0
  %932 = vmatpush1.msra.mxu0 0.0
  %933 = vmatprep.subr.mxu0 0.0
  %934 = vmatpush1.msra.mxu0 0.0
  %935 = vmatprep.subr.mxu0 0.0
  %936 = vmatpush1.msra.mxu0 0.0
  %937 = vmatprep.subr.mxu0 0.0
  %938 = vmatpush1.msra.mxu0 0.0
  %939 = vmatprep.subr.mxu0 0.0
  %940 = vmatpush1.msra.mxu0 0.0
  %941 = vmatprep.subr.mxu0 0.0
  %942 = vmatpush1.msra.mxu0 0.0
  %943 = vmatprep.subr.mxu0 0.0
  %944 = vmatpush1.msra.mxu0 0.0
  %945 = vmatprep.subr.mxu0 0.0
  %946 = vmatpush1.msra.mxu0 0.0
  %947 = vmatprep.subr.mxu0 0.0
  %948 = vmatpush1.msra.mxu0 0.0
  %949 = vmatprep.subr.mxu0 0.0
  %950 = vmatpush1.msra.mxu0 0.0
  %951 = vmatprep.subr.mxu0 0.0
  %952 = vmatpush1.msra.mxu0 0.0
  %953 = vmatprep.subr.mxu0 0.0
  %954 = vmatpush1.msra.mxu0 0.0
  %955 = vmatprep.subr.mxu0 0.0
  %956 = vmatpush1.msra.mxu0 %v408
  %957 = vmatprep.subr.mxu0 0.0
  %958 = vmatpush1.msra.mxu0 %v407
  %959 = vmatprep.subr.mxu0 0.0
  %960 = vmatpush1.msra.mxu0 %v406
  %961 = vmatprep.subr.mxu0 0.0
  %962 = vmatpush1.msra.mxu0 %v405
  %963 = vmatprep.subr.mxu0 0.0
  %964 = vmatpush2.msra.mxu0 0.0
  %965 = vmatprep.subr.mxu0 0.0
  %966 = vmatpush2.msra.mxu0 0.0
  %967 = vmatprep.subr.mxu0 0.0
  %968 = vmatpush2.msra.mxu0 0.0
  %969 = vmatprep.subr.mxu0 0.0
  %970 = vmatpush2.msra.mxu0 0.0
  %971 = vmatprep.subr.mxu0 0.0
  %972 = vmatpush2.msra.mxu0 0.0
  %973 = vmatprep.subr.mxu0 0.0
  %974 = vmatpush2.msra.mxu0 0.0
  %975 = vmatprep.subr.mxu0 0.0
  %976 = vmatpush2.msra.mxu0 0.0
  %977 = vmatprep.subr.mxu0 0.0
  %978 = vmatpush2.msra.mxu0 0.0
  %979 = vmatprep.subr.mxu0 0.0
  %980 = vmatpush2.msra.mxu0 0.0
  %981 = vmatprep.subr.mxu0 0.0
  %982 = vmatpush2.msra.mxu0 0.0
  %983 = vmatprep.subr.mxu0 0.0
  %984 = vmatpush2.msra.mxu0 0.0
  %985 = vmatprep.subr.mxu0 0.0
  %986 = vmatpush2.msra.mxu0 0.0
  %987 = vmatprep.subr.mxu0 0.0
  %988 = vmatpush2.msra.mxu0 0.0
  %989 = vmatprep.subr.mxu0 0.0
  %990 = vmatpush2.msra.mxu0 0.0
  %991 = vmatprep.subr.mxu0 0.0
  %992 = vmatpush2.msra.mxu0 0.0
  %993 = vmatprep.subr.mxu0 0.0
  %994 = vmatpush2.msra.mxu0 0.0
  %995 = vmatprep.mubr.f32.mxu0 0.0
  %996 = vmatmul.mubr.f32.gmra.mxu0 %v929
  %v997 = vpop.f32.mrf.mxu0
  %v998 = vadd.f32 %v414, %v997
  %v999 = vpop.f32.mrf.mxu0
  %1000 = vdwg.mxu0
  %v1001 = vadd.f32 %v925, %v998
  %v1002 = vxor.u32 %v1001, 2147483648
  %v1003 = vmul.f32 %v1002, 1.442695
  %v1004 = vpow.pop %v1003
  %v1005 = vadd.f32 %v1004, 1.0
  %v1006 = vrcp.pop %v1005
  %v1007 = vmul.f32 1.0, %v1006
  %1009 = vrot.lane.b32.xlu0 %v998, 64
  %v1010 = vpop.permute.xlu0 %1009
  %v1012 = vmul.f32 %v1007, %v1010
  %1014 = vrot.lane.b32.xlu0 %v1012, 64
  %v1015 = vpop.permute.xlu0 %1014
  %v1017 = vadd.f32 %v925, %v1015
  %v1018 = vtanh.pop %v1017
  %v1019 = vsub.f32 1.0, %v1007
  %1021 = vrot.lane.b32.xlu0 %v1018, 96
  %v1022 = vpop.permute.xlu0 %1021
  %v1024 = vmul.f32 %v1019, %v1022
  %v1025 = vmul.f32 %v1007, %v924
  %v1026 = vadd.f32 %v1024, %v1025
  %v1027 = vadd.f32 %v303, %v378
  %1029 = vrot.lane.b32.xlu0 %v1026, 96
  %v1030 = vpop.permute.xlu0 %1029
  %v1031 = vsel %vm417, %v1030, 0
  %1033 = vmatprep.subr.mxu0 0.0
  %1034 = vmatpush1.msra.mxu0 0.0
  %1035 = vmatprep.subr.mxu0 0.0
  %1036 = vmatpush1.msra.mxu0 0.0
  %1037 = vmatprep.subr.mxu0 0.0
  %1038 = vmatpush1.msra.mxu0 0.0
  %1039 = vmatprep.subr.mxu0 0.0
  %1040 = vmatpush1.msra.mxu0 0.0
  %1041 = vmatprep.subr.mxu0 0.0
  %1042 = vmatpush1.msra.mxu0 0.0
  %1043 = vmatprep.subr.mxu0 0.0
  %1044 = vmatpush1.msra.mxu0 0.0
  %1045 = vmatprep.subr.mxu0 0.0
  %1046 = vmatpush1.msra.mxu0 0.0
  %1047 = vmatprep.subr.mxu0 0.0
  %1048 = vmatpush1.msra.mxu0 0.0
  %1049 = vmatprep.subr.mxu0 0.0
  %1050 = vmatpush1.msra.mxu0 0.0
  %1051 = vmatprep.subr.mxu0 0.0
  %1052 = vmatpush1.msra.mxu0 0.0
  %1053 = vmatprep.subr.mxu0 0.0
  %1054 = vmatpush1.msra.mxu0 0.0
  %1055 = vmatprep.subr.mxu0 0.0
  %1056 = vmatpush1.msra.mxu0 0.0
  %1057 = vmatprep.subr.mxu0 0.0
  %1058 = vmatpush1.msra.mxu0 %v408
  %1059 = vmatprep.subr.mxu0 0.0
  %1060 = vmatpush1.msra.mxu0 %v407
  %1061 = vmatprep.subr.mxu0 0.0
  %1062 = vmatpush1.msra.mxu0 %v406
  %1063 = vmatprep.subr.mxu0 0.0
  %1064 = vmatpush1.msra.mxu0 %v405
  %1065 = vmatprep.subr.mxu0 0.0
  %1066 = vmatpush2.msra.mxu0 0.0
  %1067 = vmatprep.subr.mxu0 0.0
  %1068 = vmatpush2.msra.mxu0 0.0
  %1069 = vmatprep.subr.mxu0 0.0
  %1070 = vmatpush2.msra.mxu0 0.0
  %1071 = vmatprep.subr.mxu0 0.0
  %1072 = vmatpush2.msra.mxu0 0.0
  %1073 = vmatprep.subr.mxu0 0.0
  %1074 = vmatpush2.msra.mxu0 0.0
  %1075 = vmatprep.subr.mxu0 0.0
  %1076 = vmatpush2.msra.mxu0 0.0
  %1077 = vmatprep.subr.mxu0 0.0
  %1078 = vmatpush2.msra.mxu0 0.0
  %1079 = vmatprep.subr.mxu0 0.0
  %1080 = vmatpush2.msra.mxu0 0.0
  %1081 = vmatprep.subr.mxu0 0.0
  %1082 = vmatpush2.msra.mxu0 0.0
  %1083 = vmatprep.subr.mxu0 0.0
  %1084 = vmatpush2.msra.mxu0 0.0
  %1085 = vmatprep.subr.mxu0 0.0
  %1086 = vmatpush2.msra.mxu0 0.0
  %1087 = vmatprep.subr.mxu0 0.0
  %1088 = vmatpush2.msra.mxu0 0.0
  %1089 = vmatprep.subr.mxu0 0.0
  %1090 = vmatpush2.msra.mxu0 0.0
  %1091 = vmatprep.subr.mxu0 0.0
  %1092 = vmatpush2.msra.mxu0 0.0
  %1093 = vmatprep.subr.mxu0 0.0
  %1094 = vmatpush2.msra.mxu0 0.0
  %1095 = vmatprep.subr.mxu0 0.0
  %1096 = vmatpush2.msra.mxu0 0.0
  %1097 = vmatprep.mubr.f32.mxu0 0.0
  %1098 = vmatmul.mubr.f32.gmra.mxu0 %v1031
  %v1099 = vpop.f32.mrf.mxu0
  %v1100 = vadd.f32 %v414, %v1099
  %v1101 = vpop.f32.mrf.mxu0
  %1102 = vdwg.mxu0
  %v1103 = vadd.f32 %v1027, %v1100
  %v1104 = vxor.u32 %v1103, 2147483648
  %v1105 = vmul.f32 %v1104, 1.442695
  %v1106 = vpow.pop %v1105
  %v1107 = vadd.f32 %v1106, 1.0
  %v1108 = vrcp.pop %v1107
  %v1109 = vmul.f32 1.0, %v1108
  %1111 = vrot.lane.b32.xlu0 %v1100, 64
  %v1112 = vpop.permute.xlu0 %1111
  %v1114 = vmul.f32 %v1109, %v1112
  %1116 = vrot.lane.b32.xlu0 %v1114, 64
  %v1117 = vpop.permute.xlu0 %1116
  %v1119 = vadd.f32 %v1027, %v1117
  %v1120 = vtanh.pop %v1119
  %v1121 = vsub.f32 1.0, %v1109
  %1123 = vrot.lane.b32.xlu0 %v1120, 96
  %v1124 = vpop.permute.xlu0 %1123
  %v1126 = vmul.f32 %v1121, %v1124
  %v1127 = vmul.f32 %v1109, %v1026
  %v1128 = vadd.f32 %v1126, %v1127
  %v1129 = vadd.f32 %v306, %v375
  %1131 = vrot.lane.b32.xlu0 %v1128, 96
  %v1132 = vpop.permute.xlu0 %1131
  %v1133 = vsel %vm417, %v1132, 0
  %1135 = vmatprep.subr.mxu0 0.0
  %1136 = vmatpush1.msra.mxu0 0.0
  %1137 = vmatprep.subr.mxu0 0.0
  %1138 = vmatpush1.msra.mxu0 0.0
  %1139 = vmatprep.subr.mxu0 0.0
  %1140 = vmatpush1.msra.mxu0 0.0
  %1141 = vmatprep.subr.mxu0 0.0
  %1142 = vmatpush1.msra.mxu0 0.0
  %1143 = vmatprep.subr.mxu0 0.0
  %1144 = vmatpush1.msra.mxu0 0.0
  %1145 = vmatprep.subr.mxu0 0.0
  %1146 = vmatpush1.msra.mxu0 0.0
  %1147 = vmatprep.subr.mxu0 0.0
  %1148 = vmatpush1.msra.mxu0 0.0
  %1149 = vmatprep.subr.mxu0 0.0
  %1150 = vmatpush1.msra.mxu0 0.0
  %1151 = vmatprep.subr.mxu0 0.0
  %1152 = vmatpush1.msra.mxu0 0.0
  %1153 = vmatprep.subr.mxu0 0.0
  %1154 = vmatpush1.msra.mxu0 0.0
  %1155 = vmatprep.subr.mxu0 0.0
  %1156 = vmatpush1.msra.mxu0 0.0
  %1157 = vmatprep.subr.mxu0 0.0
  %1158 = vmatpush1.msra.mxu0 0.0
  %1159 = vmatprep.subr.mxu0 0.0
  %1160 = vmatpush1.msra.mxu0 %v408
  %1161 = vmatprep.subr.mxu0 0.0
  %1162 = vmatpush1.msra.mxu0 %v407
  %1163 = vmatprep.subr.mxu0 0.0
  %1164 = vmatpush1.msra.mxu0 %v406
  %1165 = vmatprep.subr.mxu0 0.0
  %1166 = vmatpush1.msra.mxu0 %v405
  %1167 = vmatprep.subr.mxu0 0.0
  %1168 = vmatpush2.msra.mxu0 0.0
  %1169 = vmatprep.subr.mxu0 0.0
  %1170 = vmatpush2.msra.mxu0 0.0
  %1171 = vmatprep.subr.mxu0 0.0
  %1172 = vmatpush2.msra.mxu0 0.0
  %1173 = vmatprep.subr.mxu0 0.0
  %1174 = vmatpush2.msra.mxu0 0.0
  %1175 = vmatprep.subr.mxu0 0.0
  %1176 = vmatpush2.msra.mxu0 0.0
  %1177 = vmatprep.subr.mxu0 0.0
  %1178 = vmatpush2.msra.mxu0 0.0
  %1179 = vmatprep.subr.mxu0 0.0
  %1180 = vmatpush2.msra.mxu0 0.0
  %1181 = vmatprep.subr.mxu0 0.0
  %1182 = vmatpush2.msra.mxu0 0.0
  %1183 = vmatprep.subr.mxu0 0.0
  %1184 = vmatpush2.msra.mxu0 0.0
  %1185 = vmatprep.subr.mxu0 0.0
  %1186 = vmatpush2.msra.mxu0 0.0
  %1187 = vmatprep.subr.mxu0 0.0
  %1188 = vmatpush2.msra.mxu0 0.0
  %1189 = vmatprep.subr.mxu0 0.0
  %1190 = vmatpush2.msra.mxu0 0.0
  %1191 = vmatprep.subr.mxu0 0.0
  %1192 = vmatpush2.msra.mxu0 0.0
  %1193 = vmatprep.subr.mxu0 0.0
  %1194 = vmatpush2.msra.mxu0 0.0
  %1195 = vmatprep.subr.mxu0 0.0
  %1196 = vmatpush2.msra.mxu0 0.0
  %1197 = vmatprep.subr.mxu0 0.0
  %1198 = vmatpush2.msra.mxu0 0.0
  %1199 = vmatprep.mubr.f32.mxu0 0.0
  %1200 = vmatmul.mubr.f32.gmra.mxu0 %v1133
  %v1201 = vpop.f32.mrf.mxu0
  %v1202 = vadd.f32 %v414, %v1201
  %v1203 = vpop.f32.mrf.mxu0
  %1204 = vdwg.mxu0
  %v1205 = vadd.f32 %v1129, %v1202
  %v1206 = vxor.u32 %v1205, 2147483648
  %v1207 = vmul.f32 %v1206, 1.442695
  %v1208 = vpow.pop %v1207
  %v1209 = vadd.f32 %v1208, 1.0
  %v1210 = vrcp.pop %v1209
  %v1211 = vmul.f32 1.0, %v1210
  %1213 = vrot.lane.b32.xlu0 %v1202, 64
  %v1214 = vpop.permute.xlu0 %1213
  %v1216 = vmul.f32 %v1211, %v1214
  %1218 = vrot.lane.b32.xlu0 %v1216, 64
  %v1219 = vpop.permute.xlu0 %1218
  %v1221 = vadd.f32 %v1129, %v1219
  %v1222 = vtanh.pop %v1221
  %v1223 = vsub.f32 1.0, %v1211
  %1225 = vrot.lane.b32.xlu0 %v1222, 96
  %v1226 = vpop.permute.xlu0 %1225
  %v1228 = vmul.f32 %v1223, %v1226
  %v1229 = vmul.f32 %v1211, %v1128
  %v1230 = vadd.f32 %v1228, %v1229
  %v1231 = vadd.f32 %v311, %v370
  %1233 = vrot.lane.b32.xlu0 %v1230, 96
  %v1234 = vpop.permute.xlu0 %1233
  %v1235 = vsel %vm417, %v1234, 0
  %1237 = vmatprep.subr.mxu0 0.0
  %1238 = vmatpush1.msra.mxu0 0.0
  %1239 = vmatprep.subr.mxu0 0.0
  %1240 = vmatpush1.msra.mxu0 0.0
  %1241 = vmatprep.subr.mxu0 0.0
  %1242 = vmatpush1.msra.mxu0 0.0
  %1243 = vmatprep.subr.mxu0 0.0
  %1244 = vmatpush1.msra.mxu0 0.0
  %1245 = vmatprep.subr.mxu0 0.0
  %1246 = vmatpush1.msra.mxu0 0.0
  %1247 = vmatprep.subr.mxu0 0.0
  %1248 = vmatpush1.msra.mxu0 0.0
  %1249 = vmatprep.subr.mxu0 0.0
  %1250 = vmatpush1.msra.mxu0 0.0
  %1251 = vmatprep.subr.mxu0 0.0
  %1252 = vmatpush1.msra.mxu0 0.0
  %1253 = vmatprep.subr.mxu0 0.0
  %1254 = vmatpush1.msra.mxu0 0.0
  %1255 = vmatprep.subr.mxu0 0.0
  %1256 = vmatpush1.msra.mxu0 0.0
  %1257 = vmatprep.subr.mxu0 0.0
  %1258 = vmatpush1.msra.mxu0 0.0
  %1259 = vmatprep.subr.mxu0 0.0
  %1260 = vmatpush1.msra.mxu0 0.0
  %1261 = vmatprep.subr.mxu0 0.0
  %1262 = vmatpush1.msra.mxu0 %v408
  %1263 = vmatprep.subr.mxu0 0.0
  %1264 = vmatpush1.msra.mxu0 %v407
  %1265 = vmatprep.subr.mxu0 0.0
  %1266 = vmatpush1.msra.mxu0 %v406
  %1267 = vmatprep.subr.mxu0 0.0
  %1268 = vmatpush1.msra.mxu0 %v405
  %1269 = vmatprep.subr.mxu0 0.0
  %1270 = vmatpush2.msra.mxu0 0.0
  %1271 = vmatprep.subr.mxu0 0.0
  %1272 = vmatpush2.msra.mxu0 0.0
  %1273 = vmatprep.subr.mxu0 0.0
  %1274 = vmatpush2.msra.mxu0 0.0
  %1275 = vmatprep.subr.mxu0 0.0
  %1276 = vmatpush2.msra.mxu0 0.0
  %1277 = vmatprep.subr.mxu0 0.0
  %1278 = vmatpush2.msra.mxu0 0.0
  %1279 = vmatprep.subr.mxu0 0.0
  %1280 = vmatpush2.msra.mxu0 0.0
  %1281 = vmatprep.subr.mxu0 0.0
  %1282 = vmatpush2.msra.mxu0 0.0
  %1283 = vmatprep.subr.mxu0 0.0
  %1284 = vmatpush2.msra.mxu0 0.0
  %1285 = vmatprep.subr.mxu0 0.0
  %1286 = vmatpush2.msra.mxu0 0.0
  %1287 = vmatprep.subr.mxu0 0.0
  %1288 = vmatpush2.msra.mxu0 0.0
  %1289 = vmatprep.subr.mxu0 0.0
  %1290 = vmatpush2.msra.mxu0 0.0
  %1291 = vmatprep.subr.mxu0 0.0
  %1292 = vmatpush2.msra.mxu0 0.0
  %1293 = vmatprep.subr.mxu0 0.0
  %1294 = vmatpush2.msra.mxu0 0.0
  %1295 = vmatprep.subr.mxu0 0.0
  %1296 = vmatpush2.msra.mxu0 0.0
  %1297 = vmatprep.subr.mxu0 0.0
  %1298 = vmatpush2.msra.mxu0 0.0
  %1299 = vmatprep.subr.mxu0 0.0
  %1300 = vmatpush2.msra.mxu0 0.0
  %1301 = vmatprep.mubr.f32.mxu0 0.0
  %1302 = vmatmul.mubr.f32.gmra.mxu0 %v1235
  %v1303 = vpop.f32.mrf.mxu0
  %v1304 = vadd.f32 %v414, %v1303
  %v1305 = vpop.f32.mrf.mxu0
  %1306 = vdwg.mxu0
  %v1307 = vadd.f32 %v1231, %v1304
  %v1308 = vxor.u32 %v1307, 2147483648
  %v1309 = vmul.f32 %v1308, 1.442695
  %v1310 = vpow.pop %v1309
  %v1311 = vadd.f32 %v1310, 1.0
  %v1312 = vrcp.pop %v1311
  %v1313 = vmul.f32 1.0, %v1312
  %1315 = vrot.lane.b32.xlu0 %v1304, 64
  %v1316 = vpop.permute.xlu0 %1315
  %v1318 = vmul.f32 %v1313, %v1316
  %1320 = vrot.lane.b32.xlu0 %v1318, 64
  %v1321 = vpop.permute.xlu0 %1320
  %v1323 = vadd.f32 %v1231, %v1321
  %v1324 = vtanh.pop %v1323
  %v1325 = vsub.f32 1.0, %v1313
  %1327 = vrot.lane.b32.xlu0 %v1324, 96
  %v1328 = vpop.permute.xlu0 %1327
  %v1330 = vmul.f32 %v1325, %v1328
  %v1331 = vmul.f32 %v1313, %v1230
  %v1332 = vadd.f32 %v1330, %v1331
  %v1333 = vadd.f32 %v314, %v367
  %1335 = vrot.lane.b32.xlu0 %v1332, 96
  %v1336 = vpop.permute.xlu0 %1335
  %v1337 = vsel %vm417, %v1336, 0
  %1339 = vmatprep.subr.mxu0 0.0
  %1340 = vmatpush1.msra.mxu0 0.0
  %1341 = vmatprep.subr.mxu0 0.0
  %1342 = vmatpush1.msra.mxu0 0.0
  %1343 = vmatprep.subr.mxu0 0.0
  %1344 = vmatpush1.msra.mxu0 0.0
  %1345 = vmatprep.subr.mxu0 0.0
  %1346 = vmatpush1.msra.mxu0 0.0
  %1347 = vmatprep.subr.mxu0 0.0
  %1348 = vmatpush1.msra.mxu0 0.0
  %1349 = vmatprep.subr.mxu0 0.0
  %1350 = vmatpush1.msra.mxu0 0.0
  %1351 = vmatprep.subr.mxu0 0.0
  %1352 = vmatpush1.msra.mxu0 0.0
  %1353 = vmatprep.subr.mxu0 0.0
  %1354 = vmatpush1.msra.mxu0 0.0
  %1355 = vmatprep.subr.mxu0 0.0
  %1356 = vmatpush1.msra.mxu0 0.0
  %1357 = vmatprep.subr.mxu0 0.0
  %1358 = vmatpush1.msra.mxu0 0.0
  %1359 = vmatprep.subr.mxu0 0.0
  %1360 = vmatpush1.msra.mxu0 0.0
  %1361 = vmatprep.subr.mxu0 0.0
  %1362 = vmatpush1.msra.mxu0 0.0
  %1363 = vmatprep.subr.mxu0 0.0
  %1364 = vmatpush1.msra.mxu0 %v408
  %1365 = vmatprep.subr.mxu0 0.0
  %1366 = vmatpush1.msra.mxu0 %v407
  %1367 = vmatprep.subr.mxu0 0.0
  %1368 = vmatpush1.msra.mxu0 %v406
  %1369 = vmatprep.subr.mxu0 0.0
  %1370 = vmatpush1.msra.mxu0 %v405
  %1371 = vmatprep.subr.mxu0 0.0
  %1372 = vmatpush2.msra.mxu0 0.0
  %1373 = vmatprep.subr.mxu0 0.0
  %1374 = vmatpush2.msra.mxu0 0.0
  %1375 = vmatprep.subr.mxu0 0.0
  %1376 = vmatpush2.msra.mxu0 0.0
  %1377 = vmatprep.subr.mxu0 0.0
  %1378 = vmatpush2.msra.mxu0 0.0
  %1379 = vmatprep.subr.mxu0 0.0
  %1380 = vmatpush2.msra.mxu0 0.0
  %1381 = vmatprep.subr.mxu0 0.0
  %1382 = vmatpush2.msra.mxu0 0.0
  %1383 = vmatprep.subr.mxu0 0.0
  %1384 = vmatpush2.msra.mxu0 0.0
  %1385 = vmatprep.subr.mxu0 0.0
  %1386 = vmatpush2.msra.mxu0 0.0
  %1387 = vmatprep.subr.mxu0 0.0
  %1388 = vmatpush2.msra.mxu0 0.0
  %1389 = vmatprep.subr.mxu0 0.0
  %1390 = vmatpush2.msra.mxu0 0.0
  %1391 = vmatprep.subr.mxu0 0.0
  %1392 = vmatpush2.msra.mxu0 0.0
  %1393 = vmatprep.subr.mxu0 0.0
  %1394 = vmatpush2.msra.mxu0 0.0
  %1395 = vmatprep.subr.mxu0 0.0
  %1396 = vmatpush2.msra.mxu0 0.0
  %1397 = vmatprep.subr.mxu0 0.0
  %1398 = vmatpush2.msra.mxu0 0.0
  %1399 = vmatprep.subr.mxu0 0.0
  %1400 = vmatpush2.msra.mxu0 0.0
  %1401 = vmatprep.subr.mxu0 0.0
  %1402 = vmatpush2.msra.mxu0 0.0
  %1403 = vmatprep.mubr.f32.mxu0 0.0
  %1404 = vmatmul.mubr.f32.gmra.mxu0 %v1337
  %v1405 = vpop.f32.mrf.mxu0
  %v1406 = vadd.f32 %v414, %v1405
  %v1407 = vpop.f32.mrf.mxu0
  %1408 = vdwg.mxu0
  %v1409 = vadd.f32 %v1333, %v1406
  %v1410 = vxor.u32 %v1409, 2147483648
  %v1411 = vmul.f32 %v1410, 1.442695
  %v1412 = vpow.pop %v1411
  %v1413 = vadd.f32 %v1412, 1.0
  %v1414 = vrcp.pop %v1413
  %v1415 = vmul.f32 1.0, %v1414
  %1417 = vrot.lane.b32.xlu0 %v1406, 64
  %v1418 = vpop.permute.xlu0 %1417
  %v1420 = vmul.f32 %v1415, %v1418
  %1422 = vrot.lane.b32.xlu0 %v1420, 64
  %v1423 = vpop.permute.xlu0 %1422
  %v1425 = vadd.f32 %v1333, %v1423
  %v1426 = vtanh.pop %v1425
  %v1427 = vsub.f32 1.0, %v1415
  %1429 = vrot.lane.b32.xlu0 %v1426, 96
  %v1430 = vpop.permute.xlu0 %1429
  %v1432 = vmul.f32 %v1427, %v1430
  %v1433 = vmul.f32 %v1415, %v1332
  %v1434 = vadd.f32 %v1432, %v1433
  %v1435 = vld [vmem:[%s1] sm:$0xf]
  %v1436 = vld [vmem:[%s1 + $0x4] sm:$0xf]
  %v1437 = vld [vmem:[%s1 + $0x8] sm:$0xf]
  %v1438 = vld [vmem:[%s1 + $0xc] sm:$0xf]
  %v1439 = vld [vmem:[%s1 + $0x10] sm:$0xf]
  %v1440 = vld [vmem:[%s1 + $0x14] sm:$0xf]
  %v1441 = vld [vmem:[%s1 + $0x18] sm:$0xf]
  %v1442 = vld [vmem:[%s1 + $0x1c] sm:$0xf]
  %v1443 = vld [vmem:[%s10] sm:$0xf]
  %v1444 = vld [vmem:[%s10 + $0x4] sm:$0xf]
  %v1445 = vld [vmem:[%s11] sm:$0x1]
  %v1447 = vlaneseq
  %v1448 = vshrl.u32 %v1447, 7
  %v1449 = vsub.s32 0, %v1448
  %v1450 = vrot.slane %v1445, %v1449
  %v1460 = vunpack.c.l.b16 %v1435
  %v1461 = vunpack.c.l.b16 %v1436
  %v1462 = vunpack.c.l.b16 %v1437
  %v1463 = vunpack.c.l.b16 %v1438
  %v1464 = vunpack.c.l.b16 %v1439
  %v1465 = vunpack.c.l.b16 %v1440
  %v1466 = vunpack.c.l.b16 %v1441
  %v1467 = vunpack.c.l.b16 %v1442
  %v1468 = vpack.c.b16 %v1461, %v1460
  %v1469 = vpack.c.b16 %v1463, %v1462
  %v1470 = vpack.c.b16 %v1465, %v1464
  %v1471 = vpack.c.b16 %v1467, %v1466
  %v1474 = vunpack.c.l.b16 %v1443
  %v1475 = vunpack.c.l.b16 %v1444
  %v1476 = vpack.c.b16 %v1475, %v1474
  %v1479 = vsel %vm228, %v1468, 0
  %v1482 = vsel %vm228, %v1469, 0
  %v1485 = vsel %vm228, %v1470, 0
  %v1488 = vsel %vm228, %v1471, 0
  %1490 = vmatprep.subr.bf16.mxu0 0
  %1491 = vmatpush1.bf16.msra.mxu0 0
  %1492 = vmatprep.subr.bf16.mxu0 0
  %1493 = vmatpush1.bf16.msra.mxu0 0
  %1494 = vmatprep.subr.bf16.mxu0 0
  %1495 = vmatpush1.bf16.msra.mxu0 0
  %1496 = vmatprep.subr.bf16.mxu0 0
  %1497 = vmatpush1.bf16.msra.mxu0 0
  %1498 = vmatprep.subr.bf16.mxu0 0
  %1499 = vmatpush1.bf16.msra.mxu0 0
  %1500 = vmatprep.subr.bf16.mxu0 0
  %1501 = vmatpush1.bf16.msra.mxu0 0
  %1502 = vmatprep.subr.bf16.mxu0 0
  %1503 = vmatpush1.bf16.msra.mxu0 0
  %1504 = vmatprep.subr.bf16.mxu0 0
  %1505 = vmatpush1.bf16.msra.mxu0 %v1476
  %1506 = vmatprep.subr.bf16.mxu0 0
  %1507 = vmatpush2.bf16.msra.mxu0 0
  %1508 = vmatprep.subr.bf16.mxu0 0
  %1509 = vmatpush2.bf16.msra.mxu0 0
  %1510 = vmatprep.subr.bf16.mxu0 0
  %1511 = vmatpush2.bf16.msra.mxu0 0
  %1512 = vmatprep.subr.bf16.mxu0 0
  %1513 = vmatpush2.bf16.msra.mxu0 0
  %1514 = vmatprep.subr.bf16.mxu0 0
  %1515 = vmatpush2.bf16.msra.mxu0 0
  %1516 = vmatprep.subr.bf16.mxu0 0
  %1517 = vmatpush2.bf16.msra.mxu0 0
  %1518 = vmatprep.subr.bf16.mxu0 0
  %1519 = vmatpush2.bf16.msra.mxu0 0
  %1520 = vmatprep.subr.bf16.mxu0 0
  %1521 = vmatpush2.bf16.msra.mxu0 0
  %1522 = vmatprep.mubr.bf16.mxu0 0
  %1523 = vmatmul.mubr.bf16.gmra.mxu0 %v1479
  %v1524 = vpop.f32.mrf.mxu0
  %v1525 = vadd.f32 %v1450, %v1524
  %v1526 = vpop.f32.mrf.mxu0
  %v1527 = vpop.f32.mrf.mxu0
  %v1528 = vadd.f32 %v1450, %v1527
  %v1529 = vpop.f32.mrf.mxu0
  %1530 = vmatprep.mubr.bf16.mxu0 0
  %1531 = vmatmul.mubr.bf16.gmra.mxu0 %v1482
  %v1532 = vpop.f32.mrf.mxu0
  %v1533 = vadd.f32 %v1450, %v1532
  %v1534 = vpop.f32.mrf.mxu0
  %v1535 = vpop.f32.mrf.mxu0
  %v1536 = vadd.f32 %v1450, %v1535
  %v1537 = vpop.f32.mrf.mxu0
  %1538 = vmatprep.mubr.bf16.mxu0 0
  %1539 = vmatmul.mubr.bf16.gmra.mxu0 %v1485
  %v1540 = vpop.f32.mrf.mxu0
  %v1541 = vadd.f32 %v1450, %v1540
  %v1542 = vpop.f32.mrf.mxu0
  %v1543 = vpop.f32.mrf.mxu0
  %v1544 = vadd.f32 %v1450, %v1543
  %v1545 = vpop.f32.mrf.mxu0
  %1546 = vmatprep.mubr.bf16.mxu0 0
  %1547 = vmatmul.mubr.bf16.gmra.mxu0 %v1488
  %v1548 = vpop.f32.mrf.mxu0
  %v1549 = vadd.f32 %v1450, %v1548
  %v1550 = vpop.f32.mrf.mxu0
  %v1551 = vpop.f32.mrf.mxu0
  %v1552 = vadd.f32 %v1450, %v1551
  %v1553 = vpop.f32.mrf.mxu0
  %1554 = vdwg.mxu0
  %v1555 = vtanh.pop %v1525
  %v1556 = vtanh.pop %v1528
  %v1557 = vtanh.pop %v1533
  %v1558 = vtanh.pop %v1536
  %v1559 = vtanh.pop %v1541
  %v1560 = vtanh.pop %v1544
  %v1561 = vtanh.pop %v1549
  %v1562 = vtanh.pop %v1552
  %v1563 = vpack.c.bf16 %v1556, %v1555
  %v1564 = vpack.c.bf16 %v1558, %v1557
  %v1565 = vpack.c.bf16 %v1560, %v1559
  %v1566 = vpack.c.bf16 %v1562, %v1561
  %v1567 = vld [vmem:[%s12] sm:$0xf]
  %v1568 = vld [vmem:[%s12 + $0x4] sm:$0xf]
  %v1569 = vld [vmem:[%s13] sm:$0x1]
  %v1571 = vlaneseq
  %v1572 = vshrl.u32 %v1571, 7
  %v1573 = vsub.s32 0, %v1572
  %v1574 = vrot.slane %v1569, %v1573
  %v1578 = vunpack.c.l.b16 %v1567
  %v1579 = vunpack.c.l.b16 %v1568
  %v1580 = vpack.c.b16 %v1579, %v1578
  %v1583 = vsel %vm228, %v1563, 0
  %v1586 = vsel %vm228, %v1564, 0
  %v1589 = vsel %vm228, %v1565, 0
  %v1592 = vsel %vm228, %v1566, 0
  %1594 = vmatprep.subr.bf16.mxu0 0
  %1595 = vmatpush1.bf16.msra.mxu0 0
  %1596 = vmatprep.subr.bf16.mxu0 0
  %1597 = vmatpush1.bf16.msra.mxu0 0
  %1598 = vmatprep.subr.bf16.mxu0 0
  %1599 = vmatpush1.bf16.msra.mxu0 0
  %1600 = vmatprep.subr.bf16.mxu0 0
  %1601 = vmatpush1.bf16.msra.mxu0 0
  %1602 = vmatprep.subr.bf16.mxu0 0
  %1603 = vmatpush1.bf16.msra.mxu0 0
  %1604 = vmatprep.subr.bf16.mxu0 0
  %1605 = vmatpush1.bf16.msra.mxu0 0
  %1606 = vmatprep.subr.bf16.mxu0 0
  %1607 = vmatpush1.bf16.msra.mxu0 0
  %1608 = vmatprep.subr.bf16.mxu0 0
  %1609 = vmatpush1.bf16.msra.mxu0 %v1580
  %1610 = vmatprep.subr.bf16.mxu0 0
  %1611 = vmatpush2.bf16.msra.mxu0 0
  %1612 = vmatprep.subr.bf16.mxu0 0
  %1613 = vmatpush2.bf16.msra.mxu0 0
  %1614 = vmatprep.subr.bf16.mxu0 0
  %1615 = vmatpush2.bf16.msra.mxu0 0
  %1616 = vmatprep.subr.bf16.mxu0 0
  %1617 = vmatpush2.bf16.msra.mxu0 0
  %1618 = vmatprep.subr.bf16.mxu0 0
  %1619 = vmatpush2.bf16.msra.mxu0 0
  %1620 = vmatprep.subr.bf16.mxu0 0
  %1621 = vmatpush2.bf16.msra.mxu0 0
  %1622 = vmatprep.subr.bf16.mxu0 0
  %1623 = vmatpush2.bf16.msra.mxu0 0
  %1624 = vmatprep.subr.bf16.mxu0 0
  %1625 = vmatpush2.bf16.msra.mxu0 0
  %1626 = vmatprep.mubr.bf16.mxu0 0
  %1627 = vmatmul.mubr.bf16.gmra.mxu0 %v1583
  %v1628 = vpop.f32.mrf.mxu0
  %v1629 = vadd.f32 %v1574, %v1628
  %v1630 = vpop.f32.mrf.mxu0
  %v1631 = vpop.f32.mrf.mxu0
  %v1632 = vadd.f32 %v1574, %v1631
  %v1633 = vpop.f32.mrf.mxu0
  %1634 = vmatprep.mubr.bf16.mxu0 0
  %1635 = vmatmul.mubr.bf16.gmra.mxu0 %v1586
  %v1636 = vpop.f32.mrf.mxu0
  %v1637 = vadd.f32 %v1574, %v1636
  %v1638 = vpop.f32.mrf.mxu0
  %v1639 = vpop.f32.mrf.mxu0
  %v1640 = vadd.f32 %v1574, %v1639
  %v1641 = vpop.f32.mrf.mxu0
  %1642 = vmatprep.mubr.bf16.mxu0 0
  %1643 = vmatmul.mubr.bf16.gmra.mxu0 %v1589
  %v1644 = vpop.f32.mrf.mxu0
  %v1645 = vadd.f32 %v1574, %v1644
  %v1646 = vpop.f32.mrf.mxu0
  %v1647 = vpop.f32.mrf.mxu0
  %v1648 = vadd.f32 %v1574, %v1647
  %v1649 = vpop.f32.mrf.mxu0
  %1650 = vmatprep.mubr.bf16.mxu0 0
  %1651 = vmatmul.mubr.bf16.gmra.mxu0 %v1592
  %v1652 = vpop.f32.mrf.mxu0
  %v1653 = vadd.f32 %v1574, %v1652
  %v1654 = vpop.f32.mrf.mxu0
  %v1655 = vpop.f32.mrf.mxu0
  %v1656 = vadd.f32 %v1574, %v1655
  %v1657 = vpop.f32.mrf.mxu0
  %1658 = vdwg.mxu0
  %v1659 = vld [vmem:[%s14] sm:$0xff]
  %v1660 = vld [vmem:[%s14 + $0x8] sm:$0xff]
  %v1661 = vld [vmem:[%s14 + $0x10] sm:$0xff]
  %v1662 = vld [vmem:[%s14 + $0x18] sm:$0xff]
  %v1663 = vld [vmem:[%s15] sm:$0x1]
  %v1665 = vlaneseq
  %v1666 = vshrl.u32 %v1665, 7
  %v1667 = vsub.s32 0, %v1666
  %v1668 = vrot.slane %v1663, %v1667
  %1670 = vmatprep.subr.mxu0 0.0
  %1671 = vmatpush1.msra.mxu0 0.0
  %1672 = vmatprep.subr.mxu0 0.0
  %1673 = vmatpush1.msra.mxu0 0.0
  %1674 = vmatprep.subr.mxu0 0.0
  %1675 = vmatpush1.msra.mxu0 0.0
  %1676 = vmatprep.subr.mxu0 0.0
  %1677 = vmatpush1.msra.mxu0 0.0
  %1678 = vmatprep.subr.mxu0 0.0
  %1679 = vmatpush1.msra.mxu0 0.0
  %1680 = vmatprep.subr.mxu0 0.0
  %1681 = vmatpush1.msra.mxu0 0.0
  %1682 = vmatprep.subr.mxu0 0.0
  %1683 = vmatpush1.msra.mxu0 0.0
  %1684 = vmatprep.subr.mxu0 0.0
  %1685 = vmatpush1.msra.mxu0 0.0
  %1686 = vmatprep.subr.mxu0 0.0
  %1687 = vmatpush1.msra.mxu0 0.0
  %1688 = vmatprep.subr.mxu0 0.0
  %1689 = vmatpush1.msra.mxu0 0.0
  %1690 = vmatprep.subr.mxu0 0.0
  %1691 = vmatpush1.msra.mxu0 0.0
  %1692 = vmatprep.subr.mxu0 0.0
  %1693 = vmatpush1.msra.mxu0 0.0
  %1694 = vmatprep.subr.mxu0 0.0
  %1695 = vmatpush1.msra.mxu0 %v1662
  %1696 = vmatprep.subr.mxu0 0.0
  %1697 = vmatpush1.msra.mxu0 %v1661
  %1698 = vmatprep.subr.mxu0 0.0
  %1699 = vmatpush1.msra.mxu0 %v1660
  %1700 = vmatprep.subr.mxu0 0.0
  %1701 = vmatpush1.msra.mxu0 %v1659
  %1702 = vmatprep.subr.mxu0 0.0
  %1703 = vmatpush2.msra.mxu0 0.0
  %1704 = vmatprep.subr.mxu0 0.0
  %1705 = vmatpush2.msra.mxu0 0.0
  %1706 = vmatprep.subr.mxu0 0.0
  %1707 = vmatpush2.msra.mxu0 0.0
  %1708 = vmatprep.subr.mxu0 0.0
  %1709 = vmatpush2.msra.mxu0 0.0
  %1710 = vmatprep.subr.mxu0 0.0
  %1711 = vmatpush2.msra.mxu0 0.0
  %1712 = vmatprep.subr.mxu0 0.0
  %1713 = vmatpush2.msra.mxu0 0.0
  %1714 = vmatprep.subr.mxu0 0.0
  %1715 = vmatpush2.msra.mxu0 0.0
  %1716 = vmatprep.subr.mxu0 0.0
  %1717 = vmatpush2.msra.mxu0 0.0
  %1718 = vmatprep.subr.mxu0 0.0
  %1719 = vmatpush2.msra.mxu0 0.0
  %1720 = vmatprep.subr.mxu0 0.0
  %1721 = vmatpush2.msra.mxu0 0.0
  %1722 = vmatprep.subr.mxu0 0.0
  %1723 = vmatpush2.msra.mxu0 0.0
  %1724 = vmatprep.subr.mxu0 0.0
  %1725 = vmatpush2.msra.mxu0 0.0
  %1726 = vmatprep.subr.mxu0 0.0
  %1727 = vmatpush2.msra.mxu0 0.0
  %1728 = vmatprep.subr.mxu0 0.0
  %1729 = vmatpush2.msra.mxu0 0.0
  %1730 = vmatprep.subr.mxu0 0.0
  %1731 = vmatpush2.msra.mxu0 0.0
  %1732 = vmatprep.subr.mxu0 0.0
  %1733 = vmatpush2.msra.mxu0 0.0
  %1734 = vmatprep.mubr.f32.mxu0 0.0
  %1735 = vmatmul.mubr.f32.gmra.mxu0 %v419
  %v1736 = vpop.f32.mrf.mxu0
  %v1737 = vadd.f32 %v1668, %v1736
  %v1738 = vpop.f32.mrf.mxu0
  %1739 = vdwg.mxu0
  %v1740 = vadd.f32 %v1629, %v1737
  %v1741 = vxor.u32 %v1740, 2147483648
  %v1742 = vmul.f32 %v1741, 1.442695
  %v1743 = vpow.pop %v1742
  %v1744 = vadd.f32 %v1743, 1.0
  %v1745 = vrcp.pop %v1744
  %v1746 = vmul.f32 1.0, %v1745
  %1748 = vrot.lane.b32.xlu0 %v1737, 64
  %v1749 = vpop.permute.xlu0 %1748
  %v1751 = vmul.f32 %v1746, %v1749
  %1753 = vrot.lane.b32.xlu0 %v1751, 64
  %v1754 = vpop.permute.xlu0 %1753
  %v1756 = vadd.f32 %v1629, %v1754
  %v1757 = vtanh.pop %v1756
  %v1758 = vsub.f32 1.0, %v1746
  %1760 = vrot.lane.b32.xlu0 %v1757, 96
  %v1761 = vpop.permute.xlu0 %1760
  %v1763 = vmul.f32 %v1758, %v1761
  %v1764 = vmul.f32 %v1746, 0.0
  %v1765 = vadd.f32 %v1763, %v1764
  %1767 = vrot.lane.b32.xlu0 %v1765, 96
  %v1768 = vpop.permute.xlu0 %1767
  %v1769 = vsel %vm417, %v1768, 0
  %1771 = vmatprep.subr.mxu0 0.0
  %1772 = vmatpush1.msra.mxu0 0.0
  %1773 = vmatprep.subr.mxu0 0.0
  %1774 = vmatpush1.msra.mxu0 0.0
  %1775 = vmatprep.subr.mxu0 0.0
  %1776 = vmatpush1.msra.mxu0 0.0
  %1777 = vmatprep.subr.mxu0 0.0
  %1778 = vmatpush1.msra.mxu0 0.0
  %1779 = vmatprep.subr.mxu0 0.0
  %1780 = vmatpush1.msra.mxu0 0.0
  %1781 = vmatprep.subr.mxu0 0.0
  %1782 = vmatpush1.msra.mxu0 0.0
  %1783 = vmatprep.subr.mxu0 0.0
  %1784 = vmatpush1.msra.mxu0 0.0
  %1785 = vmatprep.subr.mxu0 0.0
  %1786 = vmatpush1.msra.mxu0 0.0
  %1787 = vmatprep.subr.mxu0 0.0
  %1788 = vmatpush1.msra.mxu0 0.0
  %1789 = vmatprep.subr.mxu0 0.0
  %1790 = vmatpush1.msra.mxu0 0.0
  %1791 = vmatprep.subr.mxu0 0.0
  %1792 = vmatpush1.msra.mxu0 0.0
  %1793 = vmatprep.subr.mxu0 0.0
  %1794 = vmatpush1.msra.mxu0 0.0
  %1795 = vmatprep.subr.mxu0 0.0
  %1796 = vmatpush1.msra.mxu0 %v1662
  %1797 = vmatprep.subr.mxu0 0.0
  %1798 = vmatpush1.msra.mxu0 %v1661
  %1799 = vmatprep.subr.mxu0 0.0
  %1800 = vmatpush1.msra.mxu0 %v1660
  %1801 = vmatprep.subr.mxu0 0.0
  %1802 = vmatpush1.msra.mxu0 %v1659
  %1803 = vmatprep.subr.mxu0 0.0
  %1804 = vmatpush2.msra.mxu0 0.0
  %1805 = vmatprep.subr.mxu0 0.0
  %1806 = vmatpush2.msra.mxu0 0.0
  %1807 = vmatprep.subr.mxu0 0.0
  %1808 = vmatpush2.msra.mxu0 0.0
  %1809 = vmatprep.subr.mxu0 0.0
  %1810 = vmatpush2.msra.mxu0 0.0
  %1811 = vmatprep.subr.mxu0 0.0
  %1812 = vmatpush2.msra.mxu0 0.0
  %1813 = vmatprep.subr.mxu0 0.0
  %1814 = vmatpush2.msra.mxu0 0.0
  %1815 = vmatprep.subr.mxu0 0.0
  %1816 = vmatpush2.msra.mxu0 0.0
  %1817 = vmatprep.subr.mxu0 0.0
  %1818 = vmatpush2.msra.mxu0 0.0
  %1819 = vmatprep.subr.mxu0 0.0
  %1820 = vmatpush2.msra.mxu0 0.0
  %1821 = vmatprep.subr.mxu0 0.0
  %1822 = vmatpush2.msra.mxu0 0.0
  %1823 = vmatprep.subr.mxu0 0.0
  %1824 = vmatpush2.msra.mxu0 0.0
  %1825 = vmatprep.subr.mxu0 0.0
  %1826 = vmatpush2.msra.mxu0 0.0
  %1827 = vmatprep.subr.mxu0 0.0
  %1828 = vmatpush2.msra.mxu0 0.0
  %1829 = vmatprep.subr.mxu0 0.0
  %1830 = vmatpush2.msra.mxu0 0.0
  %1831 = vmatprep.subr.mxu0 0.0
  %1832 = vmatpush2.msra.mxu0 0.0
  %1833 = vmatprep.subr.mxu0 0.0
  %1834 = vmatpush2.msra.mxu0 0.0
  %1835 = vmatprep.mubr.f32.mxu0 0.0
  %1836 = vmatmul.mubr.f32.gmra.mxu0 %v1769
  %v1837 = vpop.f32.mrf.mxu0
  %v1838 = vadd.f32 %v1668, %v1837
  %v1839 = vpop.f32.mrf.mxu0
  %1840 = vdwg.mxu0
  %v1841 = vadd.f32 %v1632, %v1838
  %v1842 = vxor.u32 %v1841, 2147483648
  %v1843 = vmul.f32 %v1842, 1.442695
  %v1844 = vpow.pop %v1843
  %v1845 = vadd.f32 %v1844, 1.0
  %v1846 = vrcp.pop %v1845
  %v1847 = vmul.f32 1.0, %v1846
  %1849 = vrot.lane.b32.xlu0 %v1838, 64
  %v1850 = vpop.permute.xlu0 %1849
  %v1852 = vmul.f32 %v1847, %v1850
  %1854 = vrot.lane.b32.xlu0 %v1852, 64
  %v1855 = vpop.permute.xlu0 %1854
  %v1857 = vadd.f32 %v1632, %v1855
  %v1858 = vtanh.pop %v1857
  %v1859 = vsub.f32 1.0, %v1847
  %1861 = vrot.lane.b32.xlu0 %v1858, 96
  %v1862 = vpop.permute.xlu0 %1861
  %v1864 = vmul.f32 %v1859, %v1862
  %v1865 = vmul.f32 %v1847, %v1765
  %v1866 = vadd.f32 %v1864, %v1865
  %1868 = vrot.lane.b32.xlu0 %v1866, 96
  %v1869 = vpop.permute.xlu0 %1868
  %v1870 = vsel %vm417, %v1869, 0
  %1872 = vmatprep.subr.mxu0 0.0
  %1873 = vmatpush1.msra.mxu0 0.0
  %1874 = vmatprep.subr.mxu0 0.0
  %1875 = vmatpush1.msra.mxu0 0.0
  %1876 = vmatprep.subr.mxu0 0.0
  %1877 = vmatpush1.msra.mxu0 0.0
  %1878 = vmatprep.subr.mxu0 0.0
  %1879 = vmatpush1.msra.mxu0 0.0
  %1880 = vmatprep.subr.mxu0 0.0
  %1881 = vmatpush1.msra.mxu0 0.0
  %1882 = vmatprep.subr.mxu0 0.0
  %1883 = vmatpush1.msra.mxu0 0.0
  %1884 = vmatprep.subr.mxu0 0.0
  %1885 = vmatpush1.msra.mxu0 0.0
  %1886 = vmatprep.subr.mxu0 0.0
  %1887 = vmatpush1.msra.mxu0 0.0
  %1888 = vmatprep.subr.mxu0 0.0
  %1889 = vmatpush1.msra.mxu0 0.0
  %1890 = vmatprep.subr.mxu0 0.0
  %1891 = vmatpush1.msra.mxu0 0.0
  %1892 = vmatprep.subr.mxu0 0.0
  %1893 = vmatpush1.msra.mxu0 0.0
  %1894 = vmatprep.subr.mxu0 0.0
  %1895 = vmatpush1.msra.mxu0 0.0
  %1896 = vmatprep.subr.mxu0 0.0
  %1897 = vmatpush1.msra.mxu0 %v1662
  %1898 = vmatprep.subr.mxu0 0.0
  %1899 = vmatpush1.msra.mxu0 %v1661
  %1900 = vmatprep.subr.mxu0 0.0
  %1901 = vmatpush1.msra.mxu0 %v1660
  %1902 = vmatprep.subr.mxu0 0.0
  %1903 = vmatpush1.msra.mxu0 %v1659
  %1904 = vmatprep.subr.mxu0 0.0
  %1905 = vmatpush2.msra.mxu0 0.0
  %1906 = vmatprep.subr.mxu0 0.0
  %1907 = vmatpush2.msra.mxu0 0.0
  %1908 = vmatprep.subr.mxu0 0.0
  %1909 = vmatpush2.msra.mxu0 0.0
  %1910 = vmatprep.subr.mxu0 0.0
  %1911 = vmatpush2.msra.mxu0 0.0
  %1912 = vmatprep.subr.mxu0 0.0
  %1913 = vmatpush2.msra.mxu0 0.0
  %1914 = vmatprep.subr.mxu0 0.0
  %1915 = vmatpush2.msra.mxu0 0.0
  %1916 = vmatprep.subr.mxu0 0.0
  %1917 = vmatpush2.msra.mxu0 0.0
  %1918 = vmatprep.subr.mxu0 0.0
  %1919 = vmatpush2.msra.mxu0 0.0
  %1920 = vmatprep.subr.mxu0 0.0
  %1921 = vmatpush2.msra.mxu0 0.0
  %1922 = vmatprep.subr.mxu0 0.0
  %1923 = vmatpush2.msra.mxu0 0.0
  %1924 = vmatprep.subr.mxu0 0.0
  %1925 = vmatpush2.msra.mxu0 0.0
  %1926 = vmatprep.subr.mxu0 0.0
  %1927 = vmatpush2.msra.mxu0 0.0
  %1928 = vmatprep.subr.mxu0 0.0
  %1929 = vmatpush2.msra.mxu0 0.0
  %1930 = vmatprep.subr.mxu0 0.0
  %1931 = vmatpush2.msra.mxu0 0.0
  %1932 = vmatprep.subr.mxu0 0.0
  %1933 = vmatpush2.msra.mxu0 0.0
  %1934 = vmatprep.subr.mxu0 0.0
  %1935 = vmatpush2.msra.mxu0 0.0
  %1936 = vmatprep.mubr.f32.mxu0 0.0
  %1937 = vmatmul.mubr.f32.gmra.mxu0 %v1870
  %v1938 = vpop.f32.mrf.mxu0
  %v1939 = vadd.f32 %v1668, %v1938
  %v1940 = vpop.f32.mrf.mxu0
  %1941 = vdwg.mxu0
  %v1942 = vadd.f32 %v1637, %v1939
  %v1943 = vxor.u32 %v1942, 2147483648
  %v1944 = vmul.f32 %v1943, 1.442695
  %v1945 = vpow.pop %v1944
  %v1946 = vadd.f32 %v1945, 1.0
  %v1947 = vrcp.pop %v1946
  %v1948 = vmul.f32 1.0, %v1947
  %1950 = vrot.lane.b32.xlu0 %v1939, 64
  %v1951 = vpop.permute.xlu0 %1950
  %v1953 = vmul.f32 %v1948, %v1951
  %1955 = vrot.lane.b32.xlu0 %v1953, 64
  %v1956 = vpop.permute.xlu0 %1955
  %v1958 = vadd.f32 %v1637, %v1956
  %v1959 = vtanh.pop %v1958
  %v1960 = vsub.f32 1.0, %v1948
  %1962 = vrot.lane.b32.xlu0 %v1959, 96
  %v1963 = vpop.permute.xlu0 %1962
  %v1965 = vmul.f32 %v1960, %v1963
  %v1966 = vmul.f32 %v1948, %v1866
  %v1967 = vadd.f32 %v1965, %v1966
  %1969 = vrot.lane.b32.xlu0 %v1967, 96
  %v1970 = vpop.permute.xlu0 %1969
  %v1971 = vsel %vm417, %v1970, 0
  %1973 = vmatprep.subr.mxu0 0.0
  %1974 = vmatpush1.msra.mxu0 0.0
  %1975 = vmatprep.subr.mxu0 0.0
  %1976 = vmatpush1.msra.mxu0 0.0
  %1977 = vmatprep.subr.mxu0 0.0
  %1978 = vmatpush1.msra.mxu0 0.0
  %1979 = vmatprep.subr.mxu0 0.0
  %1980 = vmatpush1.msra.mxu0 0.0
  %1981 = vmatprep.subr.mxu0 0.0
  %1982 = vmatpush1.msra.mxu0 0.0
  %1983 = vmatprep.subr.mxu0 0.0
  %1984 = vmatpush1.msra.mxu0 0.0
  %1985 = vmatprep.subr.mxu0 0.0
  %1986 = vmatpush1.msra.mxu0 0.0
  %1987 = vmatprep.subr.mxu0 0.0
  %1988 = vmatpush1.msra.mxu0 0.0
  %1989 = vmatprep.subr.mxu0 0.0
  %1990 = vmatpush1.msra.mxu0 0.0
  %1991 = vmatprep.subr.mxu0 0.0
  %1992 = vmatpush1.msra.mxu0 0.0
  %1993 = vmatprep.subr.mxu0 0.0
  %1994 = vmatpush1.msra.mxu0 0.0
  %1995 = vmatprep.subr.mxu0 0.0
  %1996 = vmatpush1.msra.mxu0 0.0
  %1997 = vmatprep.subr.mxu0 0.0
  %1998 = vmatpush1.msra.mxu0 %v1662
  %1999 = vmatprep.subr.mxu0 0.0
  %2000 = vmatpush1.msra.mxu0 %v1661
  %2001 = vmatprep.subr.mxu0 0.0
  %2002 = vmatpush1.msra.mxu0 %v1660
  %2003 = vmatprep.subr.mxu0 0.0
  %2004 = vmatpush1.msra.mxu0 %v1659
  %2005 = vmatprep.subr.mxu0 0.0
  %2006 = vmatpush2.msra.mxu0 0.0
  %2007 = vmatprep.subr.mxu0 0.0
  %2008 = vmatpush2.msra.mxu0 0.0
  %2009 = vmatprep.subr.mxu0 0.0
  %2010 = vmatpush2.msra.mxu0 0.0
  %2011 = vmatprep.subr.mxu0 0.0
  %2012 = vmatpush2.msra.mxu0 0.0
  %2013 = vmatprep.subr.mxu0 0.0
  %2014 = vmatpush2.msra.mxu0 0.0
  %2015 = vmatprep.subr.mxu0 0.0
  %2016 = vmatpush2.msra.mxu0 0.0
  %2017 = vmatprep.subr.mxu0 0.0
  %2018 = vmatpush2.msra.mxu0 0.0
  %2019 = vmatprep.subr.mxu0 0.0
  %2020 = vmatpush2.msra.mxu0 0.0
  %2021 = vmatprep.subr.mxu0 0.0
  %2022 = vmatpush2.msra.mxu0 0.0
  %2023 = vmatprep.subr.mxu0 0.0
  %2024 = vmatpush2.msra.mxu0 0.0
  %2025 = vmatprep.subr.mxu0 0.0
  %2026 = vmatpush2.msra.mxu0 0.0
  %2027 = vmatprep.subr.mxu0 0.0
  %2028 = vmatpush2.msra.mxu0 0.0
  %2029 = vmatprep.subr.mxu0 0.0
  %2030 = vmatpush2.msra.mxu0 0.0
  %2031 = vmatprep.subr.mxu0 0.0
  %2032 = vmatpush2.msra.mxu0 0.0
  %2033 = vmatprep.subr.mxu0 0.0
  %2034 = vmatpush2.msra.mxu0 0.0
  %2035 = vmatprep.subr.mxu0 0.0
  %2036 = vmatpush2.msra.mxu0 0.0
  %2037 = vmatprep.mubr.f32.mxu0 0.0
  %2038 = vmatmul.mubr.f32.gmra.mxu0 %v1971
  %v2039 = vpop.f32.mrf.mxu0
  %v2040 = vadd.f32 %v1668, %v2039
  %v2041 = vpop.f32.mrf.mxu0
  %2042 = vdwg.mxu0
  %v2043 = vadd.f32 %v1640, %v2040
  %v2044 = vxor.u32 %v2043, 2147483648
  %v2045 = vmul.f32 %v2044, 1.442695
  %v2046 = vpow.pop %v2045
  %v2047 = vadd.f32 %v2046, 1.0
  %v2048 = vrcp.pop %v2047
  %v2049 = vmul.f32 1.0, %v2048
  %2051 = vrot.lane.b32.xlu0 %v2040, 64
  %v2052 = vpop.permute.xlu0 %2051
  %v2054 = vmul.f32 %v2049, %v2052
  %2056 = vrot.lane.b32.xlu0 %v2054, 64
  %v2057 = vpop.permute.xlu0 %2056
  %v2059 = vadd.f32 %v1640, %v2057
  %v2060 = vtanh.pop %v2059
  %v2061 = vsub.f32 1.0, %v2049
  %2063 = vrot.lane.b32.xlu0 %v2060, 96
  %v2064 = vpop.permute.xlu0 %2063
  %v2066 = vmul.f32 %v2061, %v2064
  %v2067 = vmul.f32 %v2049, %v1967
  %v2068 = vadd.f32 %v2066, %v2067
  %2070 = vrot.lane.b32.xlu0 %v2068, 96
  %v2071 = vpop.permute.xlu0 %2070
  %v2072 = vsel %vm417, %v2071, 0
  %2074 = vmatprep.subr.mxu0 0.0
  %2075 = vmatpush1.msra.mxu0 0.0
  %2076 = vmatprep.subr.mxu0 0.0
  %2077 = vmatpush1.msra.mxu0 0.0
  %2078 = vmatprep.subr.mxu0 0.0
  %2079 = vmatpush1.msra.mxu0 0.0
  %2080 = vmatprep.subr.mxu0 0.0
  %2081 = vmatpush1.msra.mxu0 0.0
  %2082 = vmatprep.subr.mxu0 0.0
  %2083 = vmatpush1.msra.mxu0 0.0
  %2084 = vmatprep.subr.mxu0 0.0
  %2085 = vmatpush1.msra.mxu0 0.0
  %2086 = vmatprep.subr.mxu0 0.0
  %2087 = vmatpush1.msra.mxu0 0.0
  %2088 = vmatprep.subr.mxu0 0.0
  %2089 = vmatpush1.msra.mxu0 0.0
  %2090 = vmatprep.subr.mxu0 0.0
  %2091 = vmatpush1.msra.mxu0 0.0
  %2092 = vmatprep.subr.mxu0 0.0
  %2093 = vmatpush1.msra.mxu0 0.0
  %2094 = vmatprep.subr.mxu0 0.0
  %2095 = vmatpush1.msra.mxu0 0.0
  %2096 = vmatprep.subr.mxu0 0.0
  %2097 = vmatpush1.msra.mxu0 0.0
  %2098 = vmatprep.subr.mxu0 0.0
  %2099 = vmatpush1.msra.mxu0 %v1662
  %2100 = vmatprep.subr.mxu0 0.0
  %2101 = vmatpush1.msra.mxu0 %v1661
  %2102 = vmatprep.subr.mxu0 0.0
  %2103 = vmatpush1.msra.mxu0 %v1660
  %2104 = vmatprep.subr.mxu0 0.0
  %2105 = vmatpush1.msra.mxu0 %v1659
  %2106 = vmatprep.subr.mxu0 0.0
  %2107 = vmatpush2.msra.mxu0 0.0
  %2108 = vmatprep.subr.mxu0 0.0
  %2109 = vmatpush2.msra.mxu0 0.0
  %2110 = vmatprep.subr.mxu0 0.0
  %2111 = vmatpush2.msra.mxu0 0.0
  %2112 = vmatprep.subr.mxu0 0.0
  %2113 = vmatpush2.msra.mxu0 0.0
  %2114 = vmatprep.subr.mxu0 0.0
  %2115 = vmatpush2.msra.mxu0 0.0
  %2116 = vmatprep.subr.mxu0 0.0
  %2117 = vmatpush2.msra.mxu0 0.0
  %2118 = vmatprep.subr.mxu0 0.0
  %2119 = vmatpush2.msra.mxu0 0.0
  %2120 = vmatprep.subr.mxu0 0.0
  %2121 = vmatpush2.msra.mxu0 0.0
  %2122 = vmatprep.subr.mxu0 0.0
  %2123 = vmatpush2.msra.mxu0 0.0
  %2124 = vmatprep.subr.mxu0 0.0
  %2125 = vmatpush2.msra.mxu0 0.0
  %2126 = vmatprep.subr.mxu0 0.0
  %2127 = vmatpush2.msra.mxu0 0.0
  %2128 = vmatprep.subr.mxu0 0.0
  %2129 = vmatpush2.msra.mxu0 0.0
  %2130 = vmatprep.subr.mxu0 0.0
  %2131 = vmatpush2.msra.mxu0 0.0
  %2132 = vmatprep.subr.mxu0 0.0
  %2133 = vmatpush2.msra.mxu0 0.0
  %2134 = vmatprep.subr.mxu0 0.0
  %2135 = vmatpush2.msra.mxu0 0.0
  %2136 = vmatprep.subr.mxu0 0.0
  %2137 = vmatpush2.msra.mxu0 0.0
  %2138 = vmatprep.mubr.f32.mxu0 0.0
  %2139 = vmatmul.mubr.f32.gmra.mxu0 %v2072
  %v2140 = vpop.f32.mrf.mxu0
  %v2141 = vadd.f32 %v1668, %v2140
  %v2142 = vpop.f32.mrf.mxu0
  %2143 = vdwg.mxu0
  %v2144 = vadd.f32 %v1645, %v2141
  %v2145 = vxor.u32 %v2144, 2147483648
  %v2146 = vmul.f32 %v2145, 1.442695
  %v2147 = vpow.pop %v2146
  %v2148 = vadd.f32 %v2147, 1.0
  %v2149 = vrcp.pop %v2148
  %v2150 = vmul.f32 1.0, %v2149
  %2152 = vrot.lane.b32.xlu0 %v2141, 64
  %v2153 = vpop.permute.xlu0 %2152
  %v2155 = vmul.f32 %v2150, %v2153
  %2157 = vrot.lane.b32.xlu0 %v2155, 64
  %v2158 = vpop.permute.xlu0 %2157
  %v2160 = vadd.f32 %v1645, %v2158
  %v2161 = vtanh.pop %v2160
  %v2162 = vsub.f32 1.0, %v2150
  %2164 = vrot.lane.b32.xlu0 %v2161, 96
  %v2165 = vpop.permute.xlu0 %2164
  %v2167 = vmul.f32 %v2162, %v2165
  %v2168 = vmul.f32 %v2150, %v2068
  %v2169 = vadd.f32 %v2167, %v2168
  %2171 = vrot.lane.b32.xlu0 %v2169, 96
  %v2172 = vpop.permute.xlu0 %2171
  %v2173 = vsel %vm417, %v2172, 0
  %2175 = vmatprep.subr.mxu0 0.0
  %2176 = vmatpush1.msra.mxu0 0.0
  %2177 = vmatprep.subr.mxu0 0.0
  %2178 = vmatpush1.msra.mxu0 0.0
  %2179 = vmatprep.subr.mxu0 0.0
  %2180 = vmatpush1.msra.mxu0 0.0
  %2181 = vmatprep.subr.mxu0 0.0
  %2182 = vmatpush1.msra.mxu0 0.0
  %2183 = vmatprep.subr.mxu0 0.0
  %2184 = vmatpush1.msra.mxu0 0.0
  %2185 = vmatprep.subr.mxu0 0.0
  %2186 = vmatpush1.msra.mxu0 0.0
  %2187 = vmatprep.subr.mxu0 0.0
  %2188 = vmatpush1.msra.mxu0 0.0
  %2189 = vmatprep.subr.mxu0 0.0
  %2190 = vmatpush1.msra.mxu0 0.0
  %2191 = vmatprep.subr.mxu0 0.0
  %2192 = vmatpush1.msra.mxu0 0.0
  %2193 = vmatprep.subr.mxu0 0.0
  %2194 = vmatpush1.msra.mxu0 0.0
  %2195 = vmatprep.subr.mxu0 0.0
  %2196 = vmatpush1.msra.mxu0 0.0
  %2197 = vmatprep.subr.mxu0 0.0
  %2198 = vmatpush1.msra.mxu0 0.0
  %2199 = vmatprep.subr.mxu0 0.0
  %2200 = vmatpush1.msra.mxu0 %v1662
  %2201 = vmatprep.subr.mxu0 0.0
  %2202 = vmatpush1.msra.mxu0 %v1661
  %2203 = vmatprep.subr.mxu0 0.0
  %2204 = vmatpush1.msra.mxu0 %v1660
  %2205 = vmatprep.subr.mxu0 0.0
  %2206 = vmatpush1.msra.mxu0 %v1659
  %2207 = vmatprep.subr.mxu0 0.0
  %2208 = vmatpush2.msra.mxu0 0.0
  %2209 = vmatprep.subr.mxu0 0.0
  %2210 = vmatpush2.msra.mxu0 0.0
  %2211 = vmatprep.subr.mxu0 0.0
  %2212 = vmatpush2.msra.mxu0 0.0
  %2213 = vmatprep.subr.mxu0 0.0
  %2214 = vmatpush2.msra.mxu0 0.0
  %2215 = vmatprep.subr.mxu0 0.0
  %2216 = vmatpush2.msra.mxu0 0.0
  %2217 = vmatprep.subr.mxu0 0.0
  %2218 = vmatpush2.msra.mxu0 0.0
  %2219 = vmatprep.subr.mxu0 0.0
  %2220 = vmatpush2.msra.mxu0 0.0
  %2221 = vmatprep.subr.mxu0 0.0
  %2222 = vmatpush2.msra.mxu0 0.0
  %2223 = vmatprep.subr.mxu0 0.0
  %2224 = vmatpush2.msra.mxu0 0.0
  %2225 = vmatprep.subr.mxu0 0.0
  %2226 = vmatpush2.msra.mxu0 0.0
  %2227 = vmatprep.subr.mxu0 0.0
  %2228 = vmatpush2.msra.mxu0 0.0
  %2229 = vmatprep.subr.mxu0 0.0
  %2230 = vmatpush2.msra.mxu0 0.0
  %2231 = vmatprep.subr.mxu0 0.0
  %2232 = vmatpush2.msra.mxu0 0.0
  %2233 = vmatprep.subr.mxu0 0.0
  %2234 = vmatpush2.msra.mxu0 0.0
  %2235 = vmatprep.subr.mxu0 0.0
  %2236 = vmatpush2.msra.mxu0 0.0
  %2237 = vmatprep.subr.mxu0 0.0
  %2238 = vmatpush2.msra.mxu0 0.0
  %2239 = vmatprep.mubr.f32.mxu0 0.0
  %2240 = vmatmul.mubr.f32.gmra.mxu0 %v2173
  %v2241 = vpop.f32.mrf.mxu0
  %v2242 = vadd.f32 %v1668, %v2241
  %v2243 = vpop.f32.mrf.mxu0
  %2244 = vdwg.mxu0
  %v2245 = vadd.f32 %v1648, %v2242
  %v2246 = vxor.u32 %v2245, 2147483648
  %v2247 = vmul.f32 %v2246, 1.442695
  %v2248 = vpow.pop %v2247
  %v2249 = vadd.f32 %v2248, 1.0
  %v2250 = vrcp.pop %v2249
  %v2251 = vmul.f32 1.0, %v2250
  %2253 = vrot.lane.b32.xlu0 %v2242, 64
  %v2254 = vpop.permute.xlu0 %2253
  %v2256 = vmul.f32 %v2251, %v2254
  %2258 = vrot.lane.b32.xlu0 %v2256, 64
  %v2259 = vpop.permute.xlu0 %2258
  %v2261 = vadd.f32 %v1648, %v2259
  %v2262 = vtanh.pop %v2261
  %v2263 = vsub.f32 1.0, %v2251
  %2265 = vrot.lane.b32.xlu0 %v2262, 96
  %v2266 = vpop.permute.xlu0 %2265
  %v2268 = vmul.f32 %v2263, %v2266
  %v2269 = vmul.f32 %v2251, %v2169
  %v2270 = vadd.f32 %v2268, %v2269
  %2272 = vrot.lane.b32.xlu0 %v2270, 96
  %v2273 = vpop.permute.xlu0 %2272
  %v2274 = vsel %vm417, %v2273, 0
  %2276 = vmatprep.subr.mxu0 0.0
  %2277 = vmatpush1.msra.mxu0 0.0
  %2278 = vmatprep.subr.mxu0 0.0
  %2279 = vmatpush1.msra.mxu0 0.0
  %2280 = vmatprep.subr.mxu0 0.0
  %2281 = vmatpush1.msra.mxu0 0.0
  %2282 = vmatprep.subr.mxu0 0.0
  %2283 = vmatpush1.msra.mxu0 0.0
  %2284 = vmatprep.subr.mxu0 0.0
  %2285 = vmatpush1.msra.mxu0 0.0
  %2286 = vmatprep.subr.mxu0 0.0
  %2287 = vmatpush1.msra.mxu0 0.0
  %2288 = vmatprep.subr.mxu0 0.0
  %2289 = vmatpush1.msra.mxu0 0.0
  %2290 = vmatprep.subr.mxu0 0.0
  %2291 = vmatpush1.msra.mxu0 0.0
  %2292 = vmatprep.subr.mxu0 0.0
  %2293 = vmatpush1.msra.mxu0 0.0
  %2294 = vmatprep.subr.mxu0 0.0
  %2295 = vmatpush1.msra.mxu0 0.0
  %2296 = vmatprep.subr.mxu0 0.0
  %2297 = vmatpush1.msra.mxu0 0.0
  %2298 = vmatprep.subr.mxu0 0.0
  %2299 = vmatpush1.msra.mxu0 0.0
  %2300 = vmatprep.subr.mxu0 0.0
  %2301 = vmatpush1.msra.mxu0 %v1662
  %2302 = vmatprep.subr.mxu0 0.0
  %2303 = vmatpush1.msra.mxu0 %v1661
  %2304 = vmatprep.subr.mxu0 0.0
  %2305 = vmatpush1.msra.mxu0 %v1660
  %2306 = vmatprep.subr.mxu0 0.0
  %2307 = vmatpush1.msra.mxu0 %v1659
  %2308 = vmatprep.subr.mxu0 0.0
  %2309 = vmatpush2.msra.mxu0 0.0
  %2310 = vmatprep.subr.mxu0 0.0
  %2311 = vmatpush2.msra.mxu0 0.0
  %2312 = vmatprep.subr.mxu0 0.0
  %2313 = vmatpush2.msra.mxu0 0.0
  %2314 = vmatprep.subr.mxu0 0.0
  %2315 = vmatpush2.msra.mxu0 0.0
  %2316 = vmatprep.subr.mxu0 0.0
  %2317 = vmatpush2.msra.mxu0 0.0
  %2318 = vmatprep.subr.mxu0 0.0
  %2319 = vmatpush2.msra.mxu0 0.0
  %2320 = vmatprep.subr.mxu0 0.0
  %2321 = vmatpush2.msra.mxu0 0.0
  %2322 = vmatprep.subr.mxu0 0.0
  %2323 = vmatpush2.msra.mxu0 0.0
  %2324 = vmatprep.subr.mxu0 0.0
  %2325 = vmatpush2.msra.mxu0 0.0
  %2326 = vmatprep.subr.mxu0 0.0
  %2327 = vmatpush2.msra.mxu0 0.0
  %2328 = vmatprep.subr.mxu0 0.0
  %2329 = vmatpush2.msra.mxu0 0.0
  %2330 = vmatprep.subr.mxu0 0.0
  %2331 = vmatpush2.msra.mxu0 0.0
  %2332 = vmatprep.subr.mxu0 0.0
  %2333 = vmatpush2.msra.mxu0 0.0
  %2334 = vmatprep.subr.mxu0 0.0
  %2335 = vmatpush2.msra.mxu0 0.0
  %2336 = vmatprep.subr.mxu0 0.0
  %2337 = vmatpush2.msra.mxu0 0.0
  %2338 = vmatprep.subr.mxu0 0.0
  %2339 = vmatpush2.msra.mxu0 0.0
  %2340 = vmatprep.mubr.f32.mxu0 0.0
  %2341 = vmatmul.mubr.f32.gmra.mxu0 %v2274
  %v2342 = vpop.f32.mrf.mxu0
  %v2343 = vadd.f32 %v1668, %v2342
  %v2344 = vpop.f32.mrf.mxu0
  %2345 = vdwg.mxu0
  %v2346 = vadd.f32 %v1653, %v2343
  %v2347 = vxor.u32 %v2346, 2147483648
  %v2348 = vmul.f32 %v2347, 1.442695
  %v2349 = vpow.pop %v2348
  %v2350 = vadd.f32 %v2349, 1.0
  %v2351 = vrcp.pop %v2350
  %v2352 = vmul.f32 1.0, %v2351
  %2354 = vrot.lane.b32.xlu0 %v2343, 64
  %v2355 = vpop.permute.xlu0 %2354
  %v2357 = vmul.f32 %v2352, %v2355
  %2359 = vrot.lane.b32.xlu0 %v2357, 64
  %v2360 = vpop.permute.xlu0 %2359
  %v2362 = vadd.f32 %v1653, %v2360
  %v2363 = vtanh.pop %v2362
  %v2364 = vsub.f32 1.0, %v2352
  %2366 = vrot.lane.b32.xlu0 %v2363, 96
  %v2367 = vpop.permute.xlu0 %2366
  %v2369 = vmul.f32 %v2364, %v2367
  %v2370 = vmul.f32 %v2352, %v2270
  %v2371 = vadd.f32 %v2369, %v2370
  %2373 = vrot.lane.b32.xlu0 %v2371, 96
  %v2374 = vpop.permute.xlu0 %2373
  %v2375 = vsel %vm417, %v2374, 0
  %2377 = vmatprep.subr.mxu0 0.0
  %2378 = vmatpush1.msra.mxu0 0.0
  %2379 = vmatprep.subr.mxu0 0.0
  %2380 = vmatpush1.msra.mxu0 0.0
  %2381 = vmatprep.subr.mxu0 0.0
  %2382 = vmatpush1.msra.mxu0 0.0
  %2383 = vmatprep.subr.mxu0 0.0
  %2384 = vmatpush1.msra.mxu0 0.0
  %2385 = vmatprep.subr.mxu0 0.0
  %2386 = vmatpush1.msra.mxu0 0.0
  %2387 = vmatprep.subr.mxu0 0.0
  %2388 = vmatpush1.msra.mxu0 0.0
  %2389 = vmatprep.subr.mxu0 0.0
  %2390 = vmatpush1.msra.mxu0 0.0
  %2391 = vmatprep.subr.mxu0 0.0
  %2392 = vmatpush1.msra.mxu0 0.0
  %2393 = vmatprep.subr.mxu0 0.0
  %2394 = vmatpush1.msra.mxu0 0.0
  %2395 = vmatprep.subr.mxu0 0.0
  %2396 = vmatpush1.msra.mxu0 0.0
  %2397 = vmatprep.subr.mxu0 0.0
  %2398 = vmatpush1.msra.mxu0 0.0
  %2399 = vmatprep.subr.mxu0 0.0
  %2400 = vmatpush1.msra.mxu0 0.0
  %2401 = vmatprep.subr.mxu0 0.0
  %2402 = vmatpush1.msra.mxu0 %v1662
  %2403 = vmatprep.subr.mxu0 0.0
  %2404 = vmatpush1.msra.mxu0 %v1661
  %2405 = vmatprep.subr.mxu0 0.0
  %2406 = vmatpush1.msra.mxu0 %v1660
  %2407 = vmatprep.subr.mxu0 0.0
  %2408 = vmatpush1.msra.mxu0 %v1659
  %2409 = vmatprep.subr.mxu0 0.0
  %2410 = vmatpush2.msra.mxu0 0.0
  %2411 = vmatprep.subr.mxu0 0.0
  %2412 = vmatpush2.msra.mxu0 0.0
  %2413 = vmatprep.subr.mxu0 0.0
  %2414 = vmatpush2.msra.mxu0 0.0
  %2415 = vmatprep.subr.mxu0 0.0
  %2416 = vmatpush2.msra.mxu0 0.0
  %2417 = vmatprep.subr.mxu0 0.0
  %2418 = vmatpush2.msra.mxu0 0.0
  %2419 = vmatprep.subr.mxu0 0.0
  %2420 = vmatpush2.msra.mxu0 0.0
  %2421 = vmatprep.subr.mxu0 0.0
  %2422 = vmatpush2.msra.mxu0 0.0
  %2423 = vmatprep.subr.mxu0 0.0
  %2424 = vmatpush2.msra.mxu0 0.0
  %2425 = vmatprep.subr.mxu0 0.0
  %2426 = vmatpush2.msra.mxu0 0.0
  %2427 = vmatprep.subr.mxu0 0.0
  %2428 = vmatpush2.msra.mxu0 0.0
  %2429 = vmatprep.subr.mxu0 0.0
  %2430 = vmatpush2.msra.mxu0 0.0
  %2431 = vmatprep.subr.mxu0 0.0
  %2432 = vmatpush2.msra.mxu0 0.0
  %2433 = vmatprep.subr.mxu0 0.0
  %2434 = vmatpush2.msra.mxu0 0.0
  %2435 = vmatprep.subr.mxu0 0.0
  %2436 = vmatpush2.msra.mxu0 0.0
  %2437 = vmatprep.subr.mxu0 0.0
  %2438 = vmatpush2.msra.mxu0 0.0
  %2439 = vmatprep.subr.mxu0 0.0
  %2440 = vmatpush2.msra.mxu0 0.0
  %2441 = vmatprep.mubr.f32.mxu0 0.0
  %2442 = vmatmul.mubr.f32.gmra.mxu0 %v2375
  %v2443 = vpop.f32.mrf.mxu0
  %v2444 = vadd.f32 %v1668, %v2443
  %v2445 = vpop.f32.mrf.mxu0
  %2446 = vdwg.mxu0
  %v2447 = vadd.f32 %v1656, %v2444
  %v2448 = vxor.u32 %v2447, 2147483648
  %v2449 = vmul.f32 %v2448, 1.442695
  %v2450 = vpow.pop %v2449
  %v2451 = vadd.f32 %v2450, 1.0
  %v2452 = vrcp.pop %v2451
  %v2453 = vmul.f32 1.0, %v2452
  %2455 = vrot.lane.b32.xlu0 %v2444, 64
  %v2456 = vpop.permute.xlu0 %2455
  %v2458 = vmul.f32 %v2453, %v2456
  %2460 = vrot.lane.b32.xlu0 %v2458, 64
  %v2461 = vpop.permute.xlu0 %2460
  %v2463 = vadd.f32 %v1656, %v2461
  %v2464 = vtanh.pop %v2463
  %v2465 = vsub.f32 1.0, %v2453
  %2467 = vrot.lane.b32.xlu0 %v2464, 96
  %v2468 = vpop.permute.xlu0 %2467
  %v2470 = vmul.f32 %v2465, %v2468
  %v2471 = vmul.f32 %v2453, %v2371
  %v2472 = vadd.f32 %v2470, %v2471
  %2474 = vrot.lane.b32.xlu0 %v2472, 96
  %v2475 = vpop.permute.xlu0 %2474
  %2484 = vst.msk [vmem:[%s16] sm:$0xff] %vm417, %v1768
  %2485 = vst.msk [vmem:[%s16 + $0x8] sm:$0xff] %vm417, %v1869
  %2486 = vst.msk [vmem:[%s16 + $0x10] sm:$0xff] %vm417, %v1970
  %2487 = vst.msk [vmem:[%s16 + $0x18] sm:$0xff] %vm417, %v2071
  %2488 = vst.msk [vmem:[%s16 + $0x20] sm:$0xff] %vm417, %v2172
  %2489 = vst.msk [vmem:[%s16 + $0x28] sm:$0xff] %vm417, %v2273
  %2490 = vst.msk [vmem:[%s16 + $0x30] sm:$0xff] %vm417, %v2374
  %2491 = vst.msk [vmem:[%s16 + $0x38] sm:$0xff] %vm417, %v2475
  %2493 = vrot.lane.b32.xlu0 %v1434, 96
  %v2494 = vpop.permute.xlu0 %2493
  %v2496 = vsel %vm417, %v2494, %v2472
  %vm2497 = vcmask 523264
  %2498 = vst.msk [vmem:[%s17] sm:$0xff] %vm2497, %v2496
  // Predicated region
  $region66: #{all_inputs_encoder_forward.1} parent=0 // pred_check
    _
  $region67: #{all_inputs_encoder_forward.1} parent=0 // pred_check_branch
    %2500 = sbr.rel (0) target = $region69
  $region68: #{all_inputs_encoder_forward.1} parent=0 // pred_region
    _
  $region69: #{all_inputs_encoder_forward.1} parent=0 // pred_fallthru
    _
  // Predicated region
  $region70: #{all_inputs_encoder_forward.1} parent=0 // pred_check
    _
  $region71: #{all_inputs_encoder_forward.1} parent=0 // pred_check_branch
    %2502 = sbr.rel (0) target = $region73
  $region72: #{all_inputs_encoder_forward.1} parent=0 // pred_region
    _
  $region73: #{all_inputs_encoder_forward.1} parent=0 // pred_fallthru
    _
  // Predicated region
  $region74: #{all_inputs_encoder_forward.1} parent=0 // pred_check
    _
  $region75: #{all_inputs_encoder_forward.1} parent=0 // pred_check_branch
    %2504 = sbr.rel (0) target = $region77
  $region76: #{all_inputs_encoder_forward.1} parent=0 // pred_region
    _
  $region77: #{all_inputs_encoder_forward.1} parent=0 // pred_fallthru
    _
  // Predicated region
  $region78: #{all_inputs_encoder_forward.1} parent=0 // pred_check
    _
  $region79: #{all_inputs_encoder_forward.1} parent=0 // pred_check_branch
    %2506 = sbr.rel (0) target = $region81
  $region80: #{all_inputs_encoder_forward.1} parent=0 // pred_region
    _
  $region81: #{all_inputs_encoder_forward.1} parent=0 // pred_fallthru
    _

</llo_original>
